<compile_context>
chip_gen: v5e
topology: v5e:2x2
jax: 0.10.0
libtpu: 0.0.40
codegen_flags: <defaults>
</compile_context>

<pallas_src>
import functools

import jax
import jax.numpy as jnp
from jax.experimental import pallas as pl
from jax.experimental.pallas import tpu as pltpu

HIDDEN = 750        # logical hidden width (hardcoded in the PyTorch module)
HIDDEN_PAD = 768    # padded to a multiple of 128 for lane-dense tiles


def round_up(x, m):
    return ((x + m - 1) // m) * m


def _pad2(x, rows, cols):
    r, c = x.shape
    return jnp.pad(x, ((0, rows - r), (0, cols - c)))


# --------------------------------------------------------------------------
# Kernel
# --------------------------------------------------------------------------
def vae_kernel(sa8, s8, l8, max_action,
               act_ref, big_ref, w2_ref, small_ref, out_ref):
    f32 = jnp.float32
    bf16 = jnp.bfloat16

    # ---- static slices into the packed f32 small-weight slab (all row
    #      offsets are multiples of 8 -> sublane aligned) ----
    o_b = sa8 + s8 + l8
    e0w = small_ref[0:sa8, :]                       # (SA8, 768)  encoder L0
    d0s = small_ref[sa8:sa8 + s8, :]                # (S8, 768)   decoder L0 (state)
    d0z = small_ref[sa8 + s8:o_b, :]                # (L8, 768)   decoder L0 (z)
    e0b = small_ref[o_b + 0:o_b + 1, :]             # (1, 768)
    e1b = small_ref[o_b + 8:o_b + 9, :]
    d0b = small_ref[o_b + 16:o_b + 17, :]
    d1b = small_ref[o_b + 24:o_b + 25, :]
    headb = small_ref[o_b + 32:o_b + 33, 0:256]     # (1, 256)
    d2b = small_ref[o_b + 40:o_b + 41, 0:128]       # (1, 128)

    # ---------- encoder ----------
    xa = act_ref[:, 0:sa8]                          # f32 [state | action] (zero padded)
    h = jnp.dot(xa, e0w, preferred_element_type=f32) + e0b
    h = jnp.maximum(h, 0.0)
    h = jnp.dot(h.astype(bf16), big_ref[0], preferred_element_type=f32) + e1b
    h = jnp.maximum(h, 0.0)

    # ---------- fused, lane-aligned latent head: [mean | log_std] ----------
    ml = jnp.dot(h.astype(bf16), w2_ref[:, 0:256],
                 preferred_element_type=f32) + headb
    mean = ml[:, 0:128]
    std = jnp.exp(jnp.clip(ml[:, 128:256], -4.0, 15.0))

    # ---------- reparameterization (host-supplied noise, deterministic) ----
    eps = act_ref[:, sa8:sa8 + l8]                  # (TB, L8) f32
    z = mean[:, 0:l8] + std[:, 0:l8] * eps          # f32

    # ---------- decoder (split matmul avoids lane concatenation) ----------
    y = (jnp.dot(act_ref[:, 0:s8], d0s, preferred_element_type=f32)
         + jnp.dot(z, d0z, preferred_element_type=f32)
         + d0b)
    y = jnp.maximum(y, 0.0)
    y = jnp.dot(y.astype(bf16), big_ref[1], preferred_element_type=f32) + d1b
    y = jnp.maximum(y, 0.0)
    y = jnp.dot(y.astype(bf16), w2_ref[:, 256:384],
                preferred_element_type=f32) + d2b

    # ---------- single lane-dense fused output: mean | std | u ----------
    out_ref[:, 0:128] = mean
    out_ref[:, 128:256] = std
    out_ref[:, 256:384] = max_action * jnp.tanh(y)


# --------------------------------------------------------------------------
# Host-side parameter construction / packing
# --------------------------------------------------------------------------
def make_params(key, state_dim, action_dim, latent_dim):
    """Deterministic synthetic f32 weights at the module's logical shapes,
    stored as (in, out) matrices (y = x @ W + b)."""
    ks = jax.random.split(key, 16)

    def w(k, shape, scale=0.05):
        return (scale * jax.random.normal(k, shape)).astype(jnp.float32)

    p = {}
    p["e0_w"] = w(ks[0], (state_dim + action_dim, HIDDEN))
    p["e0_b"] = w(ks[1], (1, HIDDEN))
    p["e1_w"] = w(ks[2], (HIDDEN, HIDDEN))
    p["e1_b"] = w(ks[3], (1, HIDDEN))
    p["m_w"] = w(ks[4], (HIDDEN, latent_dim))
    p["m_b"] = w(ks[5], (1, latent_dim))
    p["l_w"] = w(ks[6], (HIDDEN, latent_dim))
    p["l_b"] = w(ks[7], (1, latent_dim))
    p["d0_w"] = w(ks[8], (state_dim + latent_dim, HIDDEN))
    p["d0_b"] = w(ks[9], (1, HIDDEN))
    p["d1_w"] = w(ks[10], (HIDDEN, HIDDEN))
    p["d1_b"] = w(ks[11], (1, HIDDEN))
    p["d2_w"] = w(ks[12], (HIDDEN, action_dim))
    p["d2_b"] = w(ks[13], (1, action_dim))
    return p


def prepare_kernel_params(params, state_dim, action_dim, latent_dim):
    """Pack all weights into 3 slabs (big bf16, head/final bf16, small f32)."""
    f32, bf16 = jnp.float32, jnp.bfloat16
    SA8 = round_up(state_dim + action_dim, 8)
    S8 = round_up(state_dim, 8)
    L8 = round_up(latent_dim, 8)

    # --- big bf16 slab: [e1_w ; d1_w], each padded to (768, 768) ---
    big = jnp.stack([_pad2(params["e1_w"], HIDDEN_PAD, HIDDEN_PAD),
                     _pad2(params["d1_w"], HIDDEN_PAD, HIDDEN_PAD)]).astype(bf16)

    # --- lane-aligned head (mean lanes [0,128), log_std lanes [128,256)) +
    #     final decoder layer, fused into one (768, 384) bf16 slab ---
    head_w = jnp.concatenate([_pad2(params["m_w"], HIDDEN_PAD, 128),
                              _pad2(params["l_w"], HIDDEN_PAD, 128)], axis=1)
    d2_w = _pad2(params["d2_w"], HIDDEN_PAD, 128)
    w2 = jnp.concatenate([head_w, d2_w], axis=1).astype(bf16)   # (768, 384)

    # --- packed f32 slab: tiny-K first-layer weights + all biases ---
    def bias_block(b):
        blk = jnp.zeros((8, HIDDEN_PAD), f32)
        return blk.at[0, :b.shape[1]].set(b[0])

    head_b = jnp.zeros((1, 256), f32)
    head_b = head_b.at[0, :latent_dim].set(params["m_b"][0])
    head_b = head_b.at[0, 128:128 + latent_dim].set(params["l_b"][0])
    d2_b = _pad2(params["d2_b"], 1, 128)

    d0 = params["d0_w"]
    small = jnp.concatenate([
        _pad2(params["e0_w"], SA8, HIDDEN_PAD),        # encoder L0 weight
        _pad2(d0[:state_dim], S8, HIDDEN_PAD),         # decoder L0 (state rows)
        _pad2(d0[state_dim:], L8, HIDDEN_PAD),         # decoder L0 (z rows)
        bias_block(params["e0_b"]),
        bias_block(params["e1_b"]),
        bias_block(params["d0_b"]),
        bias_block(params["d1_b"]),
        bias_block(head_b),
        bias_block(d2_b),
    ], axis=0).astype(f32)

    return {"big": big, "w2": w2, "small": small,
            "sa8": SA8, "s8": S8, "l8": L8}


# --------------------------------------------------------------------------
# Forward wrapper
# --------------------------------------------------------------------------
def vae_forward(state, action, eps, kp, max_action, latent_dim):
    """Whole VAE forward in one Pallas kernel with a batch grid; weights stay
    VMEM-resident across grid steps."""
    B, state_dim = state.shape
    action_dim = action.shape[1]
    sa8, s8, l8 = kp["sa8"], kp["s8"], kp["l8"]

    B8 = max(8, round_up(B, 8))
    tile_b = min(256, B8)
    b_pad = round_up(B8, tile_b)
    act_cols = round_up(sa8 + l8, 128)

    # One coalesced activation slab: [state | action | eps], zero padded.
    act = jnp.zeros((b_pad, act_cols), jnp.float32)
    act = act.at[:B, 0:state_dim].set(state.astype(jnp.float32))
    act = act.at[:B, state_dim:state_dim + action_dim].set(
        action.astype(jnp.float32))
    act = act.at[:B, sa8:sa8 + latent_dim].set(eps.astype(jnp.float32))

    small_rows = kp["small"].shape[0]
    kernel = functools.partial(vae_kernel, sa8, s8, l8, float(max_action))

    out = pl.pallas_call(
        kernel,
        out_shape=jax.ShapeDtypeStruct((b_pad, 384), jnp.float32),
        grid=(b_pad // tile_b,),
        in_specs=[
            pl.BlockSpec((tile_b, act_cols), lambda i: (i, 0)),
            pl.BlockSpec((2, HIDDEN_PAD, HIDDEN_PAD), lambda i: (0, 0, 0)),
            pl.BlockSpec((HIDDEN_PAD, 384), lambda i: (0, 0)),
            pl.BlockSpec((small_rows, HIDDEN_PAD), lambda i: (0, 0)),
        ],
        out_specs=pl.BlockSpec((tile_b, 384), lambda i: (i, 0)),
        compiler_params=pltpu.CompilerParams(
            # "arbitrary": do NOT split a tiny batch across TensorCores —
            # that would duplicate the (dominant) weight DMA per core.
            dimension_semantics=("arbitrary",),
            vmem_limit_bytes=32 << 20),
    )(act, kp["big"], kp["w2"], kp["small"])

    mean = out[:B, 0:latent_dim]
    std = out[:B, 128:128 + latent_dim]
    u = out[:B, 256:256 + action_dim]
    return u, mean, std


def vae_forward_ref(state, action, eps, params, max_action):
    """Pure-JAX f32 reference mirroring the PyTorch forward."""
    x = jnp.concatenate([state, action], axis=1)
    h = jax.nn.relu(x @ params["e0_w"] + params["e0_b"])
    h = jax.nn.relu(h @ params["e1_w"] + params["e1_b"])
    mean = h @ params["m_w"] + params["m_b"]
    log_std = jnp.clip(h @ params["l_w"] + params["l_b"], -4.0, 15.0)
    std = jnp.exp(log_std)
    z = mean + std * eps
    y = jnp.concatenate([state, z], axis=1)
    y = jax.nn.relu(y @ params["d0_w"] + params["d0_b"])
    y = jax.nn.relu(y @ params["d1_w"] + params["d1_b"])
    y = y @ params["d2_w"] + params["d2_b"]
    return max_action * jnp.tanh(y), mean, std


if __name__ == "__main__":
    B, state_dim, action_dim, latent_dim = 2, 8, 4, 6
    max_action = 1.0

    key = jax.random.PRNGKey(0)
    k_param, k_state, k_action, k_eps = jax.random.split(key, 4)

    params = make_params(k_param, state_dim, action_dim, latent_dim)
    kparams = prepare_kernel_params(params, state_dim, action_dim, latent_dim)

    state = jax.random.normal(k_state, (B, state_dim), dtype=jnp.float32)
    action = jax.random.normal(k_action, (B, action_dim), dtype=jnp.float32)
    eps = jax.random.normal(k_eps, (B, latent_dim), dtype=jnp.float32)

    u, mean, std = vae_forward(state, action, eps, kparams, max_action,
                               latent_dim)
    jax.block_until_ready((u, mean, std))

    u_ref, mean_ref, std_ref = vae_forward_ref(state, action, eps, params,
                                               max_action)
    # bf16 hidden-layer weights + f32 accumulation vs full-f32 reference.
    assert jnp.allclose(u, u_ref, atol=2e-2, rtol=2e-2)
    assert jnp.allclose(mean, mean_ref, atol=2e-2, rtol=2e-2)
    assert jnp.allclose(std, std_ref, atol=2e-2, rtol=2e-2)

    print("KERNEL_OK")
</pallas_src>

<mosaic_0001>
module attributes {stable_mosaic.version = 11 : i64} {
  func.func @vae_kernel(%arg0: i32, %arg1: memref<8x128xf32, #tpu.memory_space<vmem>>, %arg2: memref<2x768x768xbf16, #tpu.memory_space<vmem>>, %arg3: memref<768x384xbf16, #tpu.memory_space<vmem>>, %arg4: memref<80x768xf32, #tpu.memory_space<vmem>>, %arg5: memref<8x384xf32, #tpu.memory_space<vmem>>) attributes {dimension_semantics = [#tpu.dimension_semantics<arbitrary>], iteration_bounds = array<i64: 1>, scalar_prefetch = 0 : i64, scratch_operands = 0 : i64, tpu.core_type = #tpu.core_type<tc>, window_params = [{transform_indices = @transform_0, window_bounds = array<i64: 8, 128>}, {pipeline_mode = #tpu.pipeline_mode<synchronous>, transform_indices = @transform_1, window_bounds = array<i64: 2, 768, 768>}, {pipeline_mode = #tpu.pipeline_mode<synchronous>, transform_indices = @transform_2, window_bounds = array<i64: 768, 384>}, {pipeline_mode = #tpu.pipeline_mode<synchronous>, transform_indices = @transform_3, window_bounds = array<i64: 80, 768>}, {transform_indices = @transform_4, window_bounds = array<i64: 8, 384>}]} {
    %c0 = arith.constant 0 : index
    %c0_0 = arith.constant 0 : index
    %0 = vector.load %arg4[%c0, %c0_0] : memref<80x768xf32, #tpu.memory_space<vmem>>, vector<16x768xf32>
    %c16 = arith.constant 16 : index
    %c0_1 = arith.constant 0 : index
    %1 = vector.load %arg4[%c16, %c0_1] : memref<80x768xf32, #tpu.memory_space<vmem>>, vector<8x768xf32>
    %c24 = arith.constant 24 : index
    %c0_2 = arith.constant 0 : index
    %2 = vector.load %arg4[%c24, %c0_2] : memref<80x768xf32, #tpu.memory_space<vmem>>, vector<8x768xf32>
    %c32 = arith.constant 32 : index
    %c0_3 = arith.constant 0 : index
    %3 = vector.load %arg4[%c32, %c0_3] : memref<80x768xf32, #tpu.memory_space<vmem>>, vector<1x768xf32>
    %c40 = arith.constant 40 : index
    %c0_4 = arith.constant 0 : index
    %4 = vector.load %arg4[%c40, %c0_4] : memref<80x768xf32, #tpu.memory_space<vmem>>, vector<1x768xf32>
    %c48 = arith.constant 48 : index
    %c0_5 = arith.constant 0 : index
    %5 = vector.load %arg4[%c48, %c0_5] : memref<80x768xf32, #tpu.memory_space<vmem>>, vector<1x768xf32>
    %c56 = arith.constant 56 : index
    %c0_6 = arith.constant 0 : index
    %6 = vector.load %arg4[%c56, %c0_6] : memref<80x768xf32, #tpu.memory_space<vmem>>, vector<1x768xf32>
    %c64 = arith.constant 64 : index
    %c0_7 = arith.constant 0 : index
    %7 = vector.load %arg4[%c64, %c0_7] : memref<80x768xf32, #tpu.memory_space<vmem>>, vector<1x256xf32>
    %c72 = arith.constant 72 : index
    %c0_8 = arith.constant 0 : index
    %8 = vector.load %arg4[%c72, %c0_8] : memref<80x768xf32, #tpu.memory_space<vmem>>, vector<1x128xf32>
    %c0_9 = arith.constant 0 : index
    %c0_10 = arith.constant 0 : index
    %9 = vector.load %arg1[%c0_9, %c0_10] : memref<8x128xf32, #tpu.memory_space<vmem>>, vector<8x16xf32>
    %cst = arith.constant dense<0.000000e+00> : vector<8x768xf32>
    %10 = tpu.matmul %9, %0, %cst {dimension_numbers = #tpu.dot_dimension_numbers<[1], [0], [0], [1], [0, 0, 1, 1], [], []>} : vector<8x16xf32>, vector<16x768xf32>, vector<8x768xf32> -> vector<8x768xf32>
    %11 = vector.broadcast %3 : vector<1x768xf32> to vector<8x768xf32>
    %12 = arith.addf %10, %11 : vector<8x768xf32>
    %cst_11 = arith.constant 0.000000e+00 : f32
    %13 = vector.broadcast %cst_11 : f32 to vector<8x768xf32>
    %14 = arith.maximumf %12, %13 : vector<8x768xf32>
    %15 = arith.truncf %14 : vector<8x768xf32> to vector<8x768xbf16>
    %c0_12 = arith.constant 0 : index
    %c0_13 = arith.constant 0 : index
    %c0_14 = arith.constant 0 : index
    %16 = vector.load %arg2[%c0_12, %c0_13, %c0_14] : memref<2x768x768xbf16, #tpu.memory_space<vmem>>, vector<1x768x768xbf16>
    %17 = vector.shape_cast %16 : vector<1x768x768xbf16> to vector<768x768xbf16>
    %cst_15 = arith.constant dense<0.000000e+00> : vector<8x768xf32>
    %18 = tpu.matmul %15, %17, %cst_15 {dimension_numbers = #tpu.dot_dimension_numbers<[1], [0], [0], [1], [0, 0, 1, 1], [], []>} : vector<8x768xbf16>, vector<768x768xbf16>, vector<8x768xf32> -> vector<8x768xf32>
    %19 = vector.broadcast %4 : vector<1x768xf32> to vector<8x768xf32>
    %20 = arith.addf %18, %19 : vector<8x768xf32>
    %cst_16 = arith.constant 0.000000e+00 : f32
    %21 = vector.broadcast %cst_16 : f32 to vector<8x768xf32>
    %22 = arith.maximumf %20, %21 : vector<8x768xf32>
    %23 = arith.truncf %22 : vector<8x768xf32> to vector<8x768xbf16>
    %c0_17 = arith.constant 0 : index
    %c0_18 = arith.constant 0 : index
    %24 = vector.load %arg3[%c0_17, %c0_18] : memref<768x384xbf16, #tpu.memory_space<vmem>>, vector<768x256xbf16>
    %cst_19 = arith.constant dense<0.000000e+00> : vector<8x256xf32>
    %25 = tpu.matmul %23, %24, %cst_19 {dimension_numbers = #tpu.dot_dimension_numbers<[1], [0], [0], [1], [0, 0, 1, 1], [], []>} : vector<8x768xbf16>, vector<768x256xbf16>, vector<8x256xf32> -> vector<8x256xf32>
    %26 = vector.broadcast %7 : vector<1x256xf32> to vector<8x256xf32>
    %27 = arith.addf %25, %26 : vector<8x256xf32>
    %28 = vector.extract_strided_slice %27 {offsets = [0, 0], sizes = [8, 128], strides = [1, 1]} : vector<8x256xf32> to vector<8x128xf32>
    %29 = vector.extract_strided_slice %27 {offsets = [0, 128], sizes = [8, 128], strides = [1, 1]} : vector<8x256xf32> to vector<8x128xf32>
    %cst_20 = arith.constant -4.000000e+00 : f32
    %cst_21 = arith.constant 1.500000e+01 : f32
    %30 = vector.broadcast %cst_20 : f32 to vector<8x128xf32>
    %31 = arith.maximumf %30, %29 : vector<8x128xf32>
    %32 = vector.broadcast %cst_21 : f32 to vector<8x128xf32>
    %33 = arith.minimumf %32, %31 : vector<8x128xf32>
    %34 = math.exp %33 : vector<8x128xf32>
    %c0_22 = arith.constant 0 : index
    %c16_23 = arith.constant 16 : index
    %35 = vector.load %arg1[%c0_22, %c16_23] : memref<8x128xf32, #tpu.memory_space<vmem>>, vector<8x8xf32>
    %36 = vector.extract_strided_slice %28 {offsets = [0, 0], sizes = [8, 8], strides = [1, 1]} : vector<8x128xf32> to vector<8x8xf32>
    %37 = vector.extract_strided_slice %34 {offsets = [0, 0], sizes = [8, 8], strides = [1, 1]} : vector<8x128xf32> to vector<8x8xf32>
    %38 = arith.mulf %37, %35 : vector<8x8xf32>
    %39 = arith.addf %36, %38 : vector<8x8xf32>
    %c0_24 = arith.constant 0 : index
    %c0_25 = arith.constant 0 : index
    %40 = vector.load %arg1[%c0_24, %c0_25] : memref<8x128xf32, #tpu.memory_space<vmem>>, vector<8x8xf32>
    %cst_26 = arith.constant dense<0.000000e+00> : vector<8x768xf32>
    %41 = tpu.matmul %40, %1, %cst_26 {dimension_numbers = #tpu.dot_dimension_numbers<[1], [0], [0], [1], [0, 0, 1, 1], [], []>} : vector<8x8xf32>, vector<8x768xf32>, vector<8x768xf32> -> vector<8x768xf32>
    %cst_27 = arith.constant dense<0.000000e+00> : vector<8x768xf32>
    %42 = tpu.matmul %39, %2, %cst_27 {dimension_numbers = #tpu.dot_dimension_numbers<[1], [0], [0], [1], [0, 0, 1, 1], [], []>} : vector<8x8xf32>, vector<8x768xf32>, vector<8x768xf32> -> vector<8x768xf32>
    %43 = arith.addf %41, %42 : vector<8x768xf32>
    %44 = vector.broadcast %5 : vector<1x768xf32> to vector<8x768xf32>
    %45 = arith.addf %43, %44 : vector<8x768xf32>
    %cst_28 = arith.constant 0.000000e+00 : f32
    %46 = vector.broadcast %cst_28 : f32 to vector<8x768xf32>
    %47 = arith.maximumf %45, %46 : vector<8x768xf32>
    %48 = arith.truncf %47 : vector<8x768xf32> to vector<8x768xbf16>
    %c1 = arith.constant 1 : index
    %c0_29 = arith.constant 0 : index
    %c0_30 = arith.constant 0 : index
    %49 = vector.load %arg2[%c1, %c0_29, %c0_30] : memref<2x768x768xbf16, #tpu.memory_space<vmem>>, vector<1x768x768xbf16>
    %50 = vector.shape_cast %49 : vector<1x768x768xbf16> to vector<768x768xbf16>
    %cst_31 = arith.constant dense<0.000000e+00> : vector<8x768xf32>
    %51 = tpu.matmul %48, %50, %cst_31 {dimension_numbers = #tpu.dot_dimension_numbers<[1], [0], [0], [1], [0, 0, 1, 1], [], []>} : vector<8x768xbf16>, vector<768x768xbf16>, vector<8x768xf32> -> vector<8x768xf32>
    %52 = vector.broadcast %6 : vector<1x768xf32> to vector<8x768xf32>
    %53 = arith.addf %51, %52 : vector<8x768xf32>
    %cst_32 = arith.constant 0.000000e+00 : f32
    %54 = vector.broadcast %cst_32 : f32 to vector<8x768xf32>
    %55 = arith.maximumf %53, %54 : vector<8x768xf32>
    %56 = arith.truncf %55 : vector<8x768xf32> to vector<8x768xbf16>
    %c0_33 = arith.constant 0 : index
    %c256 = arith.constant 256 : index
    %57 = vector.load %arg3[%c0_33, %c256] : memref<768x384xbf16, #tpu.memory_space<vmem>>, vector<768x128xbf16>
    %cst_34 = arith.constant dense<0.000000e+00> : vector<8x128xf32>
    %58 = tpu.matmul %56, %57, %cst_34 {dimension_numbers = #tpu.dot_dimension_numbers<[1], [0], [0], [1], [0, 0, 1, 1], [], []>} : vector<8x768xbf16>, vector<768x128xbf16>, vector<8x128xf32> -> vector<8x128xf32>
    %59 = vector.broadcast %8 : vector<1x128xf32> to vector<8x128xf32>
    %60 = arith.addf %58, %59 : vector<8x128xf32>
    %c0_35 = arith.constant 0 : index
    %c0_36 = arith.constant 0 : index
    %61 = vector.load %arg5[%c0_35, %c0_36] : memref<8x384xf32, #tpu.memory_space<vmem>>, vector<8x128xf32>
    tpu.vector_store %arg5[%c0_35, %c0_36], %28 {strides = array<i32>} : memref<8x384xf32, #tpu.memory_space<vmem>>, vector<8x128xf32>,
    %c0_37 = arith.constant 0 : index
    %c128 = arith.constant 128 : index
    %62 = vector.load %arg5[%c0_37, %c128] : memref<8x384xf32, #tpu.memory_space<vmem>>, vector<8x128xf32>
    tpu.vector_store %arg5[%c0_37, %c128], %34 {strides = array<i32>} : memref<8x384xf32, #tpu.memory_space<vmem>>, vector<8x128xf32>,
    %63 = math.tanh %60 : vector<8x128xf32>
    %cst_38 = arith.constant 1.000000e+00 : f32
    %64 = vector.broadcast %cst_38 : f32 to vector<8x128xf32>
    %65 = arith.mulf %64, %63 : vector<8x128xf32>
    %c0_39 = arith.constant 0 : index
    %c256_40 = arith.constant 256 : index
    %66 = vector.load %arg5[%c0_39, %c256_40] : memref<8x384xf32, #tpu.memory_space<vmem>>, vector<8x128xf32>
    tpu.vector_store %arg5[%c0_39, %c256_40], %65 {strides = array<i32>} : memref<8x384xf32, #tpu.memory_space<vmem>>, vector<8x128xf32>,
    return
  }
  func.func @transform_0(%arg0: i32) -> (i32, i32) {
    %c0_i32 = arith.constant 0 : i32
    %c0_i32_0 = arith.constant 0 : i32
    return %arg0, %c0_i32 : i32, i32
  }
  func.func @transform_1(%arg0: i32) -> (i32, i32, i32) {
    %c0_i32 = arith.constant 0 : i32
    %c0_i32_0 = arith.constant 0 : i32
    %c0_i32_1 = arith.constant 0 : i32
    %c0_i32_2 = arith.constant 0 : i32
    return %c0_i32, %c0_i32_0, %c0_i32_1 : i32, i32, i32
  }
  func.func @transform_2(%arg0: i32) -> (i32, i32) {
    %c0_i32 = arith.constant 0 : i32
    %c0_i32_0 = arith.constant 0 : i32
    %c0_i32_1 = arith.constant 0 : i32
    return %c0_i32, %c0_i32_0 : i32, i32
  }
  func.func @transform_3(%arg0: i32) -> (i32, i32) {
    %c0_i32 = arith.constant 0 : i32
    %c0_i32_0 = arith.constant 0 : i32
    %c0_i32_1 = arith.constant 0 : i32
    return %c0_i32, %c0_i32_0 : i32, i32
  }
  func.func @transform_4(%arg0: i32) -> (i32, i32) {
    %c0_i32 = arith.constant 0 : i32
    %c0_i32_0 = arith.constant 0 : i32
    return %arg0, %c0_i32 : i32, i32
  }
}

</mosaic_0001>

<llo_original>
// kernel: tpu_custom_call.1
$region0: #{tpu_custom_call.1}
  #allocation0 [shape = 'u32[]', space=smem, size = 0x4, offset = 0x4, fixed_abs, tag = 'smem constant byte address 0x4 - core index']
  #allocation1 [shape = 'u32[72,128]{1,0:T(1,128)}', space=vmem, size = 0x9000, scoped, tag = 'internal scratch']
  %s0 = inlined_call_operand.hbm [shape: f32[8,128], index: 0, kind: input, shape index: {}]
  %s1 = inlined_call_operand.hbm [shape: bf16[2,768,768], index: 1, kind: input, shape index: {}]
  %s2 = inlined_call_operand.hbm [shape: bf16[768,384], index: 2, kind: input, shape index: {}]
  %s3 = inlined_call_operand.hbm [shape: f32[80,768], index: 3, kind: input, shape index: {}]
  %s4 = inlined_call_operand.hbm [shape: f32[8,384], index: 4, kind: output, shape index: {}]
  %s5 = sld [smem:[#allocation0]]
  $region42: #{tpu_custom_call.1} parent=0
    _
  %s7 = ssub.s32 1, %s5
  %s8 = scalar_select 0, %s7, %s5
  $region1: #{tpu_custom_call.1} parent=0
    #allocation2 [shape = 'u8[4096]{0}', space=vmem, size = 0x1000, scoped, tag = 'input window, operand 0, single buffered']
    #allocation3 [shape = 's32[1]{0}', space=sflag, size = 0x4, scoped, tag = 'scoped memory for tpu_custom_call.1']
    #allocation4 [shape = 's32[1]{0}', space=sflag, size = 0x4, scoped, tag = 'scoped memory for tpu_custom_call.1']
    #allocation5 [shape = 'u8[2359296]{0}', space=vmem, size = 0x240000, scoped, tag = 'input window, operand 1, single buffered']
    #allocation6 [shape = 's32[1]{0}', space=sflag, size = 0x4, scoped, tag = 'scoped memory for tpu_custom_call.1']
    #allocation7 [shape = 'u8[589824]{0}', space=vmem, size = 0x90000, scoped, tag = 'input window, operand 2, single buffered']
    #allocation8 [shape = 'u8[245760]{0}', space=vmem, size = 0x3c000, scoped, tag = 'input window, operand 3, single buffered']
    #allocation9 [shape = 's32[1]{0}', space=sflag, size = 0x4, scoped, tag = 'scoped memory for tpu_custom_call.1']
    #allocation10 [shape = 'u8[12288]{0}', space=vmem, size = 0x3000, scoped, tag = 'output window, operand 0, single buffered']
    %9 = vsyncpa [#allocation3], 0
    %10 = vsyncpa [#allocation6], 0
    %11 = vsyncpa [#allocation9], 0
    %12 = vsyncpa [#allocation4], 0
    // Predicated region
    $region2: #{tpu_custom_call.1} parent=1 // pred_check
      _
    $region3: #{tpu_custom_call.1} parent=1 // pred_check_branch
      %14 = sbr.rel (0) target = $region5
    $region4: #{tpu_custom_call.1} parent=1 // pred_region
      %16 = vsyncadd [#allocation3], 0
      %s18 = sshll.u32 %s0, 4
      %s19 = int_to_ptr.hbm [resolvable:$true] %s18
      %s20 = sshll.u32 [#allocation2], 4
      %s21 = int_to_ptr.vmem [resolvable:$true] %s20
      %23 = dma.hbm_to_vmem [thread:$0]  %s19, 128, %s21, [#allocation3]
    $region5: #{tpu_custom_call.1} parent=1 // pred_fallthru
      _
    // Predicated region
    $region6: #{tpu_custom_call.1} parent=1 // pred_check
      _
    $region7: #{tpu_custom_call.1} parent=1 // pred_check_branch
      %25 = sbr.rel (0) target = $region9
    $region8: #{tpu_custom_call.1} parent=1 // pred_region
      %27 = vsyncadd [#allocation6], 0
      %s28 = sshll.u32 %s1, 4
      %s29 = int_to_ptr.hbm [resolvable:$true] %s28
      %s30 = sshll.u32 [#allocation5], 4
      %s31 = int_to_ptr.vmem [resolvable:$true] %s30
      %36 = dma.hbm_to_vmem [thread:$0]  %s29, 73728, %s31, [#allocation6], 384, 384, 24
    $region9: #{tpu_custom_call.1} parent=1 // pred_fallthru
      _
    // Predicated region
    $region10: #{tpu_custom_call.1} parent=1 // pred_check
      _
    $region11: #{tpu_custom_call.1} parent=1 // pred_check_branch
      %38 = sbr.rel (0) target = $region13
    $region12: #{tpu_custom_call.1} parent=1 // pred_region
      %40 = vsyncadd [#allocation6], 0
      %s41 = sshll.u32 %s2, 4
      %s42 = int_to_ptr.hbm [resolvable:$true] %s41
      %s43 = sshll.u32 [#allocation7], 4
      %s44 = int_to_ptr.vmem [resolvable:$true] %s43
      %49 = dma.hbm_to_vmem [thread:$0]  %s42, 18432, %s44, [#allocation6], 192, 192, 12
    $region13: #{tpu_custom_call.1} parent=1 // pred_fallthru
      _
    // Predicated region
    $region14: #{tpu_custom_call.1} parent=1 // pred_check
      _
    $region15: #{tpu_custom_call.1} parent=1 // pred_check_branch
      %51 = sbr.rel (0) target = $region17
    $region16: #{tpu_custom_call.1} parent=1 // pred_region
      %53 = vsyncadd [#allocation9], 0
      %s54 = sshll.u32 %s3, 4
      %s55 = int_to_ptr.hbm [resolvable:$true] %s54
      %s56 = sshll.u32 [#allocation8], 4
      %s57 = int_to_ptr.vmem [resolvable:$true] %s56
      %62 = dma.hbm_to_vmem [thread:$0]  %s55, 7680, %s57, [#allocation9], 768, 768, 48
    $region17: #{tpu_custom_call.1} parent=1 // pred_fallthru
      _
    // Predicated region
    $region18: #{tpu_custom_call.1} parent=1 // pred_check
      _
    $region19: #{tpu_custom_call.1} parent=1 // pred_check_branch
      %64 = sbr.rel (0) target = $region21
    $region20: #{tpu_custom_call.1} parent=1 // pred_region
      %66 = dma.done [#allocation3], 128
    $region21: #{tpu_custom_call.1} parent=1 // pred_fallthru
      _
    // Predicated region
    $region22: #{tpu_custom_call.1} parent=1 // pred_check
      _
    $region23: #{tpu_custom_call.1} parent=1 // pred_check_branch
      %68 = sbr.rel (0) target = $region25
    $region24: #{tpu_custom_call.1} parent=1 // pred_region
      %70 = dma.done [#allocation6], 73728
    $region25: #{tpu_custom_call.1} parent=1 // pred_fallthru
      _
    // Predicated region
    $region26: #{tpu_custom_call.1} parent=1 // pred_check
      _
    $region27: #{tpu_custom_call.1} parent=1 // pred_check_branch
      %72 = sbr.rel (0) target = $region29
    $region28: #{tpu_custom_call.1} parent=1 // pred_region
      %74 = dma.done [#allocation6], 18432
    $region29: #{tpu_custom_call.1} parent=1 // pred_fallthru
      _
    // Predicated region
    $region30: #{tpu_custom_call.1} parent=1 // pred_check
      _
    $region31: #{tpu_custom_call.1} parent=1 // pred_check_branch
      %76 = sbr.rel (0) target = $region33
    $region32: #{tpu_custom_call.1} parent=1 // pred_region
      %78 = dma.done [#allocation9], 7680
    $region33: #{tpu_custom_call.1} parent=1 // pred_fallthru
      _
    %v79 = vld [vmem:[#allocation8] sm:$0xff]
    %v80 = vld [vmem:[#allocation8 + $0x8] sm:$0xff]
    %v81 = vld [vmem:[#allocation8 + $0x10] sm:$0xff]
    %v82 = vld [vmem:[#allocation8 + $0x18] sm:$0xff]
    %v83 = vld [vmem:[#allocation8 + $0x20] sm:$0xff]
    %v84 = vld [vmem:[#allocation8 + $0x28] sm:$0xff]
    %v85 = vld [vmem:[#allocation8 + $0x30] sm:$0xff]
    %v86 = vld [vmem:[#allocation8 + $0x38] sm:$0xff]
    %v87 = vld [vmem:[#allocation8 + $0x40] sm:$0xff]
    %v88 = vld [vmem:[#allocation8 + $0x48] sm:$0xff]
    %v89 = vld [vmem:[#allocation8 + $0x50] sm:$0xff]
    %v90 = vld [vmem:[#allocation8 + $0x58] sm:$0xff]
    %v91 = vld [vmem:[#allocation8 + $0x60] sm:$0xff]
    %v92 = vld [vmem:[#allocation8 + $0x68] sm:$0xff]
    %v93 = vld [vmem:[#allocation8 + $0x70] sm:$0xff]
    %v94 = vld [vmem:[#allocation8 + $0x78] sm:$0xff]
    %v95 = vld [vmem:[#allocation8 + $0x80] sm:$0xff]
    %v96 = vld [vmem:[#allocation8 + $0x88] sm:$0xff]
    %v97 = vld [vmem:[#allocation8 + $0x90] sm:$0xff]
    %v98 = vld [vmem:[#allocation8 + $0x98] sm:$0xff]
    %v99 = vld [vmem:[#allocation8 + $0xa0] sm:$0xff]
    %v100 = vld [vmem:[#allocation8 + $0xa8] sm:$0xff]
    %v101 = vld [vmem:[#allocation8 + $0xb0] sm:$0xff]
    %v102 = vld [vmem:[#allocation8 + $0xb8] sm:$0xff]
    %s103 = scalar_lea.vmem [#allocation8], 192
    %v104 = vld [vmem:[%s103] ss:$8 sm:$0xf]
    %v105 = vld [vmem:[%s103] ss:$8 sm:$0x30]
    %v106 = vor.u32 %v104, %v105
    %s107 = scalar_lea.vmem [#allocation8], 240
    %v108 = vld [vmem:[%s107] ss:$8 sm:$0xf]
    %v109 = vld [vmem:[%s107] ss:$8 sm:$0x30]
    %v110 = vor.u32 %v108, %v109
    %s111 = scalar_lea.vmem [#allocation8], 288
    %v112 = vld [vmem:[%s111] ss:$8 sm:$0xf]
    %v113 = vld [vmem:[%s111] ss:$8 sm:$0x30]
    %v114 = vor.u32 %v112, %v113
    %s115 = scalar_lea.vmem [#allocation8], 336
    %v116 = vld [vmem:[%s115] ss:$8 sm:$0xf]
    %v117 = vld [vmem:[%s115] ss:$8 sm:$0x30]
    %v118 = vor.u32 %v116, %v117
    %s119 = scalar_lea.vmem [#allocation8], 384
    %v120 = vld [vmem:[%s119] ss:$8 sm:$0x3]
    %v121 = vld [vmem:[#allocation8 + $0x1b0] ss:$0 sm:$0xff]
    %v122 = vld [vmem:[#allocation2] sm:$0xff]
    %v124 = vperm.slane %v106, 0
    %v125 = vperm.slane %v106, 1
    %v126 = vperm.slane %v106, 2
    %v127 = vperm.slane %v106, 3
    %v128 = vperm.slane %v106, 4
    %v129 = vperm.slane %v106, 5
    %vm136 = vcmask 130048
    %v138 = vsel %vm136, %v122, 0
    %140 = vmatpush.msra.mxu0 0.0
    %141 = vmatpush.msra.mxu0 0.0
    %142 = vmatpush.msra.mxu0 0.0
    %143 = vmatpush.msra.mxu0 0.0
    %144 = vmatpush.msra.mxu0 0.0
    %145 = vmatpush.msra.mxu0 0.0
    %146 = vmatpush.msra.mxu0 0.0
    %147 = vmatpush.msra.mxu0 0.0
    %148 = vmatpush.msra.mxu0 0.0
    %149 = vmatpush.msra.mxu0 0.0
    %150 = vmatpush.msra.mxu0 0.0
    %151 = vmatpush.msra.mxu0 0.0
    %152 = vmatpush.msra.mxu0 0.0
    %153 = vmatpush.msra.mxu0 0.0
    %154 = vmatpush.msra.mxu0 %v85
    %155 = vmatpush.msra.mxu0 %v79
    %156 = vmatmul.f32.gmra.mxu0 %v138
    %v157 = vpop.f32.mrf.mxu0
    %v158 = vadd.f32 %v124, %v157
    %159 = vdwg.mxu0
    %160 = vmatpush.msra.mxu0 0.0
    %161 = vmatpush.msra.mxu0 0.0
    %162 = vmatpush.msra.mxu0 0.0
    %163 = vmatpush.msra.mxu0 0.0
    %164 = vmatpush.msra.mxu0 0.0
    %165 = vmatpush.msra.mxu0 0.0
    %166 = vmatpush.msra.mxu0 0.0
    %167 = vmatpush.msra.mxu0 0.0
    %168 = vmatpush.msra.mxu0 0.0
    %169 = vmatpush.msra.mxu0 0.0
    %170 = vmatpush.msra.mxu0 0.0
    %171 = vmatpush.msra.mxu0 0.0
    %172 = vmatpush.msra.mxu0 0.0
    %173 = vmatpush.msra.mxu0 0.0
    %174 = vmatpush.msra.mxu0 %v86
    %175 = vmatpush.msra.mxu0 %v80
    %176 = vmatmul.f32.gmra.mxu0 %v138
    %v177 = vpop.f32.mrf.mxu0
    %v178 = vadd.f32 %v125, %v177
    %179 = vdwg.mxu0
    %180 = vmatpush.msra.mxu0 0.0
    %181 = vmatpush.msra.mxu0 0.0
    %182 = vmatpush.msra.mxu0 0.0
    %183 = vmatpush.msra.mxu0 0.0
    %184 = vmatpush.msra.mxu0 0.0
    %185 = vmatpush.msra.mxu0 0.0
    %186 = vmatpush.msra.mxu0 0.0
    %187 = vmatpush.msra.mxu0 0.0
    %188 = vmatpush.msra.mxu0 0.0
    %189 = vmatpush.msra.mxu0 0.0
    %190 = vmatpush.msra.mxu0 0.0
    %191 = vmatpush.msra.mxu0 0.0
    %192 = vmatpush.msra.mxu0 0.0
    %193 = vmatpush.msra.mxu0 0.0
    %194 = vmatpush.msra.mxu0 %v87
    %195 = vmatpush.msra.mxu0 %v81
    %196 = vmatmul.f32.gmra.mxu0 %v138
    %v197 = vpop.f32.mrf.mxu0
    %v198 = vadd.f32 %v126, %v197
    %199 = vdwg.mxu0
    %200 = vmatpush.msra.mxu0 0.0
    %201 = vmatpush.msra.mxu0 0.0
    %202 = vmatpush.msra.mxu0 0.0
    %203 = vmatpush.msra.mxu0 0.0
    %204 = vmatpush.msra.mxu0 0.0
    %205 = vmatpush.msra.mxu0 0.0
    %206 = vmatpush.msra.mxu0 0.0
    %207 = vmatpush.msra.mxu0 0.0
    %208 = vmatpush.msra.mxu0 0.0
    %209 = vmatpush.msra.mxu0 0.0
    %210 = vmatpush.msra.mxu0 0.0
    %211 = vmatpush.msra.mxu0 0.0
    %212 = vmatpush.msra.mxu0 0.0
    %213 = vmatpush.msra.mxu0 0.0
    %214 = vmatpush.msra.mxu0 %v88
    %215 = vmatpush.msra.mxu0 %v82
    %216 = vmatmul.f32.gmra.mxu0 %v138
    %v217 = vpop.f32.mrf.mxu0
    %v218 = vadd.f32 %v127, %v217
    %219 = vdwg.mxu0
    %220 = vmatpush.msra.mxu0 0.0
    %221 = vmatpush.msra.mxu0 0.0
    %222 = vmatpush.msra.mxu0 0.0
    %223 = vmatpush.msra.mxu0 0.0
    %224 = vmatpush.msra.mxu0 0.0
    %225 = vmatpush.msra.mxu0 0.0
    %226 = vmatpush.msra.mxu0 0.0
    %227 = vmatpush.msra.mxu0 0.0
    %228 = vmatpush.msra.mxu0 0.0
    %229 = vmatpush.msra.mxu0 0.0
    %230 = vmatpush.msra.mxu0 0.0
    %231 = vmatpush.msra.mxu0 0.0
    %232 = vmatpush.msra.mxu0 0.0
    %233 = vmatpush.msra.mxu0 0.0
    %234 = vmatpush.msra.mxu0 %v89
    %235 = vmatpush.msra.mxu0 %v83
    %236 = vmatmul.f32.gmra.mxu0 %v138
    %v237 = vpop.f32.mrf.mxu0
    %v238 = vadd.f32 %v128, %v237
    %239 = vdwg.mxu0
    %240 = vmatpush.msra.mxu0 0.0
    %241 = vmatpush.msra.mxu0 0.0
    %242 = vmatpush.msra.mxu0 0.0
    %243 = vmatpush.msra.mxu0 0.0
    %244 = vmatpush.msra.mxu0 0.0
    %245 = vmatpush.msra.mxu0 0.0
    %246 = vmatpush.msra.mxu0 0.0
    %247 = vmatpush.msra.mxu0 0.0
    %248 = vmatpush.msra.mxu0 0.0
    %249 = vmatpush.msra.mxu0 0.0
    %250 = vmatpush.msra.mxu0 0.0
    %251 = vmatpush.msra.mxu0 0.0
    %252 = vmatpush.msra.mxu0 0.0
    %253 = vmatpush.msra.mxu0 0.0
    %254 = vmatpush.msra.mxu0 %v90
    %255 = vmatpush.msra.mxu0 %v84
    %256 = vmatmul.f32.gmra.mxu0 %v138
    %v257 = vpop.f32.mrf.mxu0
    %v258 = vadd.f32 %v129, %v257
    %259 = vdwg.mxu0
    %v260 = vmax.f32 %v158, 0.0
    %v261 = vmax.f32 %v178, 0.0
    %v262 = vmax.f32 %v198, 0.0
    %v263 = vmax.f32 %v218, 0.0
    %v264 = vmax.f32 %v238, 0.0
    %v265 = vmax.f32 %v258, 0.0
    %v266 = vpack.c.bf16 %v260, %v260
    %v267 = vpack.c.bf16 %v261, %v261
    %v268 = vpack.c.bf16 %v262, %v262
    %v269 = vpack.c.bf16 %v263, %v263
    %v270 = vpack.c.bf16 %v264, %v264
    %v271 = vpack.c.bf16 %v265, %v265
    %v272 = vld [vmem:[#allocation5] sm:$0xff]
    %v273 = vld [vmem:[#allocation5 + $0x8] sm:$0xff]
    %v274 = vld [vmem:[#allocation5 + $0x10] sm:$0xff]
    %v275 = vld [vmem:[#allocation5 + $0x18] sm:$0xff]
    %v276 = vld [vmem:[#allocation5 + $0x20] sm:$0xff]
    %v277 = vld [vmem:[#allocation5 + $0x28] sm:$0xff]
    %v278 = vld [vmem:[#allocation5 + $0x30] sm:$0xff]
    %v279 = vld [vmem:[#allocation5 + $0x38] sm:$0xff]
    %v280 = vld [vmem:[#allocation5 + $0x40] sm:$0xff]
    %v281 = vld [vmem:[#allocation5 + $0x48] sm:$0xff]
    %v282 = vld [vmem:[#allocation5 + $0x50] sm:$0xff]
    %v283 = vld [vmem:[#allocation5 + $0x58] sm:$0xff]
    %v284 = vld [vmem:[#allocation5 + $0x60] sm:$0xff]
    %v285 = vld [vmem:[#allocation5 + $0x68] sm:$0xff]
    %v286 = vld [vmem:[#allocation5 + $0x70] sm:$0xff]
    %v287 = vld [vmem:[#allocation5 + $0x78] sm:$0xff]
    %v288 = vld [vmem:[#allocation5 + $0x80] sm:$0xff]
    %v289 = vld [vmem:[#allocation5 + $0x88] sm:$0xff]
    %v290 = vld [vmem:[#allocation5 + $0x90] sm:$0xff]
    %v291 = vld [vmem:[#allocation5 + $0x98] sm:$0xff]
    %v292 = vld [vmem:[#allocation5 + $0xa0] sm:$0xff]
    %v293 = vld [vmem:[#allocation5 + $0xa8] sm:$0xff]
    %v294 = vld [vmem:[#allocation5 + $0xb0] sm:$0xff]
    %v295 = vld [vmem:[#allocation5 + $0xb8] sm:$0xff]
    %v296 = vld [vmem:[#allocation5 + $0xc0] sm:$0xff]
    %v297 = vld [vmem:[#allocation5 + $0xc8] sm:$0xff]
    %v298 = vld [vmem:[#allocation5 + $0xd0] sm:$0xff]
    %v299 = vld [vmem:[#allocation5 + $0xd8] sm:$0xff]
    %v300 = vld [vmem:[#allocation5 + $0xe0] sm:$0xff]
    %v301 = vld [vmem:[#allocation5 + $0xe8] sm:$0xff]
    %v302 = vld [vmem:[#allocation5 + $0xf0] sm:$0xff]
    %v303 = vld [vmem:[#allocation5 + $0xf8] sm:$0xff]
    %v304 = vld [vmem:[#allocation5 + $0x100] sm:$0xff]
    %v305 = vld [vmem:[#allocation5 + $0x108] sm:$0xff]
    %v306 = vld [vmem:[#allocation5 + $0x110] sm:$0xff]
    %v307 = vld [vmem:[#allocation5 + $0x118] sm:$0xff]
    %v308 = vld [vmem:[#allocation5 + $0x120] sm:$0xff]
    %v309 = vld [vmem:[#allocation5 + $0x128] sm:$0xff]
    %v310 = vld [vmem:[#allocation5 + $0x130] sm:$0xff]
    %v311 = vld [vmem:[#allocation5 + $0x138] sm:$0xff]
    %v312 = vld [vmem:[#allocation5 + $0x140] sm:$0xff]
    %v313 = vld [vmem:[#allocation5 + $0x148] sm:$0xff]
    %v314 = vld [vmem:[#allocation5 + $0x150] sm:$0xff]
    %v315 = vld [vmem:[#allocation5 + $0x158] sm:$0xff]
    %v316 = vld [vmem:[#allocation5 + $0x160] sm:$0xff]
    %v317 = vld [vmem:[#allocation5 + $0x168] sm:$0xff]
    %v318 = vld [vmem:[#allocation5 + $0x170] sm:$0xff]
    %v319 = vld [vmem:[#allocation5 + $0x178] sm:$0xff]
    %v320 = vld [vmem:[#allocation5 + $0x180] sm:$0xff]
    %v321 = vld [vmem:[#allocation5 + $0x188] sm:$0xff]
    %v322 = vld [vmem:[#allocation5 + $0x190] sm:$0xff]
    %v323 = vld [vmem:[#allocation5 + $0x198] sm:$0xff]
    %v324 = vld [vmem:[#allocation5 + $0x1a0] sm:$0xff]
    %v325 = vld [vmem:[#allocation5 + $0x1a8] sm:$0xff]
    %v326 = vld [vmem:[#allocation5 + $0x1b0] sm:$0xff]
    %v327 = vld [vmem:[#allocation5 + $0x1b8] sm:$0xff]
    %v328 = vld [vmem:[#allocation5 + $0x1c0] sm:$0xff]
    %v329 = vld [vmem:[#allocation5 + $0x1c8] sm:$0xff]
    %v330 = vld [vmem:[#allocation5 + $0x1d0] sm:$0xff]
    %v331 = vld [vmem:[#allocation5 + $0x1d8] sm:$0xff]
    %v332 = vld [vmem:[#allocation5 + $0x1e0] sm:$0xff]
    %v333 = vld [vmem:[#allocation5 + $0x1e8] sm:$0xff]
    %v334 = vld [vmem:[#allocation5 + $0x1f0] sm:$0xff]
    %v335 = vld [vmem:[#allocation5 + $0x1f8] sm:$0xff]
    %v336 = vld [vmem:[#allocation5 + $0x200] sm:$0xff]
    %v337 = vld [vmem:[#allocation5 + $0x208] sm:$0xff]
    %v338 = vld [vmem:[#allocation5 + $0x210] sm:$0xff]
    %v339 = vld [vmem:[#allocation5 + $0x218] sm:$0xff]
    %v340 = vld [vmem:[#allocation5 + $0x220] sm:$0xff]
    %v341 = vld [vmem:[#allocation5 + $0x228] sm:$0xff]
    %v342 = vld [vmem:[#allocation5 + $0x230] sm:$0xff]
    %v343 = vld [vmem:[#allocation5 + $0x238] sm:$0xff]
    %v344 = vld [vmem:[#allocation5 + $0x240] sm:$0xff]
    %v345 = vld [vmem:[#allocation5 + $0x248] sm:$0xff]
    %v346 = vld [vmem:[#allocation5 + $0x250] sm:$0xff]
    %v347 = vld [vmem:[#allocation5 + $0x258] sm:$0xff]
    %v348 = vld [vmem:[#allocation5 + $0x260] sm:$0xff]
    %v349 = vld [vmem:[#allocation5 + $0x268] sm:$0xff]
    %v350 = vld [vmem:[#allocation5 + $0x270] sm:$0xff]
    %v351 = vld [vmem:[#allocation5 + $0x278] sm:$0xff]
    %v352 = vld [vmem:[#allocation5 + $0x280] sm:$0xff]
    %v353 = vld [vmem:[#allocation5 + $0x288] sm:$0xff]
    %v354 = vld [vmem:[#allocation5 + $0x290] sm:$0xff]
    %v355 = vld [vmem:[#allocation5 + $0x298] sm:$0xff]
    %v356 = vld [vmem:[#allocation5 + $0x2a0] sm:$0xff]
    %v357 = vld [vmem:[#allocation5 + $0x2a8] sm:$0xff]
    %v358 = vld [vmem:[#allocation5 + $0x2b0] sm:$0xff]
    %v359 = vld [vmem:[#allocation5 + $0x2b8] sm:$0xff]
    %v360 = vld [vmem:[#allocation5 + $0x2c0] sm:$0xff]
    %v361 = vld [vmem:[#allocation5 + $0x2c8] sm:$0xff]
    %v362 = vld [vmem:[#allocation5 + $0x2d0] sm:$0xff]
    %v363 = vld [vmem:[#allocation5 + $0x2d8] sm:$0xff]
    %v364 = vld [vmem:[#allocation5 + $0x2e0] sm:$0xff]
    %v365 = vld [vmem:[#allocation5 + $0x2e8] sm:$0xff]
    %v366 = vld [vmem:[#allocation5 + $0x2f0] sm:$0xff]
    %v367 = vld [vmem:[#allocation5 + $0x2f8] sm:$0xff]
    %v368 = vld [vmem:[#allocation5 + $0x300] sm:$0xff]
    %v369 = vld [vmem:[#allocation5 + $0x308] sm:$0xff]
    %v370 = vld [vmem:[#allocation5 + $0x310] sm:$0xff]
    %v371 = vld [vmem:[#allocation5 + $0x318] sm:$0xff]
    %v372 = vld [vmem:[#allocation5 + $0x320] sm:$0xff]
    %v373 = vld [vmem:[#allocation5 + $0x328] sm:$0xff]
    %v374 = vld [vmem:[#allocation5 + $0x330] sm:$0xff]
    %v375 = vld [vmem:[#allocation5 + $0x338] sm:$0xff]
    %v376 = vld [vmem:[#allocation5 + $0x340] sm:$0xff]
    %v377 = vld [vmem:[#allocation5 + $0x348] sm:$0xff]
    %v378 = vld [vmem:[#allocation5 + $0x350] sm:$0xff]
    %v379 = vld [vmem:[#allocation5 + $0x358] sm:$0xff]
    %v380 = vld [vmem:[#allocation5 + $0x360] sm:$0xff]
    %v381 = vld [vmem:[#allocation5 + $0x368] sm:$0xff]
    %v382 = vld [vmem:[#allocation5 + $0x370] sm:$0xff]
    %v383 = vld [vmem:[#allocation5 + $0x378] sm:$0xff]
    %v384 = vld [vmem:[#allocation5 + $0x380] sm:$0xff]
    %v385 = vld [vmem:[#allocation5 + $0x388] sm:$0xff]
    %v386 = vld [vmem:[#allocation5 + $0x390] sm:$0xff]
    %v387 = vld [vmem:[#allocation5 + $0x398] sm:$0xff]
    %v388 = vld [vmem:[#allocation5 + $0x3a0] sm:$0xff]
    %v389 = vld [vmem:[#allocation5 + $0x3a8] sm:$0xff]
    %v390 = vld [vmem:[#allocation5 + $0x3b0] sm:$0xff]
    %v391 = vld [vmem:[#allocation5 + $0x3b8] sm:$0xff]
    %v392 = vld [vmem:[#allocation5 + $0x3c0] sm:$0xff]
    %v393 = vld [vmem:[#allocation5 + $0x3c8] sm:$0xff]
    %v394 = vld [vmem:[#allocation5 + $0x3d0] sm:$0xff]
    %v395 = vld [vmem:[#allocation5 + $0x3d8] sm:$0xff]
    %v396 = vld [vmem:[#allocation5 + $0x3e0] sm:$0xff]
    %v397 = vld [vmem:[#allocation5 + $0x3e8] sm:$0xff]
    %v398 = vld [vmem:[#allocation5 + $0x3f0] sm:$0xff]
    %v399 = vld [vmem:[#allocation5 + $0x3f8] sm:$0xff]
    %v400 = vld [vmem:[#allocation5 + $0x400] sm:$0xff]
    %v401 = vld [vmem:[#allocation5 + $0x408] sm:$0xff]
    %v402 = vld [vmem:[#allocation5 + $0x410] sm:$0xff]
    %v403 = vld [vmem:[#allocation5 + $0x418] sm:$0xff]
    %v404 = vld [vmem:[#allocation5 + $0x420] sm:$0xff]
    %v405 = vld [vmem:[#allocation5 + $0x428] sm:$0xff]
    %v406 = vld [vmem:[#allocation5 + $0x430] sm:$0xff]
    %v407 = vld [vmem:[#allocation5 + $0x438] sm:$0xff]
    %v408 = vld [vmem:[#allocation5 + $0x440] sm:$0xff]
    %v409 = vld [vmem:[#allocation5 + $0x448] sm:$0xff]
    %v410 = vld [vmem:[#allocation5 + $0x450] sm:$0xff]
    %v411 = vld [vmem:[#allocation5 + $0x458] sm:$0xff]
    %v412 = vld [vmem:[#allocation5 + $0x460] sm:$0xff]
    %v413 = vld [vmem:[#allocation5 + $0x468] sm:$0xff]
    %v414 = vld [vmem:[#allocation5 + $0x470] sm:$0xff]
    %v415 = vld [vmem:[#allocation5 + $0x478] sm:$0xff]
    %v416 = vld [vmem:[#allocation5 + $0x480] sm:$0xff]
    %v417 = vld [vmem:[#allocation5 + $0x488] sm:$0xff]
    %v418 = vld [vmem:[#allocation5 + $0x490] sm:$0xff]
    %v419 = vld [vmem:[#allocation5 + $0x498] sm:$0xff]
    %v420 = vld [vmem:[#allocation5 + $0x4a0] sm:$0xff]
    %v421 = vld [vmem:[#allocation5 + $0x4a8] sm:$0xff]
    %v422 = vld [vmem:[#allocation5 + $0x4b0] sm:$0xff]
    %v423 = vld [vmem:[#allocation5 + $0x4b8] sm:$0xff]
    %v424 = vld [vmem:[#allocation5 + $0x4c0] sm:$0xff]
    %v425 = vld [vmem:[#allocation5 + $0x4c8] sm:$0xff]
    %v426 = vld [vmem:[#allocation5 + $0x4d0] sm:$0xff]
    %v427 = vld [vmem:[#allocation5 + $0x4d8] sm:$0xff]
    %v428 = vld [vmem:[#allocation5 + $0x4e0] sm:$0xff]
    %v429 = vld [vmem:[#allocation5 + $0x4e8] sm:$0xff]
    %v430 = vld [vmem:[#allocation5 + $0x4f0] sm:$0xff]
    %v431 = vld [vmem:[#allocation5 + $0x4f8] sm:$0xff]
    %v432 = vld [vmem:[#allocation5 + $0x500] sm:$0xff]
    %v433 = vld [vmem:[#allocation5 + $0x508] sm:$0xff]
    %v434 = vld [vmem:[#allocation5 + $0x510] sm:$0xff]
    %v435 = vld [vmem:[#allocation5 + $0x518] sm:$0xff]
    %v436 = vld [vmem:[#allocation5 + $0x520] sm:$0xff]
    %v437 = vld [vmem:[#allocation5 + $0x528] sm:$0xff]
    %v438 = vld [vmem:[#allocation5 + $0x530] sm:$0xff]
    %v439 = vld [vmem:[#allocation5 + $0x538] sm:$0xff]
    %v440 = vld [vmem:[#allocation5 + $0x540] sm:$0xff]
    %v441 = vld [vmem:[#allocation5 + $0x548] sm:$0xff]
    %v442 = vld [vmem:[#allocation5 + $0x550] sm:$0xff]
    %v443 = vld [vmem:[#allocation5 + $0x558] sm:$0xff]
    %v444 = vld [vmem:[#allocation5 + $0x560] sm:$0xff]
    %v445 = vld [vmem:[#allocation5 + $0x568] sm:$0xff]
    %v446 = vld [vmem:[#allocation5 + $0x570] sm:$0xff]
    %v447 = vld [vmem:[#allocation5 + $0x578] sm:$0xff]
    %v448 = vld [vmem:[#allocation5 + $0x580] sm:$0xff]
    %v449 = vld [vmem:[#allocation5 + $0x588] sm:$0xff]
    %v450 = vld [vmem:[#allocation5 + $0x590] sm:$0xff]
    %v451 = vld [vmem:[#allocation5 + $0x598] sm:$0xff]
    %v452 = vld [vmem:[#allocation5 + $0x5a0] sm:$0xff]
    %v453 = vld [vmem:[#allocation5 + $0x5a8] sm:$0xff]
    %v454 = vld [vmem:[#allocation5 + $0x5b0] sm:$0xff]
    %v455 = vld [vmem:[#allocation5 + $0x5b8] sm:$0xff]
    %v456 = vld [vmem:[#allocation5 + $0x5c0] sm:$0xff]
    %v457 = vld [vmem:[#allocation5 + $0x5c8] sm:$0xff]
    %v458 = vld [vmem:[#allocation5 + $0x5d0] sm:$0xff]
    %v459 = vld [vmem:[#allocation5 + $0x5d8] sm:$0xff]
    %v460 = vld [vmem:[#allocation5 + $0x5e0] sm:$0xff]
    %v461 = vld [vmem:[#allocation5 + $0x5e8] sm:$0xff]
    %v462 = vld [vmem:[#allocation5 + $0x5f0] sm:$0xff]
    %v463 = vld [vmem:[#allocation5 + $0x5f8] sm:$0xff]
    %v464 = vld [vmem:[#allocation5 + $0x600] sm:$0xff]
    %v465 = vld [vmem:[#allocation5 + $0x608] sm:$0xff]
    %v466 = vld [vmem:[#allocation5 + $0x610] sm:$0xff]
    %v467 = vld [vmem:[#allocation5 + $0x618] sm:$0xff]
    %v468 = vld [vmem:[#allocation5 + $0x620] sm:$0xff]
    %v469 = vld [vmem:[#allocation5 + $0x628] sm:$0xff]
    %v470 = vld [vmem:[#allocation5 + $0x630] sm:$0xff]
    %v471 = vld [vmem:[#allocation5 + $0x638] sm:$0xff]
    %v472 = vld [vmem:[#allocation5 + $0x640] sm:$0xff]
    %v473 = vld [vmem:[#allocation5 + $0x648] sm:$0xff]
    %v474 = vld [vmem:[#allocation5 + $0x650] sm:$0xff]
    %v475 = vld [vmem:[#allocation5 + $0x658] sm:$0xff]
    %v476 = vld [vmem:[#allocation5 + $0x660] sm:$0xff]
    %v477 = vld [vmem:[#allocation5 + $0x668] sm:$0xff]
    %v478 = vld [vmem:[#allocation5 + $0x670] sm:$0xff]
    %v479 = vld [vmem:[#allocation5 + $0x678] sm:$0xff]
    %v480 = vld [vmem:[#allocation5 + $0x680] sm:$0xff]
    %v481 = vld [vmem:[#allocation5 + $0x688] sm:$0xff]
    %v482 = vld [vmem:[#allocation5 + $0x690] sm:$0xff]
    %v483 = vld [vmem:[#allocation5 + $0x698] sm:$0xff]
    %v484 = vld [vmem:[#allocation5 + $0x6a0] sm:$0xff]
    %v485 = vld [vmem:[#allocation5 + $0x6a8] sm:$0xff]
    %v486 = vld [vmem:[#allocation5 + $0x6b0] sm:$0xff]
    %v487 = vld [vmem:[#allocation5 + $0x6b8] sm:$0xff]
    %v488 = vld [vmem:[#allocation5 + $0x6c0] sm:$0xff]
    %v489 = vld [vmem:[#allocation5 + $0x6c8] sm:$0xff]
    %v490 = vld [vmem:[#allocation5 + $0x6d0] sm:$0xff]
    %v491 = vld [vmem:[#allocation5 + $0x6d8] sm:$0xff]
    %v492 = vld [vmem:[#allocation5 + $0x6e0] sm:$0xff]
    %v493 = vld [vmem:[#allocation5 + $0x6e8] sm:$0xff]
    %v494 = vld [vmem:[#allocation5 + $0x6f0] sm:$0xff]
    %v495 = vld [vmem:[#allocation5 + $0x6f8] sm:$0xff]
    %v496 = vld [vmem:[#allocation5 + $0x700] sm:$0xff]
    %v497 = vld [vmem:[#allocation5 + $0x708] sm:$0xff]
    %v498 = vld [vmem:[#allocation5 + $0x710] sm:$0xff]
    %v499 = vld [vmem:[#allocation5 + $0x718] sm:$0xff]
    %v500 = vld [vmem:[#allocation5 + $0x720] sm:$0xff]
    %v501 = vld [vmem:[#allocation5 + $0x728] sm:$0xff]
    %v502 = vld [vmem:[#allocation5 + $0x730] sm:$0xff]
    %v503 = vld [vmem:[#allocation5 + $0x738] sm:$0xff]
    %v504 = vld [vmem:[#allocation5 + $0x740] sm:$0xff]
    %v505 = vld [vmem:[#allocation5 + $0x748] sm:$0xff]
    %v506 = vld [vmem:[#allocation5 + $0x750] sm:$0xff]
    %v507 = vld [vmem:[#allocation5 + $0x758] sm:$0xff]
    %v508 = vld [vmem:[#allocation5 + $0x760] sm:$0xff]
    %v509 = vld [vmem:[#allocation5 + $0x768] sm:$0xff]
    %v510 = vld [vmem:[#allocation5 + $0x770] sm:$0xff]
    %v511 = vld [vmem:[#allocation5 + $0x778] sm:$0xff]
    %v512 = vld [vmem:[#allocation5 + $0x780] sm:$0xff]
    %v513 = vld [vmem:[#allocation5 + $0x788] sm:$0xff]
    %v514 = vld [vmem:[#allocation5 + $0x790] sm:$0xff]
    %v515 = vld [vmem:[#allocation5 + $0x798] sm:$0xff]
    %v516 = vld [vmem:[#allocation5 + $0x7a0] sm:$0xff]
    %v517 = vld [vmem:[#allocation5 + $0x7a8] sm:$0xff]
    %v518 = vld [vmem:[#allocation5 + $0x7b0] sm:$0xff]
    %v519 = vld [vmem:[#allocation5 + $0x7b8] sm:$0xff]
    %v520 = vld [vmem:[#allocation5 + $0x7c0] sm:$0xff]
    %v521 = vld [vmem:[#allocation5 + $0x7c8] sm:$0xff]
    %v522 = vld [vmem:[#allocation5 + $0x7d0] sm:$0xff]
    %v523 = vld [vmem:[#allocation5 + $0x7d8] sm:$0xff]
    %v524 = vld [vmem:[#allocation5 + $0x7e0] sm:$0xff]
    %v525 = vld [vmem:[#allocation5 + $0x7e8] sm:$0xff]
    %v526 = vld [vmem:[#allocation5 + $0x7f0] sm:$0xff]
    %v527 = vld [vmem:[#allocation5 + $0x7f8] sm:$0xff]
    %v528 = vld [vmem:[#allocation5 + $0x800] sm:$0xff]
    %v529 = vld [vmem:[#allocation5 + $0x808] sm:$0xff]
    %v530 = vld [vmem:[#allocation5 + $0x810] sm:$0xff]
    %v531 = vld [vmem:[#allocation5 + $0x818] sm:$0xff]
    %v532 = vld [vmem:[#allocation5 + $0x820] sm:$0xff]
    %v533 = vld [vmem:[#allocation5 + $0x828] sm:$0xff]
    %v534 = vld [vmem:[#allocation5 + $0x830] sm:$0xff]
    %v535 = vld [vmem:[#allocation5 + $0x838] sm:$0xff]
    %v536 = vld [vmem:[#allocation5 + $0x840] sm:$0xff]
    %v537 = vld [vmem:[#allocation5 + $0x848] sm:$0xff]
    %v538 = vld [vmem:[#allocation5 + $0x850] sm:$0xff]
    %v539 = vld [vmem:[#allocation5 + $0x858] sm:$0xff]
    %v540 = vld [vmem:[#allocation5 + $0x860] sm:$0xff]
    %v541 = vld [vmem:[#allocation5 + $0x868] sm:$0xff]
    %v542 = vld [vmem:[#allocation5 + $0x870] sm:$0xff]
    %v543 = vld [vmem:[#allocation5 + $0x878] sm:$0xff]
    %v544 = vld [vmem:[#allocation5 + $0x880] sm:$0xff]
    %v545 = vld [vmem:[#allocation5 + $0x888] sm:$0xff]
    %v546 = vld [vmem:[#allocation5 + $0x890] sm:$0xff]
    %v547 = vld [vmem:[#allocation5 + $0x898] sm:$0xff]
    %v548 = vld [vmem:[#allocation5 + $0x8a0] sm:$0xff]
    %v549 = vld [vmem:[#allocation5 + $0x8a8] sm:$0xff]
    %v550 = vld [vmem:[#allocation5 + $0x8b0] sm:$0xff]
    %v551 = vld [vmem:[#allocation5 + $0x8b8] sm:$0xff]
    %v552 = vld [vmem:[#allocation5 + $0x8c0] sm:$0xff]
    %v553 = vld [vmem:[#allocation5 + $0x8c8] sm:$0xff]
    %v554 = vld [vmem:[#allocation5 + $0x8d0] sm:$0xff]
    %v555 = vld [vmem:[#allocation5 + $0x8d8] sm:$0xff]
    %v556 = vld [vmem:[#allocation5 + $0x8e0] sm:$0xff]
    %v557 = vld [vmem:[#allocation5 + $0x8e8] sm:$0xff]
    %v558 = vld [vmem:[#allocation5 + $0x8f0] sm:$0xff]
    %v559 = vld [vmem:[#allocation5 + $0x8f8] sm:$0xff]
    %v561 = vperm.slane %v110, 0
    %v562 = vperm.slane %v110, 1
    %v563 = vperm.slane %v110, 2
    %v564 = vperm.slane %v110, 3
    %v565 = vperm.slane %v110, 4
    %v566 = vperm.slane %v110, 5
    %v861 = vunpack.c.l.b16 %v272
    %v862 = vunpack.c.h.b16 %v272
    %v863 = vunpack.c.l.b16 %v273
    %v864 = vunpack.c.h.b16 %v273
    %v865 = vunpack.c.l.b16 %v274
    %v866 = vunpack.c.h.b16 %v274
    %v867 = vunpack.c.l.b16 %v275
    %v868 = vunpack.c.h.b16 %v275
    %v869 = vunpack.c.l.b16 %v276
    %v870 = vunpack.c.h.b16 %v276
    %v871 = vunpack.c.l.b16 %v277
    %v872 = vunpack.c.h.b16 %v277
    %v873 = vunpack.c.l.b16 %v278
    %v874 = vunpack.c.h.b16 %v278
    %v875 = vunpack.c.l.b16 %v279
    %v876 = vunpack.c.h.b16 %v279
    %v877 = vunpack.c.l.b16 %v280
    %v878 = vunpack.c.h.b16 %v280
    %v879 = vunpack.c.l.b16 %v281
    %v880 = vunpack.c.h.b16 %v281
    %v881 = vunpack.c.l.b16 %v282
    %v882 = vunpack.c.h.b16 %v282
    %v883 = vunpack.c.l.b16 %v283
    %v884 = vunpack.c.h.b16 %v283
    %v885 = vunpack.c.l.b16 %v284
    %v886 = vunpack.c.h.b16 %v284
    %v887 = vunpack.c.l.b16 %v285
    %v888 = vunpack.c.h.b16 %v285
    %v889 = vunpack.c.l.b16 %v286
    %v890 = vunpack.c.h.b16 %v286
    %v891 = vunpack.c.l.b16 %v287
    %v892 = vunpack.c.h.b16 %v287
    %v893 = vunpack.c.l.b16 %v288
    %v894 = vunpack.c.h.b16 %v288
    %v895 = vunpack.c.l.b16 %v289
    %v896 = vunpack.c.h.b16 %v289
    %v897 = vunpack.c.l.b16 %v290
    %v898 = vunpack.c.h.b16 %v290
    %v899 = vunpack.c.l.b16 %v291
    %v900 = vunpack.c.h.b16 %v291
    %v901 = vunpack.c.l.b16 %v292
    %v902 = vunpack.c.h.b16 %v292
    %v903 = vunpack.c.l.b16 %v293
    %v904 = vunpack.c.h.b16 %v293
    %v905 = vunpack.c.l.b16 %v294
    %v906 = vunpack.c.h.b16 %v294
    %v907 = vunpack.c.l.b16 %v295
    %v908 = vunpack.c.h.b16 %v295
    %v909 = vunpack.c.l.b16 %v296
    %v910 = vunpack.c.h.b16 %v296
    %v911 = vunpack.c.l.b16 %v297
    %v912 = vunpack.c.h.b16 %v297
    %v913 = vunpack.c.l.b16 %v298
    %v914 = vunpack.c.h.b16 %v298
    %v915 = vunpack.c.l.b16 %v299
    %v916 = vunpack.c.h.b16 %v299
    %v917 = vunpack.c.l.b16 %v300
    %v918 = vunpack.c.h.b16 %v300
    %v919 = vunpack.c.l.b16 %v301
    %v920 = vunpack.c.h.b16 %v301
    %v921 = vunpack.c.l.b16 %v302
    %v922 = vunpack.c.h.b16 %v302
    %v923 = vunpack.c.l.b16 %v303
    %v924 = vunpack.c.h.b16 %v303
    %v925 = vunpack.c.l.b16 %v304
    %v926 = vunpack.c.h.b16 %v304
    %v927 = vunpack.c.l.b16 %v305
    %v928 = vunpack.c.h.b16 %v305
    %v929 = vunpack.c.l.b16 %v306
    %v930 = vunpack.c.h.b16 %v306
    %v931 = vunpack.c.l.b16 %v307
    %v932 = vunpack.c.h.b16 %v307
    %v933 = vunpack.c.l.b16 %v308
    %v934 = vunpack.c.h.b16 %v308
    %v935 = vunpack.c.l.b16 %v309
    %v936 = vunpack.c.h.b16 %v309
    %v937 = vunpack.c.l.b16 %v310
    %v938 = vunpack.c.h.b16 %v310
    %v939 = vunpack.c.l.b16 %v311
    %v940 = vunpack.c.h.b16 %v311
    %v941 = vunpack.c.l.b16 %v312
    %v942 = vunpack.c.h.b16 %v312
    %v943 = vunpack.c.l.b16 %v313
    %v944 = vunpack.c.h.b16 %v313
    %v945 = vunpack.c.l.b16 %v314
    %v946 = vunpack.c.h.b16 %v314
    %v947 = vunpack.c.l.b16 %v315
    %v948 = vunpack.c.h.b16 %v315
    %v949 = vunpack.c.l.b16 %v316
    %v950 = vunpack.c.h.b16 %v316
    %v951 = vunpack.c.l.b16 %v317
    %v952 = vunpack.c.h.b16 %v317
    %v953 = vunpack.c.l.b16 %v318
    %v954 = vunpack.c.h.b16 %v318
    %v955 = vunpack.c.l.b16 %v319
    %v956 = vunpack.c.h.b16 %v319
    %v957 = vunpack.c.l.b16 %v320
    %v958 = vunpack.c.h.b16 %v320
    %v959 = vunpack.c.l.b16 %v321
    %v960 = vunpack.c.h.b16 %v321
    %v961 = vunpack.c.l.b16 %v322
    %v962 = vunpack.c.h.b16 %v322
    %v963 = vunpack.c.l.b16 %v323
    %v964 = vunpack.c.h.b16 %v323
    %v965 = vunpack.c.l.b16 %v324
    %v966 = vunpack.c.h.b16 %v324
    %v967 = vunpack.c.l.b16 %v325
    %v968 = vunpack.c.h.b16 %v325
    %v969 = vunpack.c.l.b16 %v326
    %v970 = vunpack.c.h.b16 %v326
    %v971 = vunpack.c.l.b16 %v327
    %v972 = vunpack.c.h.b16 %v327
    %v973 = vunpack.c.l.b16 %v328
    %v974 = vunpack.c.h.b16 %v328
    %v975 = vunpack.c.l.b16 %v329
    %v976 = vunpack.c.h.b16 %v329
    %v977 = vunpack.c.l.b16 %v330
    %v978 = vunpack.c.h.b16 %v330
    %v979 = vunpack.c.l.b16 %v331
    %v980 = vunpack.c.h.b16 %v331
    %v981 = vunpack.c.l.b16 %v332
    %v982 = vunpack.c.h.b16 %v332
    %v983 = vunpack.c.l.b16 %v333
    %v984 = vunpack.c.h.b16 %v333
    %v985 = vunpack.c.l.b16 %v334
    %v986 = vunpack.c.h.b16 %v334
    %v987 = vunpack.c.l.b16 %v335
    %v988 = vunpack.c.h.b16 %v335
    %v989 = vunpack.c.l.b16 %v336
    %v990 = vunpack.c.h.b16 %v336
    %v991 = vunpack.c.l.b16 %v337
    %v992 = vunpack.c.h.b16 %v337
    %v993 = vunpack.c.l.b16 %v338
    %v994 = vunpack.c.h.b16 %v338
    %v995 = vunpack.c.l.b16 %v339
    %v996 = vunpack.c.h.b16 %v339
    %v997 = vunpack.c.l.b16 %v340
    %v998 = vunpack.c.h.b16 %v340
    %v999 = vunpack.c.l.b16 %v341
    %v1000 = vunpack.c.h.b16 %v341
    %v1001 = vunpack.c.l.b16 %v342
    %v1002 = vunpack.c.h.b16 %v342
    %v1003 = vunpack.c.l.b16 %v343
    %v1004 = vunpack.c.h.b16 %v343
    %v1005 = vunpack.c.l.b16 %v344
    %v1006 = vunpack.c.h.b16 %v344
    %v1007 = vunpack.c.l.b16 %v345
    %v1008 = vunpack.c.h.b16 %v345
    %v1009 = vunpack.c.l.b16 %v346
    %v1010 = vunpack.c.h.b16 %v346
    %v1011 = vunpack.c.l.b16 %v347
    %v1012 = vunpack.c.h.b16 %v347
    %v1013 = vunpack.c.l.b16 %v348
    %v1014 = vunpack.c.h.b16 %v348
    %v1015 = vunpack.c.l.b16 %v349
    %v1016 = vunpack.c.h.b16 %v349
    %v1017 = vunpack.c.l.b16 %v350
    %v1018 = vunpack.c.h.b16 %v350
    %v1019 = vunpack.c.l.b16 %v351
    %v1020 = vunpack.c.h.b16 %v351
    %v1021 = vunpack.c.l.b16 %v352
    %v1022 = vunpack.c.h.b16 %v352
    %v1023 = vunpack.c.l.b16 %v353
    %v1024 = vunpack.c.h.b16 %v353
    %v1025 = vunpack.c.l.b16 %v354
    %v1026 = vunpack.c.h.b16 %v354
    %v1027 = vunpack.c.l.b16 %v355
    %v1028 = vunpack.c.h.b16 %v355
    %v1029 = vunpack.c.l.b16 %v356
    %v1030 = vunpack.c.h.b16 %v356
    %v1031 = vunpack.c.l.b16 %v357
    %v1032 = vunpack.c.h.b16 %v357
    %v1033 = vunpack.c.l.b16 %v358
    %v1034 = vunpack.c.h.b16 %v358
    %v1035 = vunpack.c.l.b16 %v359
    %v1036 = vunpack.c.h.b16 %v359
    %v1037 = vunpack.c.l.b16 %v360
    %v1038 = vunpack.c.h.b16 %v360
    %v1039 = vunpack.c.l.b16 %v361
    %v1040 = vunpack.c.h.b16 %v361
    %v1041 = vunpack.c.l.b16 %v362
    %v1042 = vunpack.c.h.b16 %v362
    %v1043 = vunpack.c.l.b16 %v363
    %v1044 = vunpack.c.h.b16 %v363
    %v1045 = vunpack.c.l.b16 %v364
    %v1046 = vunpack.c.h.b16 %v364
    %v1047 = vunpack.c.l.b16 %v365
    %v1048 = vunpack.c.h.b16 %v365
    %v1049 = vunpack.c.l.b16 %v366
    %v1050 = vunpack.c.h.b16 %v366
    %v1051 = vunpack.c.l.b16 %v367
    %v1052 = vunpack.c.h.b16 %v367
    %v1053 = vunpack.c.l.b16 %v368
    %v1054 = vunpack.c.h.b16 %v368
    %v1055 = vunpack.c.l.b16 %v369
    %v1056 = vunpack.c.h.b16 %v369
    %v1057 = vunpack.c.l.b16 %v370
    %v1058 = vunpack.c.h.b16 %v370
    %v1059 = vunpack.c.l.b16 %v371
    %v1060 = vunpack.c.h.b16 %v371
    %v1061 = vunpack.c.l.b16 %v372
    %v1062 = vunpack.c.h.b16 %v372
    %v1063 = vunpack.c.l.b16 %v373
    %v1064 = vunpack.c.h.b16 %v373
    %v1065 = vunpack.c.l.b16 %v374
    %v1066 = vunpack.c.h.b16 %v374
    %v1067 = vunpack.c.l.b16 %v375
    %v1068 = vunpack.c.h.b16 %v375
    %v1069 = vunpack.c.l.b16 %v376
    %v1070 = vunpack.c.h.b16 %v376
    %v1071 = vunpack.c.l.b16 %v377
    %v1072 = vunpack.c.h.b16 %v377
    %v1073 = vunpack.c.l.b16 %v378
    %v1074 = vunpack.c.h.b16 %v378
    %v1075 = vunpack.c.l.b16 %v379
    %v1076 = vunpack.c.h.b16 %v379
    %v1077 = vunpack.c.l.b16 %v380
    %v1078 = vunpack.c.h.b16 %v380
    %v1079 = vunpack.c.l.b16 %v381
    %v1080 = vunpack.c.h.b16 %v381
    %v1081 = vunpack.c.l.b16 %v382
    %v1082 = vunpack.c.h.b16 %v382
    %v1083 = vunpack.c.l.b16 %v383
    %v1084 = vunpack.c.h.b16 %v383
    %v1085 = vunpack.c.l.b16 %v384
    %v1086 = vunpack.c.h.b16 %v384
    %v1087 = vunpack.c.l.b16 %v385
    %v1088 = vunpack.c.h.b16 %v385
    %v1089 = vunpack.c.l.b16 %v386
    %v1090 = vunpack.c.h.b16 %v386
    %v1091 = vunpack.c.l.b16 %v387
    %v1092 = vunpack.c.h.b16 %v387
    %v1093 = vunpack.c.l.b16 %v388
    %v1094 = vunpack.c.h.b16 %v388
    %v1095 = vunpack.c.l.b16 %v389
    %v1096 = vunpack.c.h.b16 %v389
    %v1097 = vunpack.c.l.b16 %v390
    %v1098 = vunpack.c.h.b16 %v390
    %v1099 = vunpack.c.l.b16 %v391
    %v1100 = vunpack.c.h.b16 %v391
    %v1101 = vunpack.c.l.b16 %v392
    %v1102 = vunpack.c.h.b16 %v392
    %v1103 = vunpack.c.l.b16 %v393
    %v1104 = vunpack.c.h.b16 %v393
    %v1105 = vunpack.c.l.b16 %v394
    %v1106 = vunpack.c.h.b16 %v394
    %v1107 = vunpack.c.l.b16 %v395
    %v1108 = vunpack.c.h.b16 %v395
    %v1109 = vunpack.c.l.b16 %v396
    %v1110 = vunpack.c.h.b16 %v396
    %v1111 = vunpack.c.l.b16 %v397
    %v1112 = vunpack.c.h.b16 %v397
    %v1113 = vunpack.c.l.b16 %v398
    %v1114 = vunpack.c.h.b16 %v398
    %v1115 = vunpack.c.l.b16 %v399
    %v1116 = vunpack.c.h.b16 %v399
    %v1117 = vunpack.c.l.b16 %v400
    %v1118 = vunpack.c.h.b16 %v400
    %v1119 = vunpack.c.l.b16 %v401
    %v1120 = vunpack.c.h.b16 %v401
    %v1121 = vunpack.c.l.b16 %v402
    %v1122 = vunpack.c.h.b16 %v402
    %v1123 = vunpack.c.l.b16 %v403
    %v1124 = vunpack.c.h.b16 %v403
    %v1125 = vunpack.c.l.b16 %v404
    %v1126 = vunpack.c.h.b16 %v404
    %v1127 = vunpack.c.l.b16 %v405
    %v1128 = vunpack.c.h.b16 %v405
    %v1129 = vunpack.c.l.b16 %v406
    %v1130 = vunpack.c.h.b16 %v406
    %v1131 = vunpack.c.l.b16 %v407
    %v1132 = vunpack.c.h.b16 %v407
    %v1133 = vunpack.c.l.b16 %v408
    %v1134 = vunpack.c.h.b16 %v408
    %v1135 = vunpack.c.l.b16 %v409
    %v1136 = vunpack.c.h.b16 %v409
    %v1137 = vunpack.c.l.b16 %v410
    %v1138 = vunpack.c.h.b16 %v410
    %v1139 = vunpack.c.l.b16 %v411
    %v1140 = vunpack.c.h.b16 %v411
    %v1141 = vunpack.c.l.b16 %v412
    %v1142 = vunpack.c.h.b16 %v412
    %v1143 = vunpack.c.l.b16 %v413
    %v1144 = vunpack.c.h.b16 %v413
    %v1145 = vunpack.c.l.b16 %v414
    %v1146 = vunpack.c.h.b16 %v414
    %v1147 = vunpack.c.l.b16 %v415
    %v1148 = vunpack.c.h.b16 %v415
    %v1149 = vunpack.c.l.b16 %v416
    %v1150 = vunpack.c.h.b16 %v416
    %v1151 = vunpack.c.l.b16 %v417
    %v1152 = vunpack.c.h.b16 %v417
    %v1153 = vunpack.c.l.b16 %v418
    %v1154 = vunpack.c.h.b16 %v418
    %v1155 = vunpack.c.l.b16 %v419
    %v1156 = vunpack.c.h.b16 %v419
    %v1157 = vunpack.c.l.b16 %v420
    %v1158 = vunpack.c.h.b16 %v420
    %v1159 = vunpack.c.l.b16 %v421
    %v1160 = vunpack.c.h.b16 %v421
    %v1161 = vunpack.c.l.b16 %v422
    %v1162 = vunpack.c.h.b16 %v422
    %v1163 = vunpack.c.l.b16 %v423
    %v1164 = vunpack.c.h.b16 %v423
    %v1165 = vunpack.c.l.b16 %v424
    %v1166 = vunpack.c.h.b16 %v424
    %v1167 = vunpack.c.l.b16 %v425
    %v1168 = vunpack.c.h.b16 %v425
    %v1169 = vunpack.c.l.b16 %v426
    %v1170 = vunpack.c.h.b16 %v426
    %v1171 = vunpack.c.l.b16 %v427
    %v1172 = vunpack.c.h.b16 %v427
    %v1173 = vunpack.c.l.b16 %v428
    %v1174 = vunpack.c.h.b16 %v428
    %v1175 = vunpack.c.l.b16 %v429
    %v1176 = vunpack.c.h.b16 %v429
    %v1177 = vunpack.c.l.b16 %v430
    %v1178 = vunpack.c.h.b16 %v430
    %v1179 = vunpack.c.l.b16 %v431
    %v1180 = vunpack.c.h.b16 %v431
    %v1181 = vunpack.c.l.b16 %v432
    %v1182 = vunpack.c.h.b16 %v432
    %v1183 = vunpack.c.l.b16 %v433
    %v1184 = vunpack.c.h.b16 %v433
    %v1185 = vunpack.c.l.b16 %v434
    %v1186 = vunpack.c.h.b16 %v434
    %v1187 = vunpack.c.l.b16 %v435
    %v1188 = vunpack.c.h.b16 %v435
    %v1189 = vunpack.c.l.b16 %v436
    %v1190 = vunpack.c.h.b16 %v436
    %v1191 = vunpack.c.l.b16 %v437
    %v1192 = vunpack.c.h.b16 %v437
    %v1193 = vunpack.c.l.b16 %v438
    %v1194 = vunpack.c.h.b16 %v438
    %v1195 = vunpack.c.l.b16 %v439
    %v1196 = vunpack.c.h.b16 %v439
    %v1197 = vunpack.c.l.b16 %v440
    %v1198 = vunpack.c.h.b16 %v440
    %v1199 = vunpack.c.l.b16 %v441
    %v1200 = vunpack.c.h.b16 %v441
    %v1201 = vunpack.c.l.b16 %v442
    %v1202 = vunpack.c.h.b16 %v442
    %v1203 = vunpack.c.l.b16 %v443
    %v1204 = vunpack.c.h.b16 %v443
    %v1205 = vunpack.c.l.b16 %v444
    %v1206 = vunpack.c.h.b16 %v444
    %v1207 = vunpack.c.l.b16 %v445
    %v1208 = vunpack.c.h.b16 %v445
    %v1209 = vunpack.c.l.b16 %v446
    %v1210 = vunpack.c.h.b16 %v446
    %v1211 = vunpack.c.l.b16 %v447
    %v1212 = vunpack.c.h.b16 %v447
    %v1213 = vunpack.c.l.b16 %v448
    %v1214 = vunpack.c.h.b16 %v448
    %v1215 = vunpack.c.l.b16 %v449
    %v1216 = vunpack.c.h.b16 %v449
    %v1217 = vunpack.c.l.b16 %v450
    %v1218 = vunpack.c.h.b16 %v450
    %v1219 = vunpack.c.l.b16 %v451
    %v1220 = vunpack.c.h.b16 %v451
    %v1221 = vunpack.c.l.b16 %v452
    %v1222 = vunpack.c.h.b16 %v452
    %v1223 = vunpack.c.l.b16 %v453
    %v1224 = vunpack.c.h.b16 %v453
    %v1225 = vunpack.c.l.b16 %v454
    %v1226 = vunpack.c.h.b16 %v454
    %v1227 = vunpack.c.l.b16 %v455
    %v1228 = vunpack.c.h.b16 %v455
    %v1229 = vunpack.c.l.b16 %v456
    %v1230 = vunpack.c.h.b16 %v456
    %v1231 = vunpack.c.l.b16 %v457
    %v1232 = vunpack.c.h.b16 %v457
    %v1233 = vunpack.c.l.b16 %v458
    %v1234 = vunpack.c.h.b16 %v458
    %v1235 = vunpack.c.l.b16 %v459
    %v1236 = vunpack.c.h.b16 %v459
    %v1237 = vunpack.c.l.b16 %v460
    %v1238 = vunpack.c.h.b16 %v460
    %v1239 = vunpack.c.l.b16 %v461
    %v1240 = vunpack.c.h.b16 %v461
    %v1241 = vunpack.c.l.b16 %v462
    %v1242 = vunpack.c.h.b16 %v462
    %v1243 = vunpack.c.l.b16 %v463
    %v1244 = vunpack.c.h.b16 %v463
    %v1245 = vunpack.c.l.b16 %v464
    %v1246 = vunpack.c.h.b16 %v464
    %v1247 = vunpack.c.l.b16 %v465
    %v1248 = vunpack.c.h.b16 %v465
    %v1249 = vunpack.c.l.b16 %v466
    %v1250 = vunpack.c.h.b16 %v466
    %v1251 = vunpack.c.l.b16 %v467
    %v1252 = vunpack.c.h.b16 %v467
    %v1253 = vunpack.c.l.b16 %v468
    %v1254 = vunpack.c.h.b16 %v468
    %v1255 = vunpack.c.l.b16 %v469
    %v1256 = vunpack.c.h.b16 %v469
    %v1257 = vunpack.c.l.b16 %v470
    %v1258 = vunpack.c.h.b16 %v470
    %v1259 = vunpack.c.l.b16 %v471
    %v1260 = vunpack.c.h.b16 %v471
    %v1261 = vunpack.c.l.b16 %v472
    %v1262 = vunpack.c.h.b16 %v472
    %v1263 = vunpack.c.l.b16 %v473
    %v1264 = vunpack.c.h.b16 %v473
    %v1265 = vunpack.c.l.b16 %v474
    %v1266 = vunpack.c.h.b16 %v474
    %v1267 = vunpack.c.l.b16 %v475
    %v1268 = vunpack.c.h.b16 %v475
    %v1269 = vunpack.c.l.b16 %v476
    %v1270 = vunpack.c.h.b16 %v476
    %v1271 = vunpack.c.l.b16 %v477
    %v1272 = vunpack.c.h.b16 %v477
    %v1273 = vunpack.c.l.b16 %v478
    %v1274 = vunpack.c.h.b16 %v478
    %v1275 = vunpack.c.l.b16 %v479
    %v1276 = vunpack.c.h.b16 %v479
    %v1277 = vunpack.c.l.b16 %v480
    %v1278 = vunpack.c.h.b16 %v480
    %v1279 = vunpack.c.l.b16 %v481
    %v1280 = vunpack.c.h.b16 %v481
    %v1281 = vunpack.c.l.b16 %v482
    %v1282 = vunpack.c.h.b16 %v482
    %v1283 = vunpack.c.l.b16 %v483
    %v1284 = vunpack.c.h.b16 %v483
    %v1285 = vunpack.c.l.b16 %v484
    %v1286 = vunpack.c.h.b16 %v484
    %v1287 = vunpack.c.l.b16 %v485
    %v1288 = vunpack.c.h.b16 %v485
    %v1289 = vunpack.c.l.b16 %v486
    %v1290 = vunpack.c.h.b16 %v486
    %v1291 = vunpack.c.l.b16 %v487
    %v1292 = vunpack.c.h.b16 %v487
    %v1293 = vunpack.c.l.b16 %v488
    %v1294 = vunpack.c.h.b16 %v488
    %v1295 = vunpack.c.l.b16 %v489
    %v1296 = vunpack.c.h.b16 %v489
    %v1297 = vunpack.c.l.b16 %v490
    %v1298 = vunpack.c.h.b16 %v490
    %v1299 = vunpack.c.l.b16 %v491
    %v1300 = vunpack.c.h.b16 %v491
    %v1301 = vunpack.c.l.b16 %v492
    %v1302 = vunpack.c.h.b16 %v492
    %v1303 = vunpack.c.l.b16 %v493
    %v1304 = vunpack.c.h.b16 %v493
    %v1305 = vunpack.c.l.b16 %v494
    %v1306 = vunpack.c.h.b16 %v494
    %v1307 = vunpack.c.l.b16 %v495
    %v1308 = vunpack.c.h.b16 %v495
    %v1309 = vunpack.c.l.b16 %v496
    %v1310 = vunpack.c.h.b16 %v496
    %v1311 = vunpack.c.l.b16 %v497
    %v1312 = vunpack.c.h.b16 %v497
    %v1313 = vunpack.c.l.b16 %v498
    %v1314 = vunpack.c.h.b16 %v498
    %v1315 = vunpack.c.l.b16 %v499
    %v1316 = vunpack.c.h.b16 %v499
    %v1317 = vunpack.c.l.b16 %v500
    %v1318 = vunpack.c.h.b16 %v500
    %v1319 = vunpack.c.l.b16 %v501
    %v1320 = vunpack.c.h.b16 %v501
    %v1321 = vunpack.c.l.b16 %v502
    %v1322 = vunpack.c.h.b16 %v502
    %v1323 = vunpack.c.l.b16 %v503
    %v1324 = vunpack.c.h.b16 %v503
    %v1325 = vunpack.c.l.b16 %v504
    %v1326 = vunpack.c.h.b16 %v504
    %v1327 = vunpack.c.l.b16 %v505
    %v1328 = vunpack.c.h.b16 %v505
    %v1329 = vunpack.c.l.b16 %v506
    %v1330 = vunpack.c.h.b16 %v506
    %v1331 = vunpack.c.l.b16 %v507
    %v1332 = vunpack.c.h.b16 %v507
    %v1333 = vunpack.c.l.b16 %v508
    %v1334 = vunpack.c.h.b16 %v508
    %v1335 = vunpack.c.l.b16 %v509
    %v1336 = vunpack.c.h.b16 %v509
    %v1337 = vunpack.c.l.b16 %v510
    %v1338 = vunpack.c.h.b16 %v510
    %v1339 = vunpack.c.l.b16 %v511
    %v1340 = vunpack.c.h.b16 %v511
    %v1341 = vunpack.c.l.b16 %v512
    %v1342 = vunpack.c.h.b16 %v512
    %v1343 = vunpack.c.l.b16 %v513
    %v1344 = vunpack.c.h.b16 %v513
    %v1345 = vunpack.c.l.b16 %v514
    %v1346 = vunpack.c.h.b16 %v514
    %v1347 = vunpack.c.l.b16 %v515
    %v1348 = vunpack.c.h.b16 %v515
    %v1349 = vunpack.c.l.b16 %v516
    %v1350 = vunpack.c.h.b16 %v516
    %v1351 = vunpack.c.l.b16 %v517
    %v1352 = vunpack.c.h.b16 %v517
    %v1353 = vunpack.c.l.b16 %v518
    %v1354 = vunpack.c.h.b16 %v518
    %v1355 = vunpack.c.l.b16 %v519
    %v1356 = vunpack.c.h.b16 %v519
    %v1357 = vunpack.c.l.b16 %v520
    %v1358 = vunpack.c.h.b16 %v520
    %v1359 = vunpack.c.l.b16 %v521
    %v1360 = vunpack.c.h.b16 %v521
    %v1361 = vunpack.c.l.b16 %v522
    %v1362 = vunpack.c.h.b16 %v522
    %v1363 = vunpack.c.l.b16 %v523
    %v1364 = vunpack.c.h.b16 %v523
    %v1365 = vunpack.c.l.b16 %v524
    %v1366 = vunpack.c.h.b16 %v524
    %v1367 = vunpack.c.l.b16 %v525
    %v1368 = vunpack.c.h.b16 %v525
    %v1369 = vunpack.c.l.b16 %v526
    %v1370 = vunpack.c.h.b16 %v526
    %v1371 = vunpack.c.l.b16 %v527
    %v1372 = vunpack.c.h.b16 %v527
    %v1373 = vunpack.c.l.b16 %v528
    %v1374 = vunpack.c.h.b16 %v528
    %v1375 = vunpack.c.l.b16 %v529
    %v1376 = vunpack.c.h.b16 %v529
    %v1377 = vunpack.c.l.b16 %v530
    %v1378 = vunpack.c.h.b16 %v530
    %v1379 = vunpack.c.l.b16 %v531
    %v1380 = vunpack.c.h.b16 %v531
    %v1381 = vunpack.c.l.b16 %v532
    %v1382 = vunpack.c.h.b16 %v532
    %v1383 = vunpack.c.l.b16 %v533
    %v1384 = vunpack.c.h.b16 %v533
    %v1385 = vunpack.c.l.b16 %v534
    %v1386 = vunpack.c.h.b16 %v534
    %v1387 = vunpack.c.l.b16 %v535
    %v1388 = vunpack.c.h.b16 %v535
    %v1389 = vunpack.c.l.b16 %v536
    %v1390 = vunpack.c.h.b16 %v536
    %v1391 = vunpack.c.l.b16 %v537
    %v1392 = vunpack.c.h.b16 %v537
    %v1393 = vunpack.c.l.b16 %v538
    %v1394 = vunpack.c.h.b16 %v538
    %v1395 = vunpack.c.l.b16 %v539
    %v1396 = vunpack.c.h.b16 %v539
    %v1397 = vunpack.c.l.b16 %v540
    %v1398 = vunpack.c.h.b16 %v540
    %v1399 = vunpack.c.l.b16 %v541
    %v1400 = vunpack.c.h.b16 %v541
    %v1401 = vunpack.c.l.b16 %v542
    %v1402 = vunpack.c.h.b16 %v542
    %v1403 = vunpack.c.l.b16 %v543
    %v1404 = vunpack.c.h.b16 %v543
    %v1405 = vunpack.c.l.b16 %v544
    %v1406 = vunpack.c.h.b16 %v544
    %v1407 = vunpack.c.l.b16 %v545
    %v1408 = vunpack.c.h.b16 %v545
    %v1409 = vunpack.c.l.b16 %v546
    %v1410 = vunpack.c.h.b16 %v546
    %v1411 = vunpack.c.l.b16 %v547
    %v1412 = vunpack.c.h.b16 %v547
    %v1413 = vunpack.c.l.b16 %v548
    %v1414 = vunpack.c.h.b16 %v548
    %v1415 = vunpack.c.l.b16 %v549
    %v1416 = vunpack.c.h.b16 %v549
    %v1417 = vunpack.c.l.b16 %v550
    %v1418 = vunpack.c.h.b16 %v550
    %v1419 = vunpack.c.l.b16 %v551
    %v1420 = vunpack.c.h.b16 %v551
    %v1421 = vunpack.c.l.b16 %v552
    %v1422 = vunpack.c.h.b16 %v552
    %v1423 = vunpack.c.l.b16 %v553
    %v1424 = vunpack.c.h.b16 %v553
    %v1425 = vunpack.c.l.b16 %v554
    %v1426 = vunpack.c.h.b16 %v554
    %v1427 = vunpack.c.l.b16 %v555
    %v1428 = vunpack.c.h.b16 %v555
    %v1429 = vunpack.c.l.b16 %v556
    %v1430 = vunpack.c.h.b16 %v556
    %v1431 = vunpack.c.l.b16 %v557
    %v1432 = vunpack.c.h.b16 %v557
    %v1433 = vunpack.c.l.b16 %v558
    %v1434 = vunpack.c.h.b16 %v558
    %v1435 = vunpack.c.l.b16 %v559
    %v1436 = vunpack.c.h.b16 %v559
    %v1437 = vpack.c.b16 %v867, %v861
    %v1438 = vpack.c.b16 %v868, %v862
    %v1439 = vpack.c.b16 %v869, %v863
    %v1440 = vpack.c.b16 %v870, %v864
    %v1441 = vpack.c.b16 %v871, %v865
    %v1442 = vpack.c.b16 %v872, %v866
    %v1443 = vpack.c.b16 %v879, %v873
    %v1444 = vpack.c.b16 %v880, %v874
    %v1445 = vpack.c.b16 %v881, %v875
    %v1446 = vpack.c.b16 %v882, %v876
    %v1447 = vpack.c.b16 %v883, %v877
    %v1448 = vpack.c.b16 %v884, %v878
    %v1449 = vpack.c.b16 %v891, %v885
    %v1450 = vpack.c.b16 %v892, %v886
    %v1451 = vpack.c.b16 %v893, %v887
    %v1452 = vpack.c.b16 %v894, %v888
    %v1453 = vpack.c.b16 %v895, %v889
    %v1454 = vpack.c.b16 %v896, %v890
    %v1455 = vpack.c.b16 %v903, %v897
    %v1456 = vpack.c.b16 %v904, %v898
    %v1457 = vpack.c.b16 %v905, %v899
    %v1458 = vpack.c.b16 %v906, %v900
    %v1459 = vpack.c.b16 %v907, %v901
    %v1460 = vpack.c.b16 %v908, %v902
    %v1461 = vpack.c.b16 %v915, %v909
    %v1462 = vpack.c.b16 %v916, %v910
    %v1463 = vpack.c.b16 %v917, %v911
    %v1464 = vpack.c.b16 %v918, %v912
    %v1465 = vpack.c.b16 %v919, %v913
    %v1466 = vpack.c.b16 %v920, %v914
    %v1467 = vpack.c.b16 %v927, %v921
    %v1468 = vpack.c.b16 %v928, %v922
    %v1469 = vpack.c.b16 %v929, %v923
    %v1470 = vpack.c.b16 %v930, %v924
    %v1471 = vpack.c.b16 %v931, %v925
    %v1472 = vpack.c.b16 %v932, %v926
    %v1473 = vpack.c.b16 %v939, %v933
    %v1474 = vpack.c.b16 %v940, %v934
    %v1475 = vpack.c.b16 %v941, %v935
    %v1476 = vpack.c.b16 %v942, %v936
    %v1477 = vpack.c.b16 %v943, %v937
    %v1478 = vpack.c.b16 %v944, %v938
    %v1479 = vpack.c.b16 %v951, %v945
    %v1480 = vpack.c.b16 %v952, %v946
    %v1481 = vpack.c.b16 %v953, %v947
    %v1482 = vpack.c.b16 %v954, %v948
    %v1483 = vpack.c.b16 %v955, %v949
    %v1484 = vpack.c.b16 %v956, %v950
    %v1485 = vpack.c.b16 %v963, %v957
    %v1486 = vpack.c.b16 %v964, %v958
    %v1487 = vpack.c.b16 %v965, %v959
    %v1488 = vpack.c.b16 %v966, %v960
    %v1489 = vpack.c.b16 %v967, %v961
    %v1490 = vpack.c.b16 %v968, %v962
    %v1491 = vpack.c.b16 %v975, %v969
    %v1492 = vpack.c.b16 %v976, %v970
    %v1493 = vpack.c.b16 %v977, %v971
    %v1494 = vpack.c.b16 %v978, %v972
    %v1495 = vpack.c.b16 %v979, %v973
    %v1496 = vpack.c.b16 %v980, %v974
    %v1497 = vpack.c.b16 %v987, %v981
    %v1498 = vpack.c.b16 %v988, %v982
    %v1499 = vpack.c.b16 %v989, %v983
    %v1500 = vpack.c.b16 %v990, %v984
    %v1501 = vpack.c.b16 %v991, %v985
    %v1502 = vpack.c.b16 %v992, %v986
    %v1503 = vpack.c.b16 %v999, %v993
    %v1504 = vpack.c.b16 %v1000, %v994
    %v1505 = vpack.c.b16 %v1001, %v995
    %v1506 = vpack.c.b16 %v1002, %v996
    %v1507 = vpack.c.b16 %v1003, %v997
    %v1508 = vpack.c.b16 %v1004, %v998
    %v1509 = vpack.c.b16 %v1011, %v1005
    %v1510 = vpack.c.b16 %v1012, %v1006
    %v1511 = vpack.c.b16 %v1013, %v1007
    %v1512 = vpack.c.b16 %v1014, %v1008
    %v1513 = vpack.c.b16 %v1015, %v1009
    %v1514 = vpack.c.b16 %v1016, %v1010
    %v1515 = vpack.c.b16 %v1023, %v1017
    %v1516 = vpack.c.b16 %v1024, %v1018
    %v1517 = vpack.c.b16 %v1025, %v1019
    %v1518 = vpack.c.b16 %v1026, %v1020
    %v1519 = vpack.c.b16 %v1027, %v1021
    %v1520 = vpack.c.b16 %v1028, %v1022
    %v1521 = vpack.c.b16 %v1035, %v1029
    %v1522 = vpack.c.b16 %v1036, %v1030
    %v1523 = vpack.c.b16 %v1037, %v1031
    %v1524 = vpack.c.b16 %v1038, %v1032
    %v1525 = vpack.c.b16 %v1039, %v1033
    %v1526 = vpack.c.b16 %v1040, %v1034
    %v1527 = vpack.c.b16 %v1047, %v1041
    %v1528 = vpack.c.b16 %v1048, %v1042
    %v1529 = vpack.c.b16 %v1049, %v1043
    %v1530 = vpack.c.b16 %v1050, %v1044
    %v1531 = vpack.c.b16 %v1051, %v1045
    %v1532 = vpack.c.b16 %v1052, %v1046
    %v1533 = vpack.c.b16 %v1059, %v1053
    %v1534 = vpack.c.b16 %v1060, %v1054
    %v1535 = vpack.c.b16 %v1061, %v1055
    %v1536 = vpack.c.b16 %v1062, %v1056
    %v1537 = vpack.c.b16 %v1063, %v1057
    %v1538 = vpack.c.b16 %v1064, %v1058
    %v1539 = vpack.c.b16 %v1071, %v1065
    %v1540 = vpack.c.b16 %v1072, %v1066
    %v1541 = vpack.c.b16 %v1073, %v1067
    %v1542 = vpack.c.b16 %v1074, %v1068
    %v1543 = vpack.c.b16 %v1075, %v1069
    %v1544 = vpack.c.b16 %v1076, %v1070
    %v1545 = vpack.c.b16 %v1083, %v1077
    %v1546 = vpack.c.b16 %v1084, %v1078
    %v1547 = vpack.c.b16 %v1085, %v1079
    %v1548 = vpack.c.b16 %v1086, %v1080
    %v1549 = vpack.c.b16 %v1087, %v1081
    %v1550 = vpack.c.b16 %v1088, %v1082
    %v1551 = vpack.c.b16 %v1095, %v1089
    %v1552 = vpack.c.b16 %v1096, %v1090
    %v1553 = vpack.c.b16 %v1097, %v1091
    %v1554 = vpack.c.b16 %v1098, %v1092
    %v1555 = vpack.c.b16 %v1099, %v1093
    %v1556 = vpack.c.b16 %v1100, %v1094
    %v1557 = vpack.c.b16 %v1107, %v1101
    %v1558 = vpack.c.b16 %v1108, %v1102
    %v1559 = vpack.c.b16 %v1109, %v1103
    %v1560 = vpack.c.b16 %v1110, %v1104
    %v1561 = vpack.c.b16 %v1111, %v1105
    %v1562 = vpack.c.b16 %v1112, %v1106
    %v1563 = vpack.c.b16 %v1119, %v1113
    %v1564 = vpack.c.b16 %v1120, %v1114
    %v1565 = vpack.c.b16 %v1121, %v1115
    %v1566 = vpack.c.b16 %v1122, %v1116
    %v1567 = vpack.c.b16 %v1123, %v1117
    %v1568 = vpack.c.b16 %v1124, %v1118
    %v1569 = vpack.c.b16 %v1131, %v1125
    %v1570 = vpack.c.b16 %v1132, %v1126
    %v1571 = vpack.c.b16 %v1133, %v1127
    %v1572 = vpack.c.b16 %v1134, %v1128
    %v1573 = vpack.c.b16 %v1135, %v1129
    %v1574 = vpack.c.b16 %v1136, %v1130
    %v1575 = vpack.c.b16 %v1143, %v1137
    %v1576 = vpack.c.b16 %v1144, %v1138
    %v1577 = vpack.c.b16 %v1145, %v1139
    %v1578 = vpack.c.b16 %v1146, %v1140
    %v1579 = vpack.c.b16 %v1147, %v1141
    %v1580 = vpack.c.b16 %v1148, %v1142
    %v1581 = vpack.c.b16 %v1155, %v1149
    %v1582 = vpack.c.b16 %v1156, %v1150
    %v1583 = vpack.c.b16 %v1157, %v1151
    %v1584 = vpack.c.b16 %v1158, %v1152
    %v1585 = vpack.c.b16 %v1159, %v1153
    %v1586 = vpack.c.b16 %v1160, %v1154
    %v1587 = vpack.c.b16 %v1167, %v1161
    %v1588 = vpack.c.b16 %v1168, %v1162
    %v1589 = vpack.c.b16 %v1169, %v1163
    %v1590 = vpack.c.b16 %v1170, %v1164
    %v1591 = vpack.c.b16 %v1171, %v1165
    %v1592 = vpack.c.b16 %v1172, %v1166
    %v1593 = vpack.c.b16 %v1179, %v1173
    %v1594 = vpack.c.b16 %v1180, %v1174
    %v1595 = vpack.c.b16 %v1181, %v1175
    %v1596 = vpack.c.b16 %v1182, %v1176
    %v1597 = vpack.c.b16 %v1183, %v1177
    %v1598 = vpack.c.b16 %v1184, %v1178
    %v1599 = vpack.c.b16 %v1191, %v1185
    %v1600 = vpack.c.b16 %v1192, %v1186
    %v1601 = vpack.c.b16 %v1193, %v1187
    %v1602 = vpack.c.b16 %v1194, %v1188
    %v1603 = vpack.c.b16 %v1195, %v1189
    %v1604 = vpack.c.b16 %v1196, %v1190
    %v1605 = vpack.c.b16 %v1203, %v1197
    %v1606 = vpack.c.b16 %v1204, %v1198
    %v1607 = vpack.c.b16 %v1205, %v1199
    %v1608 = vpack.c.b16 %v1206, %v1200
    %v1609 = vpack.c.b16 %v1207, %v1201
    %v1610 = vpack.c.b16 %v1208, %v1202
    %v1611 = vpack.c.b16 %v1215, %v1209
    %v1612 = vpack.c.b16 %v1216, %v1210
    %v1613 = vpack.c.b16 %v1217, %v1211
    %v1614 = vpack.c.b16 %v1218, %v1212
    %v1615 = vpack.c.b16 %v1219, %v1213
    %v1616 = vpack.c.b16 %v1220, %v1214
    %v1617 = vpack.c.b16 %v1227, %v1221
    %v1618 = vpack.c.b16 %v1228, %v1222
    %v1619 = vpack.c.b16 %v1229, %v1223
    %v1620 = vpack.c.b16 %v1230, %v1224
    %v1621 = vpack.c.b16 %v1231, %v1225
    %v1622 = vpack.c.b16 %v1232, %v1226
    %v1623 = vpack.c.b16 %v1239, %v1233
    %v1624 = vpack.c.b16 %v1240, %v1234
    %v1625 = vpack.c.b16 %v1241, %v1235
    %v1626 = vpack.c.b16 %v1242, %v1236
    %v1627 = vpack.c.b16 %v1243, %v1237
    %v1628 = vpack.c.b16 %v1244, %v1238
    %v1629 = vpack.c.b16 %v1251, %v1245
    %v1630 = vpack.c.b16 %v1252, %v1246
    %v1631 = vpack.c.b16 %v1253, %v1247
    %v1632 = vpack.c.b16 %v1254, %v1248
    %v1633 = vpack.c.b16 %v1255, %v1249
    %v1634 = vpack.c.b16 %v1256, %v1250
    %v1635 = vpack.c.b16 %v1263, %v1257
    %v1636 = vpack.c.b16 %v1264, %v1258
    %v1637 = vpack.c.b16 %v1265, %v1259
    %v1638 = vpack.c.b16 %v1266, %v1260
    %v1639 = vpack.c.b16 %v1267, %v1261
    %v1640 = vpack.c.b16 %v1268, %v1262
    %v1641 = vpack.c.b16 %v1275, %v1269
    %v1642 = vpack.c.b16 %v1276, %v1270
    %v1643 = vpack.c.b16 %v1277, %v1271
    %v1644 = vpack.c.b16 %v1278, %v1272
    %v1645 = vpack.c.b16 %v1279, %v1273
    %v1646 = vpack.c.b16 %v1280, %v1274
    %v1647 = vpack.c.b16 %v1287, %v1281
    %v1648 = vpack.c.b16 %v1288, %v1282
    %v1649 = vpack.c.b16 %v1289, %v1283
    %v1650 = vpack.c.b16 %v1290, %v1284
    %v1651 = vpack.c.b16 %v1291, %v1285
    %v1652 = vpack.c.b16 %v1292, %v1286
    %v1653 = vpack.c.b16 %v1299, %v1293
    %v1654 = vpack.c.b16 %v1300, %v1294
    %v1655 = vpack.c.b16 %v1301, %v1295
    %v1656 = vpack.c.b16 %v1302, %v1296
    %v1657 = vpack.c.b16 %v1303, %v1297
    %v1658 = vpack.c.b16 %v1304, %v1298
    %v1659 = vpack.c.b16 %v1311, %v1305
    %v1660 = vpack.c.b16 %v1312, %v1306
    %v1661 = vpack.c.b16 %v1313, %v1307
    %v1662 = vpack.c.b16 %v1314, %v1308
    %v1663 = vpack.c.b16 %v1315, %v1309
    %v1664 = vpack.c.b16 %v1316, %v1310
    %v1665 = vpack.c.b16 %v1323, %v1317
    %v1666 = vpack.c.b16 %v1324, %v1318
    %v1667 = vpack.c.b16 %v1325, %v1319
    %v1668 = vpack.c.b16 %v1326, %v1320
    %v1669 = vpack.c.b16 %v1327, %v1321
    %v1670 = vpack.c.b16 %v1328, %v1322
    %v1671 = vpack.c.b16 %v1335, %v1329
    %v1672 = vpack.c.b16 %v1336, %v1330
    %v1673 = vpack.c.b16 %v1337, %v1331
    %v1674 = vpack.c.b16 %v1338, %v1332
    %v1675 = vpack.c.b16 %v1339, %v1333
    %v1676 = vpack.c.b16 %v1340, %v1334
    %v1677 = vpack.c.b16 %v1347, %v1341
    %v1678 = vpack.c.b16 %v1348, %v1342
    %v1679 = vpack.c.b16 %v1349, %v1343
    %v1680 = vpack.c.b16 %v1350, %v1344
    %v1681 = vpack.c.b16 %v1351, %v1345
    %v1682 = vpack.c.b16 %v1352, %v1346
    %v1683 = vpack.c.b16 %v1359, %v1353
    %v1684 = vpack.c.b16 %v1360, %v1354
    %v1685 = vpack.c.b16 %v1361, %v1355
    %v1686 = vpack.c.b16 %v1362, %v1356
    %v1687 = vpack.c.b16 %v1363, %v1357
    %v1688 = vpack.c.b16 %v1364, %v1358
    %v1689 = vpack.c.b16 %v1371, %v1365
    %v1690 = vpack.c.b16 %v1372, %v1366
    %v1691 = vpack.c.b16 %v1373, %v1367
    %v1692 = vpack.c.b16 %v1374, %v1368
    %v1693 = vpack.c.b16 %v1375, %v1369
    %v1694 = vpack.c.b16 %v1376, %v1370
    %v1695 = vpack.c.b16 %v1383, %v1377
    %v1696 = vpack.c.b16 %v1384, %v1378
    %v1697 = vpack.c.b16 %v1385, %v1379
    %v1698 = vpack.c.b16 %v1386, %v1380
    %v1699 = vpack.c.b16 %v1387, %v1381
    %v1700 = vpack.c.b16 %v1388, %v1382
    %v1701 = vpack.c.b16 %v1395, %v1389
    %v1702 = vpack.c.b16 %v1396, %v1390
    %v1703 = vpack.c.b16 %v1397, %v1391
    %v1704 = vpack.c.b16 %v1398, %v1392
    %v1705 = vpack.c.b16 %v1399, %v1393
    %v1706 = vpack.c.b16 %v1400, %v1394
    %v1707 = vpack.c.b16 %v1407, %v1401
    %v1708 = vpack.c.b16 %v1408, %v1402
    %v1709 = vpack.c.b16 %v1409, %v1403
    %v1710 = vpack.c.b16 %v1410, %v1404
    %v1711 = vpack.c.b16 %v1411, %v1405
    %v1712 = vpack.c.b16 %v1412, %v1406
    %v1713 = vpack.c.b16 %v1419, %v1413
    %v1714 = vpack.c.b16 %v1420, %v1414
    %v1715 = vpack.c.b16 %v1421, %v1415
    %v1716 = vpack.c.b16 %v1422, %v1416
    %v1717 = vpack.c.b16 %v1423, %v1417
    %v1718 = vpack.c.b16 %v1424, %v1418
    %v1719 = vpack.c.b16 %v1431, %v1425
    %v1720 = vpack.c.b16 %v1432, %v1426
    %v1721 = vpack.c.b16 %v1433, %v1427
    %v1722 = vpack.c.b16 %v1434, %v1428
    %v1723 = vpack.c.b16 %v1435, %v1429
    %v1724 = vpack.c.b16 %v1436, %v1430
    %2013 = vmatpush.bf16.msra.mxu0 %v1479
    %2014 = vmatpush.bf16.msra.mxu0 %v1473
    %2015 = vmatpush.bf16.msra.mxu0 %v1467
    %2016 = vmatpush.bf16.msra.mxu0 %v1461
    %2017 = vmatpush.bf16.msra.mxu0 %v1455
    %2018 = vmatpush.bf16.msra.mxu0 %v1449
    %2019 = vmatpush.bf16.msra.mxu0 %v1443
    %2020 = vmatpush.bf16.msra.mxu0 %v1437
    %2021 = vmatmul.bf16.gmra.mxu0 %v266
    %v2022 = vpop.f32.mrf.mxu0
    %v2023 = vadd.f32 %v561, %v2022
    %v2024 = vpop.f32.mrf.mxu0
    %2025 = vdwg.mxu0
    %2026 = vmatpush.bf16.msra.mxu0 %v1527
    %2027 = vmatpush.bf16.msra.mxu0 %v1521
    %2028 = vmatpush.bf16.msra.mxu0 %v1515
    %2029 = vmatpush.bf16.msra.mxu0 %v1509
    %2030 = vmatpush.bf16.msra.mxu0 %v1503
    %2031 = vmatpush.bf16.msra.mxu0 %v1497
    %2032 = vmatpush.bf16.msra.mxu0 %v1491
    %2033 = vmatpush.bf16.msra.mxu0 %v1485
    %2034 = vmatmul.bf16.gmra.mxu0 %v267
    %v2035 = vpop.f32.mrf.mxu0
    %v2036 = vadd.f32 %v2023, %v2035
    %v2037 = vpop.f32.mrf.mxu0
    %2038 = vdwg.mxu0
    %2039 = vmatpush.bf16.msra.mxu0 %v1575
    %2040 = vmatpush.bf16.msra.mxu0 %v1569
    %2041 = vmatpush.bf16.msra.mxu0 %v1563
    %2042 = vmatpush.bf16.msra.mxu0 %v1557
    %2043 = vmatpush.bf16.msra.mxu0 %v1551
    %2044 = vmatpush.bf16.msra.mxu0 %v1545
    %2045 = vmatpush.bf16.msra.mxu0 %v1539
    %2046 = vmatpush.bf16.msra.mxu0 %v1533
    %2047 = vmatmul.bf16.gmra.mxu0 %v268
    %v2048 = vpop.f32.mrf.mxu0
    %v2049 = vadd.f32 %v2036, %v2048
    %v2050 = vpop.f32.mrf.mxu0
    %2051 = vdwg.mxu0
    %2052 = vmatpush.bf16.msra.mxu0 %v1623
    %2053 = vmatpush.bf16.msra.mxu0 %v1617
    %2054 = vmatpush.bf16.msra.mxu0 %v1611
    %2055 = vmatpush.bf16.msra.mxu0 %v1605
    %2056 = vmatpush.bf16.msra.mxu0 %v1599
    %2057 = vmatpush.bf16.msra.mxu0 %v1593
    %2058 = vmatpush.bf16.msra.mxu0 %v1587
    %2059 = vmatpush.bf16.msra.mxu0 %v1581
    %2060 = vmatmul.bf16.gmra.mxu0 %v269
    %v2061 = vpop.f32.mrf.mxu0
    %v2062 = vadd.f32 %v2049, %v2061
    %v2063 = vpop.f32.mrf.mxu0
    %2064 = vdwg.mxu0
    %2065 = vmatpush.bf16.msra.mxu0 %v1671
    %2066 = vmatpush.bf16.msra.mxu0 %v1665
    %2067 = vmatpush.bf16.msra.mxu0 %v1659
    %2068 = vmatpush.bf16.msra.mxu0 %v1653
    %2069 = vmatpush.bf16.msra.mxu0 %v1647
    %2070 = vmatpush.bf16.msra.mxu0 %v1641
    %2071 = vmatpush.bf16.msra.mxu0 %v1635
    %2072 = vmatpush.bf16.msra.mxu0 %v1629
    %2073 = vmatmul.bf16.gmra.mxu0 %v270
    %v2074 = vpop.f32.mrf.mxu0
    %v2075 = vadd.f32 %v2062, %v2074
    %v2076 = vpop.f32.mrf.mxu0
    %2077 = vdwg.mxu0
    %2078 = vmatpush.bf16.msra.mxu0 %v1719
    %2079 = vmatpush.bf16.msra.mxu0 %v1713
    %2080 = vmatpush.bf16.msra.mxu0 %v1707
    %2081 = vmatpush.bf16.msra.mxu0 %v1701
    %2082 = vmatpush.bf16.msra.mxu0 %v1695
    %2083 = vmatpush.bf16.msra.mxu0 %v1689
    %2084 = vmatpush.bf16.msra.mxu0 %v1683
    %2085 = vmatpush.bf16.msra.mxu0 %v1677
    %2086 = vmatmul.bf16.gmra.mxu0 %v271
    %v2087 = vpop.f32.mrf.mxu0
    %v2088 = vadd.f32 %v2075, %v2087
    %v2089 = vpop.f32.mrf.mxu0
    %2090 = vdwg.mxu0
    %2091 = vmatpush.bf16.msra.mxu0 %v1480
    %2092 = vmatpush.bf16.msra.mxu0 %v1474
    %2093 = vmatpush.bf16.msra.mxu0 %v1468
    %2094 = vmatpush.bf16.msra.mxu0 %v1462
    %2095 = vmatpush.bf16.msra.mxu0 %v1456
    %2096 = vmatpush.bf16.msra.mxu0 %v1450
    %2097 = vmatpush.bf16.msra.mxu0 %v1444
    %2098 = vmatpush.bf16.msra.mxu0 %v1438
    %2099 = vmatmul.bf16.gmra.mxu0 %v266
    %v2100 = vpop.f32.mrf.mxu0
    %v2101 = vadd.f32 %v562, %v2100
    %v2102 = vpop.f32.mrf.mxu0
    %2103 = vdwg.mxu0
    %2104 = vmatpush.bf16.msra.mxu0 %v1528
    %2105 = vmatpush.bf16.msra.mxu0 %v1522
    %2106 = vmatpush.bf16.msra.mxu0 %v1516
    %2107 = vmatpush.bf16.msra.mxu0 %v1510
    %2108 = vmatpush.bf16.msra.mxu0 %v1504
    %2109 = vmatpush.bf16.msra.mxu0 %v1498
    %2110 = vmatpush.bf16.msra.mxu0 %v1492
    %2111 = vmatpush.bf16.msra.mxu0 %v1486
    %2112 = vmatmul.bf16.gmra.mxu0 %v267
    %v2113 = vpop.f32.mrf.mxu0
    %v2114 = vadd.f32 %v2101, %v2113
    %v2115 = vpop.f32.mrf.mxu0
    %2116 = vdwg.mxu0
    %2117 = vmatpush.bf16.msra.mxu0 %v1576
    %2118 = vmatpush.bf16.msra.mxu0 %v1570
    %2119 = vmatpush.bf16.msra.mxu0 %v1564
    %2120 = vmatpush.bf16.msra.mxu0 %v1558
    %2121 = vmatpush.bf16.msra.mxu0 %v1552
    %2122 = vmatpush.bf16.msra.mxu0 %v1546
    %2123 = vmatpush.bf16.msra.mxu0 %v1540
    %2124 = vmatpush.bf16.msra.mxu0 %v1534
    %2125 = vmatmul.bf16.gmra.mxu0 %v268
    %v2126 = vpop.f32.mrf.mxu0
    %v2127 = vadd.f32 %v2114, %v2126
    %v2128 = vpop.f32.mrf.mxu0
    %2129 = vdwg.mxu0
    %2130 = vmatpush.bf16.msra.mxu0 %v1624
    %2131 = vmatpush.bf16.msra.mxu0 %v1618
    %2132 = vmatpush.bf16.msra.mxu0 %v1612
    %2133 = vmatpush.bf16.msra.mxu0 %v1606
    %2134 = vmatpush.bf16.msra.mxu0 %v1600
    %2135 = vmatpush.bf16.msra.mxu0 %v1594
    %2136 = vmatpush.bf16.msra.mxu0 %v1588
    %2137 = vmatpush.bf16.msra.mxu0 %v1582
    %2138 = vmatmul.bf16.gmra.mxu0 %v269
    %v2139 = vpop.f32.mrf.mxu0
    %v2140 = vadd.f32 %v2127, %v2139
    %v2141 = vpop.f32.mrf.mxu0
    %2142 = vdwg.mxu0
    %2143 = vmatpush.bf16.msra.mxu0 %v1672
    %2144 = vmatpush.bf16.msra.mxu0 %v1666
    %2145 = vmatpush.bf16.msra.mxu0 %v1660
    %2146 = vmatpush.bf16.msra.mxu0 %v1654
    %2147 = vmatpush.bf16.msra.mxu0 %v1648
    %2148 = vmatpush.bf16.msra.mxu0 %v1642
    %2149 = vmatpush.bf16.msra.mxu0 %v1636
    %2150 = vmatpush.bf16.msra.mxu0 %v1630
    %2151 = vmatmul.bf16.gmra.mxu0 %v270
    %v2152 = vpop.f32.mrf.mxu0
    %v2153 = vadd.f32 %v2140, %v2152
    %v2154 = vpop.f32.mrf.mxu0
    %2155 = vdwg.mxu0
    %2156 = vmatpush.bf16.msra.mxu0 %v1720
    %2157 = vmatpush.bf16.msra.mxu0 %v1714
    %2158 = vmatpush.bf16.msra.mxu0 %v1708
    %2159 = vmatpush.bf16.msra.mxu0 %v1702
    %2160 = vmatpush.bf16.msra.mxu0 %v1696
    %2161 = vmatpush.bf16.msra.mxu0 %v1690
    %2162 = vmatpush.bf16.msra.mxu0 %v1684
    %2163 = vmatpush.bf16.msra.mxu0 %v1678
    %2164 = vmatmul.bf16.gmra.mxu0 %v271
    %v2165 = vpop.f32.mrf.mxu0
    %v2166 = vadd.f32 %v2153, %v2165
    %v2167 = vpop.f32.mrf.mxu0
    %2168 = vdwg.mxu0
    %2169 = vmatpush.bf16.msra.mxu0 %v1481
    %2170 = vmatpush.bf16.msra.mxu0 %v1475
    %2171 = vmatpush.bf16.msra.mxu0 %v1469
    %2172 = vmatpush.bf16.msra.mxu0 %v1463
    %2173 = vmatpush.bf16.msra.mxu0 %v1457
    %2174 = vmatpush.bf16.msra.mxu0 %v1451
    %2175 = vmatpush.bf16.msra.mxu0 %v1445
    %2176 = vmatpush.bf16.msra.mxu0 %v1439
    %2177 = vmatmul.bf16.gmra.mxu0 %v266
    %v2178 = vpop.f32.mrf.mxu0
    %v2179 = vadd.f32 %v563, %v2178
    %v2180 = vpop.f32.mrf.mxu0
    %2181 = vdwg.mxu0
    %2182 = vmatpush.bf16.msra.mxu0 %v1529
    %2183 = vmatpush.bf16.msra.mxu0 %v1523
    %2184 = vmatpush.bf16.msra.mxu0 %v1517
    %2185 = vmatpush.bf16.msra.mxu0 %v1511
    %2186 = vmatpush.bf16.msra.mxu0 %v1505
    %2187 = vmatpush.bf16.msra.mxu0 %v1499
    %2188 = vmatpush.bf16.msra.mxu0 %v1493
    %2189 = vmatpush.bf16.msra.mxu0 %v1487
    %2190 = vmatmul.bf16.gmra.mxu0 %v267
    %v2191 = vpop.f32.mrf.mxu0
    %v2192 = vadd.f32 %v2179, %v2191
    %v2193 = vpop.f32.mrf.mxu0
    %2194 = vdwg.mxu0
    %2195 = vmatpush.bf16.msra.mxu0 %v1577
    %2196 = vmatpush.bf16.msra.mxu0 %v1571
    %2197 = vmatpush.bf16.msra.mxu0 %v1565
    %2198 = vmatpush.bf16.msra.mxu0 %v1559
    %2199 = vmatpush.bf16.msra.mxu0 %v1553
    %2200 = vmatpush.bf16.msra.mxu0 %v1547
    %2201 = vmatpush.bf16.msra.mxu0 %v1541
    %2202 = vmatpush.bf16.msra.mxu0 %v1535
    %2203 = vmatmul.bf16.gmra.mxu0 %v268
    %v2204 = vpop.f32.mrf.mxu0
    %v2205 = vadd.f32 %v2192, %v2204
    %v2206 = vpop.f32.mrf.mxu0
    %2207 = vdwg.mxu0
    %2208 = vmatpush.bf16.msra.mxu0 %v1625
    %2209 = vmatpush.bf16.msra.mxu0 %v1619
    %2210 = vmatpush.bf16.msra.mxu0 %v1613
    %2211 = vmatpush.bf16.msra.mxu0 %v1607
    %2212 = vmatpush.bf16.msra.mxu0 %v1601
    %2213 = vmatpush.bf16.msra.mxu0 %v1595
    %2214 = vmatpush.bf16.msra.mxu0 %v1589
    %2215 = vmatpush.bf16.msra.mxu0 %v1583
    %2216 = vmatmul.bf16.gmra.mxu0 %v269
    %v2217 = vpop.f32.mrf.mxu0
    %v2218 = vadd.f32 %v2205, %v2217
    %v2219 = vpop.f32.mrf.mxu0
    %2220 = vdwg.mxu0
    %2221 = vmatpush.bf16.msra.mxu0 %v1673
    %2222 = vmatpush.bf16.msra.mxu0 %v1667
    %2223 = vmatpush.bf16.msra.mxu0 %v1661
    %2224 = vmatpush.bf16.msra.mxu0 %v1655
    %2225 = vmatpush.bf16.msra.mxu0 %v1649
    %2226 = vmatpush.bf16.msra.mxu0 %v1643
    %2227 = vmatpush.bf16.msra.mxu0 %v1637
    %2228 = vmatpush.bf16.msra.mxu0 %v1631
    %2229 = vmatmul.bf16.gmra.mxu0 %v270
    %v2230 = vpop.f32.mrf.mxu0
    %v2231 = vadd.f32 %v2218, %v2230
    %v2232 = vpop.f32.mrf.mxu0
    %2233 = vdwg.mxu0
    %2234 = vmatpush.bf16.msra.mxu0 %v1721
    %2235 = vmatpush.bf16.msra.mxu0 %v1715
    %2236 = vmatpush.bf16.msra.mxu0 %v1709
    %2237 = vmatpush.bf16.msra.mxu0 %v1703
    %2238 = vmatpush.bf16.msra.mxu0 %v1697
    %2239 = vmatpush.bf16.msra.mxu0 %v1691
    %2240 = vmatpush.bf16.msra.mxu0 %v1685
    %2241 = vmatpush.bf16.msra.mxu0 %v1679
    %2242 = vmatmul.bf16.gmra.mxu0 %v271
    %v2243 = vpop.f32.mrf.mxu0
    %v2244 = vadd.f32 %v2231, %v2243
    %v2245 = vpop.f32.mrf.mxu0
    %2246 = vdwg.mxu0
    %2247 = vmatpush.bf16.msra.mxu0 %v1482
    %2248 = vmatpush.bf16.msra.mxu0 %v1476
    %2249 = vmatpush.bf16.msra.mxu0 %v1470
    %2250 = vmatpush.bf16.msra.mxu0 %v1464
    %2251 = vmatpush.bf16.msra.mxu0 %v1458
    %2252 = vmatpush.bf16.msra.mxu0 %v1452
    %2253 = vmatpush.bf16.msra.mxu0 %v1446
    %2254 = vmatpush.bf16.msra.mxu0 %v1440
    %2255 = vmatmul.bf16.gmra.mxu0 %v266
    %v2256 = vpop.f32.mrf.mxu0
    %v2257 = vadd.f32 %v564, %v2256
    %v2258 = vpop.f32.mrf.mxu0
    %2259 = vdwg.mxu0
    %2260 = vmatpush.bf16.msra.mxu0 %v1530
    %2261 = vmatpush.bf16.msra.mxu0 %v1524
    %2262 = vmatpush.bf16.msra.mxu0 %v1518
    %2263 = vmatpush.bf16.msra.mxu0 %v1512
    %2264 = vmatpush.bf16.msra.mxu0 %v1506
    %2265 = vmatpush.bf16.msra.mxu0 %v1500
    %2266 = vmatpush.bf16.msra.mxu0 %v1494
    %2267 = vmatpush.bf16.msra.mxu0 %v1488
    %2268 = vmatmul.bf16.gmra.mxu0 %v267
    %v2269 = vpop.f32.mrf.mxu0
    %v2270 = vadd.f32 %v2257, %v2269
    %v2271 = vpop.f32.mrf.mxu0
    %2272 = vdwg.mxu0
    %2273 = vmatpush.bf16.msra.mxu0 %v1578
    %2274 = vmatpush.bf16.msra.mxu0 %v1572
    %2275 = vmatpush.bf16.msra.mxu0 %v1566
    %2276 = vmatpush.bf16.msra.mxu0 %v1560
    %2277 = vmatpush.bf16.msra.mxu0 %v1554
    %2278 = vmatpush.bf16.msra.mxu0 %v1548
    %2279 = vmatpush.bf16.msra.mxu0 %v1542
    %2280 = vmatpush.bf16.msra.mxu0 %v1536
    %2281 = vmatmul.bf16.gmra.mxu0 %v268
    %v2282 = vpop.f32.mrf.mxu0
    %v2283 = vadd.f32 %v2270, %v2282
    %v2284 = vpop.f32.mrf.mxu0
    %2285 = vdwg.mxu0
    %2286 = vmatpush.bf16.msra.mxu0 %v1626
    %2287 = vmatpush.bf16.msra.mxu0 %v1620
    %2288 = vmatpush.bf16.msra.mxu0 %v1614
    %2289 = vmatpush.bf16.msra.mxu0 %v1608
    %2290 = vmatpush.bf16.msra.mxu0 %v1602
    %2291 = vmatpush.bf16.msra.mxu0 %v1596
    %2292 = vmatpush.bf16.msra.mxu0 %v1590
    %2293 = vmatpush.bf16.msra.mxu0 %v1584
    %2294 = vmatmul.bf16.gmra.mxu0 %v269
    %v2295 = vpop.f32.mrf.mxu0
    %v2296 = vadd.f32 %v2283, %v2295
    %v2297 = vpop.f32.mrf.mxu0
    %2298 = vdwg.mxu0
    %2299 = vmatpush.bf16.msra.mxu0 %v1674
    %2300 = vmatpush.bf16.msra.mxu0 %v1668
    %2301 = vmatpush.bf16.msra.mxu0 %v1662
    %2302 = vmatpush.bf16.msra.mxu0 %v1656
    %2303 = vmatpush.bf16.msra.mxu0 %v1650
    %2304 = vmatpush.bf16.msra.mxu0 %v1644
    %2305 = vmatpush.bf16.msra.mxu0 %v1638
    %2306 = vmatpush.bf16.msra.mxu0 %v1632
    %2307 = vmatmul.bf16.gmra.mxu0 %v270
    %v2308 = vpop.f32.mrf.mxu0
    %v2309 = vadd.f32 %v2296, %v2308
    %v2310 = vpop.f32.mrf.mxu0
    %2311 = vdwg.mxu0
    %2312 = vmatpush.bf16.msra.mxu0 %v1722
    %2313 = vmatpush.bf16.msra.mxu0 %v1716
    %2314 = vmatpush.bf16.msra.mxu0 %v1710
    %2315 = vmatpush.bf16.msra.mxu0 %v1704
    %2316 = vmatpush.bf16.msra.mxu0 %v1698
    %2317 = vmatpush.bf16.msra.mxu0 %v1692
    %2318 = vmatpush.bf16.msra.mxu0 %v1686
    %2319 = vmatpush.bf16.msra.mxu0 %v1680
    %2320 = vmatmul.bf16.gmra.mxu0 %v271
    %v2321 = vpop.f32.mrf.mxu0
    %v2322 = vadd.f32 %v2309, %v2321
    %v2323 = vpop.f32.mrf.mxu0
    %2324 = vdwg.mxu0
    %2325 = vmatpush.bf16.msra.mxu0 %v1483
    %2326 = vmatpush.bf16.msra.mxu0 %v1477
    %2327 = vmatpush.bf16.msra.mxu0 %v1471
    %2328 = vmatpush.bf16.msra.mxu0 %v1465
    %2329 = vmatpush.bf16.msra.mxu0 %v1459
    %2330 = vmatpush.bf16.msra.mxu0 %v1453
    %2331 = vmatpush.bf16.msra.mxu0 %v1447
    %2332 = vmatpush.bf16.msra.mxu0 %v1441
    %2333 = vmatmul.bf16.gmra.mxu0 %v266
    %v2334 = vpop.f32.mrf.mxu0
    %v2335 = vadd.f32 %v565, %v2334
    %v2336 = vpop.f32.mrf.mxu0
    %2337 = vdwg.mxu0
    %2338 = vmatpush.bf16.msra.mxu0 %v1531
    %2339 = vmatpush.bf16.msra.mxu0 %v1525
    %2340 = vmatpush.bf16.msra.mxu0 %v1519
    %2341 = vmatpush.bf16.msra.mxu0 %v1513
    %2342 = vmatpush.bf16.msra.mxu0 %v1507
    %2343 = vmatpush.bf16.msra.mxu0 %v1501
    %2344 = vmatpush.bf16.msra.mxu0 %v1495
    %2345 = vmatpush.bf16.msra.mxu0 %v1489
    %2346 = vmatmul.bf16.gmra.mxu0 %v267
    %v2347 = vpop.f32.mrf.mxu0
    %v2348 = vadd.f32 %v2335, %v2347
    %v2349 = vpop.f32.mrf.mxu0
    %2350 = vdwg.mxu0
    %2351 = vmatpush.bf16.msra.mxu0 %v1579
    %2352 = vmatpush.bf16.msra.mxu0 %v1573
    %2353 = vmatpush.bf16.msra.mxu0 %v1567
    %2354 = vmatpush.bf16.msra.mxu0 %v1561
    %2355 = vmatpush.bf16.msra.mxu0 %v1555
    %2356 = vmatpush.bf16.msra.mxu0 %v1549
    %2357 = vmatpush.bf16.msra.mxu0 %v1543
    %2358 = vmatpush.bf16.msra.mxu0 %v1537
    %2359 = vmatmul.bf16.gmra.mxu0 %v268
    %v2360 = vpop.f32.mrf.mxu0
    %v2361 = vadd.f32 %v2348, %v2360
    %v2362 = vpop.f32.mrf.mxu0
    %2363 = vdwg.mxu0
    %2364 = vmatpush.bf16.msra.mxu0 %v1627
    %2365 = vmatpush.bf16.msra.mxu0 %v1621
    %2366 = vmatpush.bf16.msra.mxu0 %v1615
    %2367 = vmatpush.bf16.msra.mxu0 %v1609
    %2368 = vmatpush.bf16.msra.mxu0 %v1603
    %2369 = vmatpush.bf16.msra.mxu0 %v1597
    %2370 = vmatpush.bf16.msra.mxu0 %v1591
    %2371 = vmatpush.bf16.msra.mxu0 %v1585
    %2372 = vmatmul.bf16.gmra.mxu0 %v269
    %v2373 = vpop.f32.mrf.mxu0
    %v2374 = vadd.f32 %v2361, %v2373
    %v2375 = vpop.f32.mrf.mxu0
    %2376 = vdwg.mxu0
    %2377 = vmatpush.bf16.msra.mxu0 %v1675
    %2378 = vmatpush.bf16.msra.mxu0 %v1669
    %2379 = vmatpush.bf16.msra.mxu0 %v1663
    %2380 = vmatpush.bf16.msra.mxu0 %v1657
    %2381 = vmatpush.bf16.msra.mxu0 %v1651
    %2382 = vmatpush.bf16.msra.mxu0 %v1645
    %2383 = vmatpush.bf16.msra.mxu0 %v1639
    %2384 = vmatpush.bf16.msra.mxu0 %v1633
    %2385 = vmatmul.bf16.gmra.mxu0 %v270
    %v2386 = vpop.f32.mrf.mxu0
    %v2387 = vadd.f32 %v2374, %v2386
    %v2388 = vpop.f32.mrf.mxu0
    %2389 = vdwg.mxu0
    %2390 = vmatpush.bf16.msra.mxu0 %v1723
    %2391 = vmatpush.bf16.msra.mxu0 %v1717
    %2392 = vmatpush.bf16.msra.mxu0 %v1711
    %2393 = vmatpush.bf16.msra.mxu0 %v1705
    %2394 = vmatpush.bf16.msra.mxu0 %v1699
    %2395 = vmatpush.bf16.msra.mxu0 %v1693
    %2396 = vmatpush.bf16.msra.mxu0 %v1687
    %2397 = vmatpush.bf16.msra.mxu0 %v1681
    %2398 = vmatmul.bf16.gmra.mxu0 %v271
    %v2399 = vpop.f32.mrf.mxu0
    %v2400 = vadd.f32 %v2387, %v2399
    %v2401 = vpop.f32.mrf.mxu0
    %2402 = vdwg.mxu0
    %2403 = vmatpush.bf16.msra.mxu0 %v1484
    %2404 = vmatpush.bf16.msra.mxu0 %v1478
    %2405 = vmatpush.bf16.msra.mxu0 %v1472
    %2406 = vmatpush.bf16.msra.mxu0 %v1466
    %2407 = vmatpush.bf16.msra.mxu0 %v1460
    %2408 = vmatpush.bf16.msra.mxu0 %v1454
    %2409 = vmatpush.bf16.msra.mxu0 %v1448
    %2410 = vmatpush.bf16.msra.mxu0 %v1442
    %2411 = vmatmul.bf16.gmra.mxu0 %v266
    %v2412 = vpop.f32.mrf.mxu0
    %v2413 = vadd.f32 %v566, %v2412
    %v2414 = vpop.f32.mrf.mxu0
    %2415 = vdwg.mxu0
    %2416 = vmatpush.bf16.msra.mxu0 %v1532
    %2417 = vmatpush.bf16.msra.mxu0 %v1526
    %2418 = vmatpush.bf16.msra.mxu0 %v1520
    %2419 = vmatpush.bf16.msra.mxu0 %v1514
    %2420 = vmatpush.bf16.msra.mxu0 %v1508
    %2421 = vmatpush.bf16.msra.mxu0 %v1502
    %2422 = vmatpush.bf16.msra.mxu0 %v1496
    %2423 = vmatpush.bf16.msra.mxu0 %v1490
    %2424 = vmatmul.bf16.gmra.mxu0 %v267
    %v2425 = vpop.f32.mrf.mxu0
    %v2426 = vadd.f32 %v2413, %v2425
    %v2427 = vpop.f32.mrf.mxu0
    %2428 = vdwg.mxu0
    %2429 = vmatpush.bf16.msra.mxu0 %v1580
    %2430 = vmatpush.bf16.msra.mxu0 %v1574
    %2431 = vmatpush.bf16.msra.mxu0 %v1568
    %2432 = vmatpush.bf16.msra.mxu0 %v1562
    %2433 = vmatpush.bf16.msra.mxu0 %v1556
    %2434 = vmatpush.bf16.msra.mxu0 %v1550
    %2435 = vmatpush.bf16.msra.mxu0 %v1544
    %2436 = vmatpush.bf16.msra.mxu0 %v1538
    %2437 = vmatmul.bf16.gmra.mxu0 %v268
    %v2438 = vpop.f32.mrf.mxu0
    %v2439 = vadd.f32 %v2426, %v2438
    %v2440 = vpop.f32.mrf.mxu0
    %2441 = vdwg.mxu0
    %2442 = vmatpush.bf16.msra.mxu0 %v1628
    %2443 = vmatpush.bf16.msra.mxu0 %v1622
    %2444 = vmatpush.bf16.msra.mxu0 %v1616
    %2445 = vmatpush.bf16.msra.mxu0 %v1610
    %2446 = vmatpush.bf16.msra.mxu0 %v1604
    %2447 = vmatpush.bf16.msra.mxu0 %v1598
    %2448 = vmatpush.bf16.msra.mxu0 %v1592
    %2449 = vmatpush.bf16.msra.mxu0 %v1586
    %2450 = vmatmul.bf16.gmra.mxu0 %v269
    %v2451 = vpop.f32.mrf.mxu0
    %v2452 = vadd.f32 %v2439, %v2451
    %v2453 = vpop.f32.mrf.mxu0
    %2454 = vdwg.mxu0
    %2455 = vmatpush.bf16.msra.mxu0 %v1676
    %2456 = vmatpush.bf16.msra.mxu0 %v1670
    %2457 = vmatpush.bf16.msra.mxu0 %v1664
    %2458 = vmatpush.bf16.msra.mxu0 %v1658
    %2459 = vmatpush.bf16.msra.mxu0 %v1652
    %2460 = vmatpush.bf16.msra.mxu0 %v1646
    %2461 = vmatpush.bf16.msra.mxu0 %v1640
    %2462 = vmatpush.bf16.msra.mxu0 %v1634
    %2463 = vmatmul.bf16.gmra.mxu0 %v270
    %v2464 = vpop.f32.mrf.mxu0
    %v2465 = vadd.f32 %v2452, %v2464
    %v2466 = vpop.f32.mrf.mxu0
    %2467 = vdwg.mxu0
    %2468 = vmatpush.bf16.msra.mxu0 %v1724
    %2469 = vmatpush.bf16.msra.mxu0 %v1718
    %2470 = vmatpush.bf16.msra.mxu0 %v1712
    %2471 = vmatpush.bf16.msra.mxu0 %v1706
    %2472 = vmatpush.bf16.msra.mxu0 %v1700
    %2473 = vmatpush.bf16.msra.mxu0 %v1694
    %2474 = vmatpush.bf16.msra.mxu0 %v1688
    %2475 = vmatpush.bf16.msra.mxu0 %v1682
    %2476 = vmatmul.bf16.gmra.mxu0 %v271
    %v2477 = vpop.f32.mrf.mxu0
    %v2478 = vadd.f32 %v2465, %v2477
    %v2479 = vpop.f32.mrf.mxu0
    %2480 = vdwg.mxu0
    %v2481 = vmax.f32 %v2088, 0.0
    %v2482 = vmax.f32 %v2166, 0.0
    %v2483 = vmax.f32 %v2244, 0.0
    %v2484 = vmax.f32 %v2322, 0.0
    %v2485 = vmax.f32 %v2400, 0.0
    %v2486 = vmax.f32 %v2478, 0.0
    %v2487 = vpack.c.bf16 %v2481, %v2481
    %v2488 = vpack.c.bf16 %v2482, %v2482
    %v2489 = vpack.c.bf16 %v2483, %v2483
    %v2490 = vpack.c.bf16 %v2484, %v2484
    %v2491 = vpack.c.bf16 %v2485, %v2485
    %v2492 = vpack.c.bf16 %v2486, %v2486
    %v2493 = vld [vmem:[#allocation7] sm:$0xff]
    %v2494 = vld [vmem:[#allocation7 + $0xc] sm:$0xff]
    %v2495 = vld [vmem:[#allocation7 + $0x18] sm:$0xff]
    %v2496 = vld [vmem:[#allocation7 + $0x24] sm:$0xff]
    %v2497 = vld [vmem:[#allocation7 + $0x30] sm:$0xff]
    %v2498 = vld [vmem:[#allocation7 + $0x3c] sm:$0xff]
    %v2499 = vld [vmem:[#allocation7 + $0x48] sm:$0xff]
    %v2500 = vld [vmem:[#allocation7 + $0x54] sm:$0xff]
    %v2501 = vld [vmem:[#allocation7 + $0x60] sm:$0xff]
    %v2502 = vld [vmem:[#allocation7 + $0x6c] sm:$0xff]
    %v2503 = vld [vmem:[#allocation7 + $0x78] sm:$0xff]
    %v2504 = vld [vmem:[#allocation7 + $0x84] sm:$0xff]
    %v2505 = vld [vmem:[#allocation7 + $0x90] sm:$0xff]
    %v2506 = vld [vmem:[#allocation7 + $0x9c] sm:$0xff]
    %v2507 = vld [vmem:[#allocation7 + $0xa8] sm:$0xff]
    %v2508 = vld [vmem:[#allocation7 + $0xb4] sm:$0xff]
    %v2509 = vld [vmem:[#allocation7 + $0xc0] sm:$0xff]
    %v2510 = vld [vmem:[#allocation7 + $0xcc] sm:$0xff]
    %v2511 = vld [vmem:[#allocation7 + $0xd8] sm:$0xff]
    %v2512 = vld [vmem:[#allocation7 + $0xe4] sm:$0xff]
    %v2513 = vld [vmem:[#allocation7 + $0xf0] sm:$0xff]
    %v2514 = vld [vmem:[#allocation7 + $0xfc] sm:$0xff]
    %v2515 = vld [vmem:[#allocation7 + $0x108] sm:$0xff]
    %v2516 = vld [vmem:[#allocation7 + $0x114] sm:$0xff]
    %v2517 = vld [vmem:[#allocation7 + $0x120] sm:$0xff]
    %v2518 = vld [vmem:[#allocation7 + $0x12c] sm:$0xff]
    %v2519 = vld [vmem:[#allocation7 + $0x138] sm:$0xff]
    %v2520 = vld [vmem:[#allocation7 + $0x144] sm:$0xff]
    %v2521 = vld [vmem:[#allocation7 + $0x150] sm:$0xff]
    %v2522 = vld [vmem:[#allocation7 + $0x15c] sm:$0xff]
    %v2523 = vld [vmem:[#allocation7 + $0x168] sm:$0xff]
    %v2524 = vld [vmem:[#allocation7 + $0x174] sm:$0xff]
    %v2525 = vld [vmem:[#allocation7 + $0x180] sm:$0xff]
    %v2526 = vld [vmem:[#allocation7 + $0x18c] sm:$0xff]
    %v2527 = vld [vmem:[#allocation7 + $0x198] sm:$0xff]
    %v2528 = vld [vmem:[#allocation7 + $0x1a4] sm:$0xff]
    %v2529 = vld [vmem:[#allocation7 + $0x1b0] sm:$0xff]
    %v2530 = vld [vmem:[#allocation7 + $0x1bc] sm:$0xff]
    %v2531 = vld [vmem:[#allocation7 + $0x1c8] sm:$0xff]
    %v2532 = vld [vmem:[#allocation7 + $0x1d4] sm:$0xff]
    %v2533 = vld [vmem:[#allocation7 + $0x1e0] sm:$0xff]
    %v2534 = vld [vmem:[#allocation7 + $0x1ec] sm:$0xff]
    %v2535 = vld [vmem:[#allocation7 + $0x1f8] sm:$0xff]
    %v2536 = vld [vmem:[#allocation7 + $0x204] sm:$0xff]
    %v2537 = vld [vmem:[#allocation7 + $0x210] sm:$0xff]
    %v2538 = vld [vmem:[#allocation7 + $0x21c] sm:$0xff]
    %v2539 = vld [vmem:[#allocation7 + $0x228] sm:$0xff]
    %v2540 = vld [vmem:[#allocation7 + $0x234] sm:$0xff]
    %v2541 = vld [vmem:[#allocation7 + $0x240] sm:$0xff]
    %v2542 = vld [vmem:[#allocation7 + $0x24c] sm:$0xff]
    %v2543 = vld [vmem:[#allocation7 + $0x258] sm:$0xff]
    %v2544 = vld [vmem:[#allocation7 + $0x264] sm:$0xff]
    %v2545 = vld [vmem:[#allocation7 + $0x270] sm:$0xff]
    %v2546 = vld [vmem:[#allocation7 + $0x27c] sm:$0xff]
    %v2547 = vld [vmem:[#allocation7 + $0x288] sm:$0xff]
    %v2548 = vld [vmem:[#allocation7 + $0x294] sm:$0xff]
    %v2549 = vld [vmem:[#allocation7 + $0x2a0] sm:$0xff]
    %v2550 = vld [vmem:[#allocation7 + $0x2ac] sm:$0xff]
    %v2551 = vld [vmem:[#allocation7 + $0x2b8] sm:$0xff]
    %v2552 = vld [vmem:[#allocation7 + $0x2c4] sm:$0xff]
    %v2553 = vld [vmem:[#allocation7 + $0x2d0] sm:$0xff]
    %v2554 = vld [vmem:[#allocation7 + $0x2dc] sm:$0xff]
    %v2555 = vld [vmem:[#allocation7 + $0x2e8] sm:$0xff]
    %v2556 = vld [vmem:[#allocation7 + $0x2f4] sm:$0xff]
    %v2557 = vld [vmem:[#allocation7 + $0x300] sm:$0xff]
    %v2558 = vld [vmem:[#allocation7 + $0x30c] sm:$0xff]
    %v2559 = vld [vmem:[#allocation7 + $0x318] sm:$0xff]
    %v2560 = vld [vmem:[#allocation7 + $0x324] sm:$0xff]
    %v2561 = vld [vmem:[#allocation7 + $0x330] sm:$0xff]
    %v2562 = vld [vmem:[#allocation7 + $0x33c] sm:$0xff]
    %v2563 = vld [vmem:[#allocation7 + $0x348] sm:$0xff]
    %v2564 = vld [vmem:[#allocation7 + $0x354] sm:$0xff]
    %v2565 = vld [vmem:[#allocation7 + $0x360] sm:$0xff]
    %v2566 = vld [vmem:[#allocation7 + $0x36c] sm:$0xff]
    %v2567 = vld [vmem:[#allocation7 + $0x378] sm:$0xff]
    %v2568 = vld [vmem:[#allocation7 + $0x384] sm:$0xff]
    %v2569 = vld [vmem:[#allocation7 + $0x390] sm:$0xff]
    %v2570 = vld [vmem:[#allocation7 + $0x39c] sm:$0xff]
    %v2571 = vld [vmem:[#allocation7 + $0x3a8] sm:$0xff]
    %v2572 = vld [vmem:[#allocation7 + $0x3b4] sm:$0xff]
    %v2573 = vld [vmem:[#allocation7 + $0x3c0] sm:$0xff]
    %v2574 = vld [vmem:[#allocation7 + $0x3cc] sm:$0xff]
    %v2575 = vld [vmem:[#allocation7 + $0x3d8] sm:$0xff]
    %v2576 = vld [vmem:[#allocation7 + $0x3e4] sm:$0xff]
    %v2577 = vld [vmem:[#allocation7 + $0x3f0] sm:$0xff]
    %v2578 = vld [vmem:[#allocation7 + $0x3fc] sm:$0xff]
    %v2579 = vld [vmem:[#allocation7 + $0x408] sm:$0xff]
    %v2580 = vld [vmem:[#allocation7 + $0x414] sm:$0xff]
    %v2581 = vld [vmem:[#allocation7 + $0x420] sm:$0xff]
    %v2582 = vld [vmem:[#allocation7 + $0x42c] sm:$0xff]
    %v2583 = vld [vmem:[#allocation7 + $0x438] sm:$0xff]
    %v2584 = vld [vmem:[#allocation7 + $0x444] sm:$0xff]
    %v2585 = vld [vmem:[#allocation7 + $0x450] sm:$0xff]
    %v2586 = vld [vmem:[#allocation7 + $0x45c] sm:$0xff]
    %v2587 = vld [vmem:[#allocation7 + $0x468] sm:$0xff]
    %v2588 = vld [vmem:[#allocation7 + $0x474] sm:$0xff]
    %v2590 = vperm.slane %v120, 0
    %v2591 = vperm.slane %v120, 1
    %v2690 = vunpack.c.l.b16 %v2493
    %v2691 = vunpack.c.h.b16 %v2493
    %v2692 = vunpack.c.l.b16 %v2494
    %v2693 = vunpack.c.h.b16 %v2494
    %v2694 = vunpack.c.l.b16 %v2495
    %v2695 = vunpack.c.h.b16 %v2495
    %v2696 = vunpack.c.l.b16 %v2496
    %v2697 = vunpack.c.h.b16 %v2496
    %v2698 = vunpack.c.l.b16 %v2497
    %v2699 = vunpack.c.h.b16 %v2497
    %v2700 = vunpack.c.l.b16 %v2498
    %v2701 = vunpack.c.h.b16 %v2498
    %v2702 = vunpack.c.l.b16 %v2499
    %v2703 = vunpack.c.h.b16 %v2499
    %v2704 = vunpack.c.l.b16 %v2500
    %v2705 = vunpack.c.h.b16 %v2500
    %v2706 = vunpack.c.l.b16 %v2501
    %v2707 = vunpack.c.h.b16 %v2501
    %v2708 = vunpack.c.l.b16 %v2502
    %v2709 = vunpack.c.h.b16 %v2502
    %v2710 = vunpack.c.l.b16 %v2503
    %v2711 = vunpack.c.h.b16 %v2503
    %v2712 = vunpack.c.l.b16 %v2504
    %v2713 = vunpack.c.h.b16 %v2504
    %v2714 = vunpack.c.l.b16 %v2505
    %v2715 = vunpack.c.h.b16 %v2505
    %v2716 = vunpack.c.l.b16 %v2506
    %v2717 = vunpack.c.h.b16 %v2506
    %v2718 = vunpack.c.l.b16 %v2507
    %v2719 = vunpack.c.h.b16 %v2507
    %v2720 = vunpack.c.l.b16 %v2508
    %v2721 = vunpack.c.h.b16 %v2508
    %v2722 = vunpack.c.l.b16 %v2509
    %v2723 = vunpack.c.h.b16 %v2509
    %v2724 = vunpack.c.l.b16 %v2510
    %v2725 = vunpack.c.h.b16 %v2510
    %v2726 = vunpack.c.l.b16 %v2511
    %v2727 = vunpack.c.h.b16 %v2511
    %v2728 = vunpack.c.l.b16 %v2512
    %v2729 = vunpack.c.h.b16 %v2512
    %v2730 = vunpack.c.l.b16 %v2513
    %v2731 = vunpack.c.h.b16 %v2513
    %v2732 = vunpack.c.l.b16 %v2514
    %v2733 = vunpack.c.h.b16 %v2514
    %v2734 = vunpack.c.l.b16 %v2515
    %v2735 = vunpack.c.h.b16 %v2515
    %v2736 = vunpack.c.l.b16 %v2516
    %v2737 = vunpack.c.h.b16 %v2516
    %v2738 = vunpack.c.l.b16 %v2517
    %v2739 = vunpack.c.h.b16 %v2517
    %v2740 = vunpack.c.l.b16 %v2518
    %v2741 = vunpack.c.h.b16 %v2518
    %v2742 = vunpack.c.l.b16 %v2519
    %v2743 = vunpack.c.h.b16 %v2519
    %v2744 = vunpack.c.l.b16 %v2520
    %v2745 = vunpack.c.h.b16 %v2520
    %v2746 = vunpack.c.l.b16 %v2521
    %v2747 = vunpack.c.h.b16 %v2521
    %v2748 = vunpack.c.l.b16 %v2522
    %v2749 = vunpack.c.h.b16 %v2522
    %v2750 = vunpack.c.l.b16 %v2523
    %v2751 = vunpack.c.h.b16 %v2523
    %v2752 = vunpack.c.l.b16 %v2524
    %v2753 = vunpack.c.h.b16 %v2524
    %v2754 = vunpack.c.l.b16 %v2525
    %v2755 = vunpack.c.h.b16 %v2525
    %v2756 = vunpack.c.l.b16 %v2526
    %v2757 = vunpack.c.h.b16 %v2526
    %v2758 = vunpack.c.l.b16 %v2527
    %v2759 = vunpack.c.h.b16 %v2527
    %v2760 = vunpack.c.l.b16 %v2528
    %v2761 = vunpack.c.h.b16 %v2528
    %v2762 = vunpack.c.l.b16 %v2529
    %v2763 = vunpack.c.h.b16 %v2529
    %v2764 = vunpack.c.l.b16 %v2530
    %v2765 = vunpack.c.h.b16 %v2530
    %v2766 = vunpack.c.l.b16 %v2531
    %v2767 = vunpack.c.h.b16 %v2531
    %v2768 = vunpack.c.l.b16 %v2532
    %v2769 = vunpack.c.h.b16 %v2532
    %v2770 = vunpack.c.l.b16 %v2533
    %v2771 = vunpack.c.h.b16 %v2533
    %v2772 = vunpack.c.l.b16 %v2534
    %v2773 = vunpack.c.h.b16 %v2534
    %v2774 = vunpack.c.l.b16 %v2535
    %v2775 = vunpack.c.h.b16 %v2535
    %v2776 = vunpack.c.l.b16 %v2536
    %v2777 = vunpack.c.h.b16 %v2536
    %v2778 = vunpack.c.l.b16 %v2537
    %v2779 = vunpack.c.h.b16 %v2537
    %v2780 = vunpack.c.l.b16 %v2538
    %v2781 = vunpack.c.h.b16 %v2538
    %v2782 = vunpack.c.l.b16 %v2539
    %v2783 = vunpack.c.h.b16 %v2539
    %v2784 = vunpack.c.l.b16 %v2540
    %v2785 = vunpack.c.h.b16 %v2540
    %v2786 = vunpack.c.l.b16 %v2541
    %v2787 = vunpack.c.h.b16 %v2541
    %v2788 = vunpack.c.l.b16 %v2542
    %v2789 = vunpack.c.h.b16 %v2542
    %v2790 = vunpack.c.l.b16 %v2543
    %v2791 = vunpack.c.h.b16 %v2543
    %v2792 = vunpack.c.l.b16 %v2544
    %v2793 = vunpack.c.h.b16 %v2544
    %v2794 = vunpack.c.l.b16 %v2545
    %v2795 = vunpack.c.h.b16 %v2545
    %v2796 = vunpack.c.l.b16 %v2546
    %v2797 = vunpack.c.h.b16 %v2546
    %v2798 = vunpack.c.l.b16 %v2547
    %v2799 = vunpack.c.h.b16 %v2547
    %v2800 = vunpack.c.l.b16 %v2548
    %v2801 = vunpack.c.h.b16 %v2548
    %v2802 = vunpack.c.l.b16 %v2549
    %v2803 = vunpack.c.h.b16 %v2549
    %v2804 = vunpack.c.l.b16 %v2550
    %v2805 = vunpack.c.h.b16 %v2550
    %v2806 = vunpack.c.l.b16 %v2551
    %v2807 = vunpack.c.h.b16 %v2551
    %v2808 = vunpack.c.l.b16 %v2552
    %v2809 = vunpack.c.h.b16 %v2552
    %v2810 = vunpack.c.l.b16 %v2553
    %v2811 = vunpack.c.h.b16 %v2553
    %v2812 = vunpack.c.l.b16 %v2554
    %v2813 = vunpack.c.h.b16 %v2554
    %v2814 = vunpack.c.l.b16 %v2555
    %v2815 = vunpack.c.h.b16 %v2555
    %v2816 = vunpack.c.l.b16 %v2556
    %v2817 = vunpack.c.h.b16 %v2556
    %v2818 = vunpack.c.l.b16 %v2557
    %v2819 = vunpack.c.h.b16 %v2557
    %v2820 = vunpack.c.l.b16 %v2558
    %v2821 = vunpack.c.h.b16 %v2558
    %v2822 = vunpack.c.l.b16 %v2559
    %v2823 = vunpack.c.h.b16 %v2559
    %v2824 = vunpack.c.l.b16 %v2560
    %v2825 = vunpack.c.h.b16 %v2560
    %v2826 = vunpack.c.l.b16 %v2561
    %v2827 = vunpack.c.h.b16 %v2561
    %v2828 = vunpack.c.l.b16 %v2562
    %v2829 = vunpack.c.h.b16 %v2562
    %v2830 = vunpack.c.l.b16 %v2563
    %v2831 = vunpack.c.h.b16 %v2563
    %v2832 = vunpack.c.l.b16 %v2564
    %v2833 = vunpack.c.h.b16 %v2564
    %v2834 = vunpack.c.l.b16 %v2565
    %v2835 = vunpack.c.h.b16 %v2565
    %v2836 = vunpack.c.l.b16 %v2566
    %v2837 = vunpack.c.h.b16 %v2566
    %v2838 = vunpack.c.l.b16 %v2567
    %v2839 = vunpack.c.h.b16 %v2567
    %v2840 = vunpack.c.l.b16 %v2568
    %v2841 = vunpack.c.h.b16 %v2568
    %v2842 = vunpack.c.l.b16 %v2569
    %v2843 = vunpack.c.h.b16 %v2569
    %v2844 = vunpack.c.l.b16 %v2570
    %v2845 = vunpack.c.h.b16 %v2570
    %v2846 = vunpack.c.l.b16 %v2571
    %v2847 = vunpack.c.h.b16 %v2571
    %v2848 = vunpack.c.l.b16 %v2572
    %v2849 = vunpack.c.h.b16 %v2572
    %v2850 = vunpack.c.l.b16 %v2573
    %v2851 = vunpack.c.h.b16 %v2573
    %v2852 = vunpack.c.l.b16 %v2574
    %v2853 = vunpack.c.h.b16 %v2574
    %v2854 = vunpack.c.l.b16 %v2575
    %v2855 = vunpack.c.h.b16 %v2575
    %v2856 = vunpack.c.l.b16 %v2576
    %v2857 = vunpack.c.h.b16 %v2576
    %v2858 = vunpack.c.l.b16 %v2577
    %v2859 = vunpack.c.h.b16 %v2577
    %v2860 = vunpack.c.l.b16 %v2578
    %v2861 = vunpack.c.h.b16 %v2578
    %v2862 = vunpack.c.l.b16 %v2579
    %v2863 = vunpack.c.h.b16 %v2579
    %v2864 = vunpack.c.l.b16 %v2580
    %v2865 = vunpack.c.h.b16 %v2580
    %v2866 = vunpack.c.l.b16 %v2581
    %v2867 = vunpack.c.h.b16 %v2581
    %v2868 = vunpack.c.l.b16 %v2582
    %v2869 = vunpack.c.h.b16 %v2582
    %v2870 = vunpack.c.l.b16 %v2583
    %v2871 = vunpack.c.h.b16 %v2583
    %v2872 = vunpack.c.l.b16 %v2584
    %v2873 = vunpack.c.h.b16 %v2584
    %v2874 = vunpack.c.l.b16 %v2585
    %v2875 = vunpack.c.h.b16 %v2585
    %v2876 = vunpack.c.l.b16 %v2586
    %v2877 = vunpack.c.h.b16 %v2586
    %v2878 = vunpack.c.l.b16 %v2587
    %v2879 = vunpack.c.h.b16 %v2587
    %v2880 = vunpack.c.l.b16 %v2588
    %v2881 = vunpack.c.h.b16 %v2588
    %v2882 = vpack.c.b16 %v2692, %v2690
    %v2883 = vpack.c.b16 %v2693, %v2691
    %v2884 = vpack.c.b16 %v2696, %v2694
    %v2885 = vpack.c.b16 %v2697, %v2695
    %v2886 = vpack.c.b16 %v2700, %v2698
    %v2887 = vpack.c.b16 %v2701, %v2699
    %v2888 = vpack.c.b16 %v2704, %v2702
    %v2889 = vpack.c.b16 %v2705, %v2703
    %v2890 = vpack.c.b16 %v2708, %v2706
    %v2891 = vpack.c.b16 %v2709, %v2707
    %v2892 = vpack.c.b16 %v2712, %v2710
    %v2893 = vpack.c.b16 %v2713, %v2711
    %v2894 = vpack.c.b16 %v2716, %v2714
    %v2895 = vpack.c.b16 %v2717, %v2715
    %v2896 = vpack.c.b16 %v2720, %v2718
    %v2897 = vpack.c.b16 %v2721, %v2719
    %v2898 = vpack.c.b16 %v2724, %v2722
    %v2899 = vpack.c.b16 %v2725, %v2723
    %v2900 = vpack.c.b16 %v2728, %v2726
    %v2901 = vpack.c.b16 %v2729, %v2727
    %v2902 = vpack.c.b16 %v2732, %v2730
    %v2903 = vpack.c.b16 %v2733, %v2731
    %v2904 = vpack.c.b16 %v2736, %v2734
    %v2905 = vpack.c.b16 %v2737, %v2735
    %v2906 = vpack.c.b16 %v2740, %v2738
    %v2907 = vpack.c.b16 %v2741, %v2739
    %v2908 = vpack.c.b16 %v2744, %v2742
    %v2909 = vpack.c.b16 %v2745, %v2743
    %v2910 = vpack.c.b16 %v2748, %v2746
    %v2911 = vpack.c.b16 %v2749, %v2747
    %v2912 = vpack.c.b16 %v2752, %v2750
    %v2913 = vpack.c.b16 %v2753, %v2751
    %v2914 = vpack.c.b16 %v2756, %v2754
    %v2915 = vpack.c.b16 %v2757, %v2755
    %v2916 = vpack.c.b16 %v2760, %v2758
    %v2917 = vpack.c.b16 %v2761, %v2759
    %v2918 = vpack.c.b16 %v2764, %v2762
    %v2919 = vpack.c.b16 %v2765, %v2763
    %v2920 = vpack.c.b16 %v2768, %v2766
    %v2921 = vpack.c.b16 %v2769, %v2767
    %v2922 = vpack.c.b16 %v2772, %v2770
    %v2923 = vpack.c.b16 %v2773, %v2771
    %v2924 = vpack.c.b16 %v2776, %v2774
    %v2925 = vpack.c.b16 %v2777, %v2775
    %v2926 = vpack.c.b16 %v2780, %v2778
    %v2927 = vpack.c.b16 %v2781, %v2779
    %v2928 = vpack.c.b16 %v2784, %v2782
    %v2929 = vpack.c.b16 %v2785, %v2783
    %v2930 = vpack.c.b16 %v2788, %v2786
    %v2931 = vpack.c.b16 %v2789, %v2787
    %v2932 = vpack.c.b16 %v2792, %v2790
    %v2933 = vpack.c.b16 %v2793, %v2791
    %v2934 = vpack.c.b16 %v2796, %v2794
    %v2935 = vpack.c.b16 %v2797, %v2795
    %v2936 = vpack.c.b16 %v2800, %v2798
    %v2937 = vpack.c.b16 %v2801, %v2799
    %v2938 = vpack.c.b16 %v2804, %v2802
    %v2939 = vpack.c.b16 %v2805, %v2803
    %v2940 = vpack.c.b16 %v2808, %v2806
    %v2941 = vpack.c.b16 %v2809, %v2807
    %v2942 = vpack.c.b16 %v2812, %v2810
    %v2943 = vpack.c.b16 %v2813, %v2811
    %v2944 = vpack.c.b16 %v2816, %v2814
    %v2945 = vpack.c.b16 %v2817, %v2815
    %v2946 = vpack.c.b16 %v2820, %v2818
    %v2947 = vpack.c.b16 %v2821, %v2819
    %v2948 = vpack.c.b16 %v2824, %v2822
    %v2949 = vpack.c.b16 %v2825, %v2823
    %v2950 = vpack.c.b16 %v2828, %v2826
    %v2951 = vpack.c.b16 %v2829, %v2827
    %v2952 = vpack.c.b16 %v2832, %v2830
    %v2953 = vpack.c.b16 %v2833, %v2831
    %v2954 = vpack.c.b16 %v2836, %v2834
    %v2955 = vpack.c.b16 %v2837, %v2835
    %v2956 = vpack.c.b16 %v2840, %v2838
    %v2957 = vpack.c.b16 %v2841, %v2839
    %v2958 = vpack.c.b16 %v2844, %v2842
    %v2959 = vpack.c.b16 %v2845, %v2843
    %v2960 = vpack.c.b16 %v2848, %v2846
    %v2961 = vpack.c.b16 %v2849, %v2847
    %v2962 = vpack.c.b16 %v2852, %v2850
    %v2963 = vpack.c.b16 %v2853, %v2851
    %v2964 = vpack.c.b16 %v2856, %v2854
    %v2965 = vpack.c.b16 %v2857, %v2855
    %v2966 = vpack.c.b16 %v2860, %v2858
    %v2967 = vpack.c.b16 %v2861, %v2859
    %v2968 = vpack.c.b16 %v2864, %v2862
    %v2969 = vpack.c.b16 %v2865, %v2863
    %v2970 = vpack.c.b16 %v2868, %v2866
    %v2971 = vpack.c.b16 %v2869, %v2867
    %v2972 = vpack.c.b16 %v2872, %v2870
    %v2973 = vpack.c.b16 %v2873, %v2871
    %v2974 = vpack.c.b16 %v2876, %v2874
    %v2975 = vpack.c.b16 %v2877, %v2875
    %v2976 = vpack.c.b16 %v2880, %v2878
    %v2977 = vpack.c.b16 %v2881, %v2879
    %3074 = vmatpush.bf16.msra.mxu0 %v2896
    %3075 = vmatpush.bf16.msra.mxu0 %v2894
    %3076 = vmatpush.bf16.msra.mxu0 %v2892
    %3077 = vmatpush.bf16.msra.mxu0 %v2890
    %3078 = vmatpush.bf16.msra.mxu0 %v2888
    %3079 = vmatpush.bf16.msra.mxu0 %v2886
    %3080 = vmatpush.bf16.msra.mxu0 %v2884
    %3081 = vmatpush.bf16.msra.mxu0 %v2882
    %3082 = vmatmul.bf16.gmra.mxu0 %v2487
    %v3083 = vpop.f32.mrf.mxu0
    %v3084 = vadd.f32 %v2590, %v3083
    %v3085 = vpop.f32.mrf.mxu0
    %3086 = vdwg.mxu0
    %3087 = vmatpush.bf16.msra.mxu0 %v2912
    %3088 = vmatpush.bf16.msra.mxu0 %v2910
    %3089 = vmatpush.bf16.msra.mxu0 %v2908
    %3090 = vmatpush.bf16.msra.mxu0 %v2906
    %3091 = vmatpush.bf16.msra.mxu0 %v2904
    %3092 = vmatpush.bf16.msra.mxu0 %v2902
    %3093 = vmatpush.bf16.msra.mxu0 %v2900
    %3094 = vmatpush.bf16.msra.mxu0 %v2898
    %3095 = vmatmul.bf16.gmra.mxu0 %v2488
    %v3096 = vpop.f32.mrf.mxu0
    %v3097 = vadd.f32 %v3084, %v3096
    %v3098 = vpop.f32.mrf.mxu0
    %3099 = vdwg.mxu0
    %3100 = vmatpush.bf16.msra.mxu0 %v2928
    %3101 = vmatpush.bf16.msra.mxu0 %v2926
    %3102 = vmatpush.bf16.msra.mxu0 %v2924
    %3103 = vmatpush.bf16.msra.mxu0 %v2922
    %3104 = vmatpush.bf16.msra.mxu0 %v2920
    %3105 = vmatpush.bf16.msra.mxu0 %v2918
    %3106 = vmatpush.bf16.msra.mxu0 %v2916
    %3107 = vmatpush.bf16.msra.mxu0 %v2914
    %3108 = vmatmul.bf16.gmra.mxu0 %v2489
    %v3109 = vpop.f32.mrf.mxu0
    %v3110 = vadd.f32 %v3097, %v3109
    %v3111 = vpop.f32.mrf.mxu0
    %3112 = vdwg.mxu0
    %3113 = vmatpush.bf16.msra.mxu0 %v2944
    %3114 = vmatpush.bf16.msra.mxu0 %v2942
    %3115 = vmatpush.bf16.msra.mxu0 %v2940
    %3116 = vmatpush.bf16.msra.mxu0 %v2938
    %3117 = vmatpush.bf16.msra.mxu0 %v2936
    %3118 = vmatpush.bf16.msra.mxu0 %v2934
    %3119 = vmatpush.bf16.msra.mxu0 %v2932
    %3120 = vmatpush.bf16.msra.mxu0 %v2930
    %3121 = vmatmul.bf16.gmra.mxu0 %v2490
    %v3122 = vpop.f32.mrf.mxu0
    %v3123 = vadd.f32 %v3110, %v3122
    %v3124 = vpop.f32.mrf.mxu0
    %3125 = vdwg.mxu0
    %3126 = vmatpush.bf16.msra.mxu0 %v2960
    %3127 = vmatpush.bf16.msra.mxu0 %v2958
    %3128 = vmatpush.bf16.msra.mxu0 %v2956
    %3129 = vmatpush.bf16.msra.mxu0 %v2954
    %3130 = vmatpush.bf16.msra.mxu0 %v2952
    %3131 = vmatpush.bf16.msra.mxu0 %v2950
    %3132 = vmatpush.bf16.msra.mxu0 %v2948
    %3133 = vmatpush.bf16.msra.mxu0 %v2946
    %3134 = vmatmul.bf16.gmra.mxu0 %v2491
    %v3135 = vpop.f32.mrf.mxu0
    %v3136 = vadd.f32 %v3123, %v3135
    %v3137 = vpop.f32.mrf.mxu0
    %3138 = vdwg.mxu0
    %3139 = vmatpush.bf16.msra.mxu0 %v2976
    %3140 = vmatpush.bf16.msra.mxu0 %v2974
    %3141 = vmatpush.bf16.msra.mxu0 %v2972
    %3142 = vmatpush.bf16.msra.mxu0 %v2970
    %3143 = vmatpush.bf16.msra.mxu0 %v2968
    %3144 = vmatpush.bf16.msra.mxu0 %v2966
    %3145 = vmatpush.bf16.msra.mxu0 %v2964
    %3146 = vmatpush.bf16.msra.mxu0 %v2962
    %3147 = vmatmul.bf16.gmra.mxu0 %v2492
    %v3148 = vpop.f32.mrf.mxu0
    %v3149 = vadd.f32 %v3136, %v3148
    %v3150 = vpop.f32.mrf.mxu0
    %3151 = vdwg.mxu0
    %3152 = vmatpush.bf16.msra.mxu0 %v2897
    %3153 = vmatpush.bf16.msra.mxu0 %v2895
    %3154 = vmatpush.bf16.msra.mxu0 %v2893
    %3155 = vmatpush.bf16.msra.mxu0 %v2891
    %3156 = vmatpush.bf16.msra.mxu0 %v2889
    %3157 = vmatpush.bf16.msra.mxu0 %v2887
    %3158 = vmatpush.bf16.msra.mxu0 %v2885
    %3159 = vmatpush.bf16.msra.mxu0 %v2883
    %3160 = vmatmul.bf16.gmra.mxu0 %v2487
    %v3161 = vpop.f32.mrf.mxu0
    %v3162 = vadd.f32 %v2591, %v3161
    %v3163 = vpop.f32.mrf.mxu0
    %3164 = vdwg.mxu0
    %3165 = vmatpush.bf16.msra.mxu0 %v2913
    %3166 = vmatpush.bf16.msra.mxu0 %v2911
    %3167 = vmatpush.bf16.msra.mxu0 %v2909
    %3168 = vmatpush.bf16.msra.mxu0 %v2907
    %3169 = vmatpush.bf16.msra.mxu0 %v2905
    %3170 = vmatpush.bf16.msra.mxu0 %v2903
    %3171 = vmatpush.bf16.msra.mxu0 %v2901
    %3172 = vmatpush.bf16.msra.mxu0 %v2899
    %3173 = vmatmul.bf16.gmra.mxu0 %v2488
    %v3174 = vpop.f32.mrf.mxu0
    %v3175 = vadd.f32 %v3162, %v3174
    %v3176 = vpop.f32.mrf.mxu0
    %3177 = vdwg.mxu0
    %3178 = vmatpush.bf16.msra.mxu0 %v2929
    %3179 = vmatpush.bf16.msra.mxu0 %v2927
    %3180 = vmatpush.bf16.msra.mxu0 %v2925
    %3181 = vmatpush.bf16.msra.mxu0 %v2923
    %3182 = vmatpush.bf16.msra.mxu0 %v2921
    %3183 = vmatpush.bf16.msra.mxu0 %v2919
    %3184 = vmatpush.bf16.msra.mxu0 %v2917
    %3185 = vmatpush.bf16.msra.mxu0 %v2915
    %3186 = vmatmul.bf16.gmra.mxu0 %v2489
    %v3187 = vpop.f32.mrf.mxu0
    %v3188 = vadd.f32 %v3175, %v3187
    %v3189 = vpop.f32.mrf.mxu0
    %3190 = vdwg.mxu0
    %3191 = vmatpush.bf16.msra.mxu0 %v2945
    %3192 = vmatpush.bf16.msra.mxu0 %v2943
    %3193 = vmatpush.bf16.msra.mxu0 %v2941
    %3194 = vmatpush.bf16.msra.mxu0 %v2939
    %3195 = vmatpush.bf16.msra.mxu0 %v2937
    %3196 = vmatpush.bf16.msra.mxu0 %v2935
    %3197 = vmatpush.bf16.msra.mxu0 %v2933
    %3198 = vmatpush.bf16.msra.mxu0 %v2931
    %3199 = vmatmul.bf16.gmra.mxu0 %v2490
    %v3200 = vpop.f32.mrf.mxu0
    %v3201 = vadd.f32 %v3188, %v3200
    %v3202 = vpop.f32.mrf.mxu0
    %3203 = vdwg.mxu0
    %3204 = vmatpush.bf16.msra.mxu0 %v2961
    %3205 = vmatpush.bf16.msra.mxu0 %v2959
    %3206 = vmatpush.bf16.msra.mxu0 %v2957
    %3207 = vmatpush.bf16.msra.mxu0 %v2955
    %3208 = vmatpush.bf16.msra.mxu0 %v2953
    %3209 = vmatpush.bf16.msra.mxu0 %v2951
    %3210 = vmatpush.bf16.msra.mxu0 %v2949
    %3211 = vmatpush.bf16.msra.mxu0 %v2947
    %3212 = vmatmul.bf16.gmra.mxu0 %v2491
    %v3213 = vpop.f32.mrf.mxu0
    %v3214 = vadd.f32 %v3201, %v3213
    %v3215 = vpop.f32.mrf.mxu0
    %3216 = vdwg.mxu0
    %3217 = vmatpush.bf16.msra.mxu0 %v2977
    %3218 = vmatpush.bf16.msra.mxu0 %v2975
    %3219 = vmatpush.bf16.msra.mxu0 %v2973
    %3220 = vmatpush.bf16.msra.mxu0 %v2971
    %3221 = vmatpush.bf16.msra.mxu0 %v2969
    %3222 = vmatpush.bf16.msra.mxu0 %v2967
    %3223 = vmatpush.bf16.msra.mxu0 %v2965
    %3224 = vmatpush.bf16.msra.mxu0 %v2963
    %3225 = vmatmul.bf16.gmra.mxu0 %v2492
    %v3226 = vpop.f32.mrf.mxu0
    %v3227 = vadd.f32 %v3214, %v3226
    %v3228 = vpop.f32.mrf.mxu0
    %3229 = vdwg.mxu0
    %v3230 = vmax.f32 %v3227, -4.0
    %v3231 = vmin.f32 %v3230, 15.0
    %v3232 = vmul.f32 %v3231, 1.442695
    %v3233 = vpow.pop %v3232
    %3234 = vrot.lane.b32.xlu0 %v122, 112
    %v3235 = vpop.permute.xlu0 %3234
    %v3237 = vmul.f32 %v3233, %v3235
    %v3238 = vadd.f32 %v3149, %v3237
    %vm3239 = vcmask 64512
    %v3241 = vsel %vm3239, %v3238, 0
    %3243 = vmatpush.msra.mxu0 0.0
    %3244 = vmatpush.msra.mxu0 0.0
    %3245 = vmatpush.msra.mxu0 0.0
    %3246 = vmatpush.msra.mxu0 0.0
    %3247 = vmatpush.msra.mxu0 0.0
    %3248 = vmatpush.msra.mxu0 0.0
    %3249 = vmatpush.msra.mxu0 0.0
    %3250 = vmatpush.msra.mxu0 0.0
    %3251 = vmatpush.msra.mxu0 0.0
    %3252 = vmatpush.msra.mxu0 0.0
    %3253 = vmatpush.msra.mxu0 0.0
    %3254 = vmatpush.msra.mxu0 0.0
    %3255 = vmatpush.msra.mxu0 0.0
    %3256 = vmatpush.msra.mxu0 0.0
    %3257 = vmatpush.msra.mxu0 0.0
    %3258 = vmatpush.msra.mxu0 %v97
    %3259 = vmatmul.f32.gmra.mxu0 %v3241
    %v3260 = vpop.f32.mrf.mxu0
    %v3261 = vadd.f32 0.0, %v3260
    %3262 = vdwg.mxu0
    %3263 = vmatpush.msra.mxu0 0.0
    %3264 = vmatpush.msra.mxu0 0.0
    %3265 = vmatpush.msra.mxu0 0.0
    %3266 = vmatpush.msra.mxu0 0.0
    %3267 = vmatpush.msra.mxu0 0.0
    %3268 = vmatpush.msra.mxu0 0.0
    %3269 = vmatpush.msra.mxu0 0.0
    %3270 = vmatpush.msra.mxu0 0.0
    %3271 = vmatpush.msra.mxu0 0.0
    %3272 = vmatpush.msra.mxu0 0.0
    %3273 = vmatpush.msra.mxu0 0.0
    %3274 = vmatpush.msra.mxu0 0.0
    %3275 = vmatpush.msra.mxu0 0.0
    %3276 = vmatpush.msra.mxu0 0.0
    %3277 = vmatpush.msra.mxu0 0.0
    %3278 = vmatpush.msra.mxu0 %v98
    %3279 = vmatmul.f32.gmra.mxu0 %v3241
    %v3280 = vpop.f32.mrf.mxu0
    %v3281 = vadd.f32 0.0, %v3280
    %3282 = vdwg.mxu0
    %3283 = vmatpush.msra.mxu0 0.0
    %3284 = vmatpush.msra.mxu0 0.0
    %3285 = vmatpush.msra.mxu0 0.0
    %3286 = vmatpush.msra.mxu0 0.0
    %3287 = vmatpush.msra.mxu0 0.0
    %3288 = vmatpush.msra.mxu0 0.0
    %3289 = vmatpush.msra.mxu0 0.0
    %3290 = vmatpush.msra.mxu0 0.0
    %3291 = vmatpush.msra.mxu0 0.0
    %3292 = vmatpush.msra.mxu0 0.0
    %3293 = vmatpush.msra.mxu0 0.0
    %3294 = vmatpush.msra.mxu0 0.0
    %3295 = vmatpush.msra.mxu0 0.0
    %3296 = vmatpush.msra.mxu0 0.0
    %3297 = vmatpush.msra.mxu0 0.0
    %3298 = vmatpush.msra.mxu0 %v99
    %3299 = vmatmul.f32.gmra.mxu0 %v3241
    %v3300 = vpop.f32.mrf.mxu0
    %v3301 = vadd.f32 0.0, %v3300
    %3302 = vdwg.mxu0
    %3303 = vmatpush.msra.mxu0 0.0
    %3304 = vmatpush.msra.mxu0 0.0
    %3305 = vmatpush.msra.mxu0 0.0
    %3306 = vmatpush.msra.mxu0 0.0
    %3307 = vmatpush.msra.mxu0 0.0
    %3308 = vmatpush.msra.mxu0 0.0
    %3309 = vmatpush.msra.mxu0 0.0
    %3310 = vmatpush.msra.mxu0 0.0
    %3311 = vmatpush.msra.mxu0 0.0
    %3312 = vmatpush.msra.mxu0 0.0
    %3313 = vmatpush.msra.mxu0 0.0
    %3314 = vmatpush.msra.mxu0 0.0
    %3315 = vmatpush.msra.mxu0 0.0
    %3316 = vmatpush.msra.mxu0 0.0
    %3317 = vmatpush.msra.mxu0 0.0
    %3318 = vmatpush.msra.mxu0 %v100
    %3319 = vmatmul.f32.gmra.mxu0 %v3241
    %v3320 = vpop.f32.mrf.mxu0
    %v3321 = vadd.f32 0.0, %v3320
    %3322 = vdwg.mxu0
    %3323 = vmatpush.msra.mxu0 0.0
    %3324 = vmatpush.msra.mxu0 0.0
    %3325 = vmatpush.msra.mxu0 0.0
    %3326 = vmatpush.msra.mxu0 0.0
    %3327 = vmatpush.msra.mxu0 0.0
    %3328 = vmatpush.msra.mxu0 0.0
    %3329 = vmatpush.msra.mxu0 0.0
    %3330 = vmatpush.msra.mxu0 0.0
    %3331 = vmatpush.msra.mxu0 0.0
    %3332 = vmatpush.msra.mxu0 0.0
    %3333 = vmatpush.msra.mxu0 0.0
    %3334 = vmatpush.msra.mxu0 0.0
    %3335 = vmatpush.msra.mxu0 0.0
    %3336 = vmatpush.msra.mxu0 0.0
    %3337 = vmatpush.msra.mxu0 0.0
    %3338 = vmatpush.msra.mxu0 %v101
    %3339 = vmatmul.f32.gmra.mxu0 %v3241
    %v3340 = vpop.f32.mrf.mxu0
    %v3341 = vadd.f32 0.0, %v3340
    %3342 = vdwg.mxu0
    %3343 = vmatpush.msra.mxu0 0.0
    %3344 = vmatpush.msra.mxu0 0.0
    %3345 = vmatpush.msra.mxu0 0.0
    %3346 = vmatpush.msra.mxu0 0.0
    %3347 = vmatpush.msra.mxu0 0.0
    %3348 = vmatpush.msra.mxu0 0.0
    %3349 = vmatpush.msra.mxu0 0.0
    %3350 = vmatpush.msra.mxu0 0.0
    %3351 = vmatpush.msra.mxu0 0.0
    %3352 = vmatpush.msra.mxu0 0.0
    %3353 = vmatpush.msra.mxu0 0.0
    %3354 = vmatpush.msra.mxu0 0.0
    %3355 = vmatpush.msra.mxu0 0.0
    %3356 = vmatpush.msra.mxu0 0.0
    %3357 = vmatpush.msra.mxu0 0.0
    %3358 = vmatpush.msra.mxu0 %v102
    %3359 = vmatmul.f32.gmra.mxu0 %v3241
    %v3360 = vpop.f32.mrf.mxu0
    %v3361 = vadd.f32 0.0, %v3360
    %3362 = vdwg.mxu0
    %v3363 = vsel %vm3239, %v122, 0
    %3365 = vmatpush.msra.mxu0 0.0
    %3366 = vmatpush.msra.mxu0 0.0
    %3367 = vmatpush.msra.mxu0 0.0
    %3368 = vmatpush.msra.mxu0 0.0
    %3369 = vmatpush.msra.mxu0 0.0
    %3370 = vmatpush.msra.mxu0 0.0
    %3371 = vmatpush.msra.mxu0 0.0
    %3372 = vmatpush.msra.mxu0 0.0
    %3373 = vmatpush.msra.mxu0 0.0
    %3374 = vmatpush.msra.mxu0 0.0
    %3375 = vmatpush.msra.mxu0 0.0
    %3376 = vmatpush.msra.mxu0 0.0
    %3377 = vmatpush.msra.mxu0 0.0
    %3378 = vmatpush.msra.mxu0 0.0
    %3379 = vmatpush.msra.mxu0 0.0
    %3380 = vmatpush.msra.mxu0 %v91
    %3381 = vmatmul.f32.gmra.mxu0 %v3363
    %v3382 = vpop.f32.mrf.mxu0
    %v3383 = vadd.f32 %v3261, %v3382
    %3384 = vdwg.mxu0
    %3385 = vmatpush.msra.mxu0 0.0
    %3386 = vmatpush.msra.mxu0 0.0
    %3387 = vmatpush.msra.mxu0 0.0
    %3388 = vmatpush.msra.mxu0 0.0
    %3389 = vmatpush.msra.mxu0 0.0
    %3390 = vmatpush.msra.mxu0 0.0
    %3391 = vmatpush.msra.mxu0 0.0
    %3392 = vmatpush.msra.mxu0 0.0
    %3393 = vmatpush.msra.mxu0 0.0
    %3394 = vmatpush.msra.mxu0 0.0
    %3395 = vmatpush.msra.mxu0 0.0
    %3396 = vmatpush.msra.mxu0 0.0
    %3397 = vmatpush.msra.mxu0 0.0
    %3398 = vmatpush.msra.mxu0 0.0
    %3399 = vmatpush.msra.mxu0 0.0
    %3400 = vmatpush.msra.mxu0 %v92
    %3401 = vmatmul.f32.gmra.mxu0 %v3363
    %v3402 = vpop.f32.mrf.mxu0
    %v3403 = vadd.f32 %v3281, %v3402
    %3404 = vdwg.mxu0
    %3405 = vmatpush.msra.mxu0 0.0
    %3406 = vmatpush.msra.mxu0 0.0
    %3407 = vmatpush.msra.mxu0 0.0
    %3408 = vmatpush.msra.mxu0 0.0
    %3409 = vmatpush.msra.mxu0 0.0
    %3410 = vmatpush.msra.mxu0 0.0
    %3411 = vmatpush.msra.mxu0 0.0
    %3412 = vmatpush.msra.mxu0 0.0
    %3413 = vmatpush.msra.mxu0 0.0
    %3414 = vmatpush.msra.mxu0 0.0
    %3415 = vmatpush.msra.mxu0 0.0
    %3416 = vmatpush.msra.mxu0 0.0
    %3417 = vmatpush.msra.mxu0 0.0
    %3418 = vmatpush.msra.mxu0 0.0
    %3419 = vmatpush.msra.mxu0 0.0
    %3420 = vmatpush.msra.mxu0 %v93
    %3421 = vmatmul.f32.gmra.mxu0 %v3363
    %v3422 = vpop.f32.mrf.mxu0
    %v3423 = vadd.f32 %v3301, %v3422
    %3424 = vdwg.mxu0
    %3425 = vmatpush.msra.mxu0 0.0
    %3426 = vmatpush.msra.mxu0 0.0
    %3427 = vmatpush.msra.mxu0 0.0
    %3428 = vmatpush.msra.mxu0 0.0
    %3429 = vmatpush.msra.mxu0 0.0
    %3430 = vmatpush.msra.mxu0 0.0
    %3431 = vmatpush.msra.mxu0 0.0
    %3432 = vmatpush.msra.mxu0 0.0
    %3433 = vmatpush.msra.mxu0 0.0
    %3434 = vmatpush.msra.mxu0 0.0
    %3435 = vmatpush.msra.mxu0 0.0
    %3436 = vmatpush.msra.mxu0 0.0
    %3437 = vmatpush.msra.mxu0 0.0
    %3438 = vmatpush.msra.mxu0 0.0
    %3439 = vmatpush.msra.mxu0 0.0
    %3440 = vmatpush.msra.mxu0 %v94
    %3441 = vmatmul.f32.gmra.mxu0 %v3363
    %v3442 = vpop.f32.mrf.mxu0
    %v3443 = vadd.f32 %v3321, %v3442
    %3444 = vdwg.mxu0
    %3445 = vmatpush.msra.mxu0 0.0
    %3446 = vmatpush.msra.mxu0 0.0
    %3447 = vmatpush.msra.mxu0 0.0
    %3448 = vmatpush.msra.mxu0 0.0
    %3449 = vmatpush.msra.mxu0 0.0
    %3450 = vmatpush.msra.mxu0 0.0
    %3451 = vmatpush.msra.mxu0 0.0
    %3452 = vmatpush.msra.mxu0 0.0
    %3453 = vmatpush.msra.mxu0 0.0
    %3454 = vmatpush.msra.mxu0 0.0
    %3455 = vmatpush.msra.mxu0 0.0
    %3456 = vmatpush.msra.mxu0 0.0
    %3457 = vmatpush.msra.mxu0 0.0
    %3458 = vmatpush.msra.mxu0 0.0
    %3459 = vmatpush.msra.mxu0 0.0
    %3460 = vmatpush.msra.mxu0 %v95
    %3461 = vmatmul.f32.gmra.mxu0 %v3363
    %v3462 = vpop.f32.mrf.mxu0
    %v3463 = vadd.f32 %v3341, %v3462
    %3464 = vdwg.mxu0
    %3465 = vmatpush.msra.mxu0 0.0
    %3466 = vmatpush.msra.mxu0 0.0
    %3467 = vmatpush.msra.mxu0 0.0
    %3468 = vmatpush.msra.mxu0 0.0
    %3469 = vmatpush.msra.mxu0 0.0
    %3470 = vmatpush.msra.mxu0 0.0
    %3471 = vmatpush.msra.mxu0 0.0
    %3472 = vmatpush.msra.mxu0 0.0
    %3473 = vmatpush.msra.mxu0 0.0
    %3474 = vmatpush.msra.mxu0 0.0
    %3475 = vmatpush.msra.mxu0 0.0
    %3476 = vmatpush.msra.mxu0 0.0
    %3477 = vmatpush.msra.mxu0 0.0
    %3478 = vmatpush.msra.mxu0 0.0
    %3479 = vmatpush.msra.mxu0 0.0
    %3480 = vmatpush.msra.mxu0 %v96
    %3481 = vmatmul.f32.gmra.mxu0 %v3363
    %v3482 = vpop.f32.mrf.mxu0
    %v3483 = vadd.f32 %v3361, %v3482
    %3484 = vdwg.mxu0
    %v3486 = vperm.slane %v114, 0
    %v3487 = vperm.slane %v114, 1
    %v3488 = vperm.slane %v114, 2
    %v3489 = vperm.slane %v114, 3
    %v3490 = vperm.slane %v114, 4
    %v3491 = vperm.slane %v114, 5
    %v3498 = vadd.f32 %v3383, %v3486
    %v3499 = vadd.f32 %v3403, %v3487
    %v3500 = vadd.f32 %v3423, %v3488
    %v3501 = vadd.f32 %v3443, %v3489
    %v3502 = vadd.f32 %v3463, %v3490
    %v3503 = vadd.f32 %v3483, %v3491
    %v3504 = vmax.f32 %v3498, 0.0
    %v3505 = vmax.f32 %v3499, 0.0
    %v3506 = vmax.f32 %v3500, 0.0
    %v3507 = vmax.f32 %v3501, 0.0
    %v3508 = vmax.f32 %v3502, 0.0
    %v3509 = vmax.f32 %v3503, 0.0
    %v3510 = vpack.c.bf16 %v3504, %v3504
    %v3511 = vpack.c.bf16 %v3505, %v3505
    %v3512 = vpack.c.bf16 %v3506, %v3506
    %v3513 = vpack.c.bf16 %v3507, %v3507
    %v3514 = vpack.c.bf16 %v3508, %v3508
    %v3515 = vpack.c.bf16 %v3509, %v3509
    %s3516 = scalar_lea.vmem [#allocation5], 2304
    %v3517 = vld [vmem:[%s3516] sm:$0xff]
    %v3518 = vld [vmem:[%s3516 + $0x8] sm:$0xff]
    %v3519 = vld [vmem:[%s3516 + $0x10] sm:$0xff]
    %v3520 = vld [vmem:[%s3516 + $0x18] sm:$0xff]
    %v3521 = vld [vmem:[%s3516 + $0x20] sm:$0xff]
    %v3522 = vld [vmem:[%s3516 + $0x28] sm:$0xff]
    %v3523 = vld [vmem:[%s3516 + $0x30] sm:$0xff]
    %v3524 = vld [vmem:[%s3516 + $0x38] sm:$0xff]
    %v3525 = vld [vmem:[%s3516 + $0x40] sm:$0xff]
    %v3526 = vld [vmem:[%s3516 + $0x48] sm:$0xff]
    %v3527 = vld [vmem:[%s3516 + $0x50] sm:$0xff]
    %v3528 = vld [vmem:[%s3516 + $0x58] sm:$0xff]
    %v3529 = vld [vmem:[%s3516 + $0x60] sm:$0xff]
    %v3530 = vld [vmem:[%s3516 + $0x68] sm:$0xff]
    %v3531 = vld [vmem:[%s3516 + $0x70] sm:$0xff]
    %v3532 = vld [vmem:[%s3516 + $0x78] sm:$0xff]
    %v3533 = vld [vmem:[%s3516 + $0x80] sm:$0xff]
    %v3534 = vld [vmem:[%s3516 + $0x88] sm:$0xff]
    %v3535 = vld [vmem:[%s3516 + $0x90] sm:$0xff]
    %v3536 = vld [vmem:[%s3516 + $0x98] sm:$0xff]
    %v3537 = vld [vmem:[%s3516 + $0xa0] sm:$0xff]
    %v3538 = vld [vmem:[%s3516 + $0xa8] sm:$0xff]
    %v3539 = vld [vmem:[%s3516 + $0xb0] sm:$0xff]
    %v3540 = vld [vmem:[%s3516 + $0xb8] sm:$0xff]
    %v3541 = vld [vmem:[%s3516 + $0xc0] sm:$0xff]
    %v3542 = vld [vmem:[%s3516 + $0xc8] sm:$0xff]
    %v3543 = vld [vmem:[%s3516 + $0xd0] sm:$0xff]
    %v3544 = vld [vmem:[%s3516 + $0xd8] sm:$0xff]
    %v3545 = vld [vmem:[%s3516 + $0xe0] sm:$0xff]
    %v3546 = vld [vmem:[%s3516 + $0xe8] sm:$0xff]
    %v3547 = vld [vmem:[%s3516 + $0xf0] sm:$0xff]
    %v3548 = vld [vmem:[%s3516 + $0xf8] sm:$0xff]
    %v3549 = vld [vmem:[%s3516 + $0x100] sm:$0xff]
    %v3550 = vld [vmem:[%s3516 + $0x108] sm:$0xff]
    %v3551 = vld [vmem:[%s3516 + $0x110] sm:$0xff]
    %v3552 = vld [vmem:[%s3516 + $0x118] sm:$0xff]
    %v3553 = vld [vmem:[%s3516 + $0x120] sm:$0xff]
    %v3554 = vld [vmem:[%s3516 + $0x128] sm:$0xff]
    %v3555 = vld [vmem:[%s3516 + $0x130] sm:$0xff]
    %v3556 = vld [vmem:[%s3516 + $0x138] sm:$0xff]
    %v3557 = vld [vmem:[%s3516 + $0x140] sm:$0xff]
    %v3558 = vld [vmem:[%s3516 + $0x148] sm:$0xff]
    %v3559 = vld [vmem:[%s3516 + $0x150] sm:$0xff]
    %v3560 = vld [vmem:[%s3516 + $0x158] sm:$0xff]
    %v3561 = vld [vmem:[%s3516 + $0x160] sm:$0xff]
    %v3562 = vld [vmem:[%s3516 + $0x168] sm:$0xff]
    %v3563 = vld [vmem:[%s3516 + $0x170] sm:$0xff]
    %v3564 = vld [vmem:[%s3516 + $0x178] sm:$0xff]
    %v3565 = vld [vmem:[%s3516 + $0x180] sm:$0xff]
    %v3566 = vld [vmem:[%s3516 + $0x188] sm:$0xff]
    %v3567 = vld [vmem:[%s3516 + $0x190] sm:$0xff]
    %v3568 = vld [vmem:[%s3516 + $0x198] sm:$0xff]
    %v3569 = vld [vmem:[%s3516 + $0x1a0] sm:$0xff]
    %v3570 = vld [vmem:[%s3516 + $0x1a8] sm:$0xff]
    %v3571 = vld [vmem:[%s3516 + $0x1b0] sm:$0xff]
    %v3572 = vld [vmem:[%s3516 + $0x1b8] sm:$0xff]
    %v3573 = vld [vmem:[%s3516 + $0x1c0] sm:$0xff]
    %v3574 = vld [vmem:[%s3516 + $0x1c8] sm:$0xff]
    %v3575 = vld [vmem:[%s3516 + $0x1d0] sm:$0xff]
    %v3576 = vld [vmem:[%s3516 + $0x1d8] sm:$0xff]
    %v3577 = vld [vmem:[%s3516 + $0x1e0] sm:$0xff]
    %v3578 = vld [vmem:[%s3516 + $0x1e8] sm:$0xff]
    %v3579 = vld [vmem:[%s3516 + $0x1f0] sm:$0xff]
    %v3580 = vld [vmem:[%s3516 + $0x1f8] sm:$0xff]
    %v3581 = vld [vmem:[%s3516 + $0x200] sm:$0xff]
    %v3582 = vld [vmem:[%s3516 + $0x208] sm:$0xff]
    %v3583 = vld [vmem:[%s3516 + $0x210] sm:$0xff]
    %v3584 = vld [vmem:[%s3516 + $0x218] sm:$0xff]
    %v3585 = vld [vmem:[%s3516 + $0x220] sm:$0xff]
    %v3586 = vld [vmem:[%s3516 + $0x228] sm:$0xff]
    %v3587 = vld [vmem:[%s3516 + $0x230] sm:$0xff]
    %v3588 = vld [vmem:[%s3516 + $0x238] sm:$0xff]
    %v3589 = vld [vmem:[%s3516 + $0x240] sm:$0xff]
    %v3590 = vld [vmem:[%s3516 + $0x248] sm:$0xff]
    %v3591 = vld [vmem:[%s3516 + $0x250] sm:$0xff]
    %v3592 = vld [vmem:[%s3516 + $0x258] sm:$0xff]
    %v3593 = vld [vmem:[%s3516 + $0x260] sm:$0xff]
    %v3594 = vld [vmem:[%s3516 + $0x268] sm:$0xff]
    %v3595 = vld [vmem:[%s3516 + $0x270] sm:$0xff]
    %v3596 = vld [vmem:[%s3516 + $0x278] sm:$0xff]
    %v3597 = vld [vmem:[%s3516 + $0x280] sm:$0xff]
    %v3598 = vld [vmem:[%s3516 + $0x288] sm:$0xff]
    %v3599 = vld [vmem:[%s3516 + $0x290] sm:$0xff]
    %v3600 = vld [vmem:[%s3516 + $0x298] sm:$0xff]
    %v3601 = vld [vmem:[%s3516 + $0x2a0] sm:$0xff]
    %v3602 = vld [vmem:[%s3516 + $0x2a8] sm:$0xff]
    %v3603 = vld [vmem:[%s3516 + $0x2b0] sm:$0xff]
    %v3604 = vld [vmem:[%s3516 + $0x2b8] sm:$0xff]
    %v3605 = vld [vmem:[%s3516 + $0x2c0] sm:$0xff]
    %v3606 = vld [vmem:[%s3516 + $0x2c8] sm:$0xff]
    %v3607 = vld [vmem:[%s3516 + $0x2d0] sm:$0xff]
    %v3608 = vld [vmem:[%s3516 + $0x2d8] sm:$0xff]
    %v3609 = vld [vmem:[%s3516 + $0x2e0] sm:$0xff]
    %v3610 = vld [vmem:[%s3516 + $0x2e8] sm:$0xff]
    %v3611 = vld [vmem:[%s3516 + $0x2f0] sm:$0xff]
    %v3612 = vld [vmem:[%s3516 + $0x2f8] sm:$0xff]
    %v3613 = vld [vmem:[%s3516 + $0x300] sm:$0xff]
    %v3614 = vld [vmem:[%s3516 + $0x308] sm:$0xff]
    %v3615 = vld [vmem:[%s3516 + $0x310] sm:$0xff]
    %v3616 = vld [vmem:[%s3516 + $0x318] sm:$0xff]
    %v3617 = vld [vmem:[%s3516 + $0x320] sm:$0xff]
    %v3618 = vld [vmem:[%s3516 + $0x328] sm:$0xff]
    %v3619 = vld [vmem:[%s3516 + $0x330] sm:$0xff]
    %v3620 = vld [vmem:[%s3516 + $0x338] sm:$0xff]
    %v3621 = vld [vmem:[%s3516 + $0x340] sm:$0xff]
    %v3622 = vld [vmem:[%s3516 + $0x348] sm:$0xff]
    %v3623 = vld [vmem:[%s3516 + $0x350] sm:$0xff]
    %v3624 = vld [vmem:[%s3516 + $0x358] sm:$0xff]
    %v3625 = vld [vmem:[%s3516 + $0x360] sm:$0xff]
    %v3626 = vld [vmem:[%s3516 + $0x368] sm:$0xff]
    %v3627 = vld [vmem:[%s3516 + $0x370] sm:$0xff]
    %v3628 = vld [vmem:[%s3516 + $0x378] sm:$0xff]
    %v3629 = vld [vmem:[%s3516 + $0x380] sm:$0xff]
    %v3630 = vld [vmem:[%s3516 + $0x388] sm:$0xff]
    %v3631 = vld [vmem:[%s3516 + $0x390] sm:$0xff]
    %v3632 = vld [vmem:[%s3516 + $0x398] sm:$0xff]
    %v3633 = vld [vmem:[%s3516 + $0x3a0] sm:$0xff]
    %v3634 = vld [vmem:[%s3516 + $0x3a8] sm:$0xff]
    %v3635 = vld [vmem:[%s3516 + $0x3b0] sm:$0xff]
    %v3636 = vld [vmem:[%s3516 + $0x3b8] sm:$0xff]
    %v3637 = vld [vmem:[%s3516 + $0x3c0] sm:$0xff]
    %v3638 = vld [vmem:[%s3516 + $0x3c8] sm:$0xff]
    %v3639 = vld [vmem:[%s3516 + $0x3d0] sm:$0xff]
    %v3640 = vld [vmem:[%s3516 + $0x3d8] sm:$0xff]
    %v3641 = vld [vmem:[%s3516 + $0x3e0] sm:$0xff]
    %v3642 = vld [vmem:[%s3516 + $0x3e8] sm:$0xff]
    %v3643 = vld [vmem:[%s3516 + $0x3f0] sm:$0xff]
    %v3644 = vld [vmem:[%s3516 + $0x3f8] sm:$0xff]
    %v3645 = vld [vmem:[%s3516 + $0x400] sm:$0xff]
    %v3646 = vld [vmem:[%s3516 + $0x408] sm:$0xff]
    %v3647 = vld [vmem:[%s3516 + $0x410] sm:$0xff]
    %v3648 = vld [vmem:[%s3516 + $0x418] sm:$0xff]
    %v3649 = vld [vmem:[%s3516 + $0x420] sm:$0xff]
    %v3650 = vld [vmem:[%s3516 + $0x428] sm:$0xff]
    %v3651 = vld [vmem:[%s3516 + $0x430] sm:$0xff]
    %v3652 = vld [vmem:[%s3516 + $0x438] sm:$0xff]
    %v3653 = vld [vmem:[%s3516 + $0x440] sm:$0xff]
    %v3654 = vld [vmem:[%s3516 + $0x448] sm:$0xff]
    %v3655 = vld [vmem:[%s3516 + $0x450] sm:$0xff]
    %v3656 = vld [vmem:[%s3516 + $0x458] sm:$0xff]
    %v3657 = vld [vmem:[%s3516 + $0x460] sm:$0xff]
    %v3658 = vld [vmem:[%s3516 + $0x468] sm:$0xff]
    %v3659 = vld [vmem:[%s3516 + $0x470] sm:$0xff]
    %v3660 = vld [vmem:[%s3516 + $0x478] sm:$0xff]
    %v3661 = vld [vmem:[%s3516 + $0x480] sm:$0xff]
    %v3662 = vld [vmem:[%s3516 + $0x488] sm:$0xff]
    %v3663 = vld [vmem:[%s3516 + $0x490] sm:$0xff]
    %v3664 = vld [vmem:[%s3516 + $0x498] sm:$0xff]
    %v3665 = vld [vmem:[%s3516 + $0x4a0] sm:$0xff]
    %v3666 = vld [vmem:[%s3516 + $0x4a8] sm:$0xff]
    %v3667 = vld [vmem:[%s3516 + $0x4b0] sm:$0xff]
    %v3668 = vld [vmem:[%s3516 + $0x4b8] sm:$0xff]
    %v3669 = vld [vmem:[%s3516 + $0x4c0] sm:$0xff]
    %v3670 = vld [vmem:[%s3516 + $0x4c8] sm:$0xff]
    %v3671 = vld [vmem:[%s3516 + $0x4d0] sm:$0xff]
    %v3672 = vld [vmem:[%s3516 + $0x4d8] sm:$0xff]
    %v3673 = vld [vmem:[%s3516 + $0x4e0] sm:$0xff]
    %v3674 = vld [vmem:[%s3516 + $0x4e8] sm:$0xff]
    %v3675 = vld [vmem:[%s3516 + $0x4f0] sm:$0xff]
    %v3676 = vld [vmem:[%s3516 + $0x4f8] sm:$0xff]
    %v3677 = vld [vmem:[%s3516 + $0x500] sm:$0xff]
    %v3678 = vld [vmem:[%s3516 + $0x508] sm:$0xff]
    %v3679 = vld [vmem:[%s3516 + $0x510] sm:$0xff]
    %v3680 = vld [vmem:[%s3516 + $0x518] sm:$0xff]
    %v3681 = vld [vmem:[%s3516 + $0x520] sm:$0xff]
    %v3682 = vld [vmem:[%s3516 + $0x528] sm:$0xff]
    %v3683 = vld [vmem:[%s3516 + $0x530] sm:$0xff]
    %v3684 = vld [vmem:[%s3516 + $0x538] sm:$0xff]
    %v3685 = vld [vmem:[%s3516 + $0x540] sm:$0xff]
    %v3686 = vld [vmem:[%s3516 + $0x548] sm:$0xff]
    %v3687 = vld [vmem:[%s3516 + $0x550] sm:$0xff]
    %v3688 = vld [vmem:[%s3516 + $0x558] sm:$0xff]
    %v3689 = vld [vmem:[%s3516 + $0x560] sm:$0xff]
    %v3690 = vld [vmem:[%s3516 + $0x568] sm:$0xff]
    %v3691 = vld [vmem:[%s3516 + $0x570] sm:$0xff]
    %v3692 = vld [vmem:[%s3516 + $0x578] sm:$0xff]
    %v3693 = vld [vmem:[%s3516 + $0x580] sm:$0xff]
    %v3694 = vld [vmem:[%s3516 + $0x588] sm:$0xff]
    %v3695 = vld [vmem:[%s3516 + $0x590] sm:$0xff]
    %v3696 = vld [vmem:[%s3516 + $0x598] sm:$0xff]
    %v3697 = vld [vmem:[%s3516 + $0x5a0] sm:$0xff]
    %v3698 = vld [vmem:[%s3516 + $0x5a8] sm:$0xff]
    %v3699 = vld [vmem:[%s3516 + $0x5b0] sm:$0xff]
    %v3700 = vld [vmem:[%s3516 + $0x5b8] sm:$0xff]
    %v3701 = vld [vmem:[%s3516 + $0x5c0] sm:$0xff]
    %v3702 = vld [vmem:[%s3516 + $0x5c8] sm:$0xff]
    %v3703 = vld [vmem:[%s3516 + $0x5d0] sm:$0xff]
    %v3704 = vld [vmem:[%s3516 + $0x5d8] sm:$0xff]
    %v3705 = vld [vmem:[%s3516 + $0x5e0] sm:$0xff]
    %v3706 = vld [vmem:[%s3516 + $0x5e8] sm:$0xff]
    %v3707 = vld [vmem:[%s3516 + $0x5f0] sm:$0xff]
    %v3708 = vld [vmem:[%s3516 + $0x5f8] sm:$0xff]
    %v3709 = vld [vmem:[%s3516 + $0x600] sm:$0xff]
    %v3710 = vld [vmem:[%s3516 + $0x608] sm:$0xff]
    %v3711 = vld [vmem:[%s3516 + $0x610] sm:$0xff]
    %v3712 = vld [vmem:[%s3516 + $0x618] sm:$0xff]
    %v3713 = vld [vmem:[%s3516 + $0x620] sm:$0xff]
    %v3714 = vld [vmem:[%s3516 + $0x628] sm:$0xff]
    %v3715 = vld [vmem:[%s3516 + $0x630] sm:$0xff]
    %v3716 = vld [vmem:[%s3516 + $0x638] sm:$0xff]
    %v3717 = vld [vmem:[%s3516 + $0x640] sm:$0xff]
    %v3718 = vld [vmem:[%s3516 + $0x648] sm:$0xff]
    %v3719 = vld [vmem:[%s3516 + $0x650] sm:$0xff]
    %v3720 = vld [vmem:[%s3516 + $0x658] sm:$0xff]
    %v3721 = vld [vmem:[%s3516 + $0x660] sm:$0xff]
    %v3722 = vld [vmem:[%s3516 + $0x668] sm:$0xff]
    %v3723 = vld [vmem:[%s3516 + $0x670] sm:$0xff]
    %v3724 = vld [vmem:[%s3516 + $0x678] sm:$0xff]
    %v3725 = vld [vmem:[%s3516 + $0x680] sm:$0xff]
    %v3726 = vld [vmem:[%s3516 + $0x688] sm:$0xff]
    %v3727 = vld [vmem:[%s3516 + $0x690] sm:$0xff]
    %v3728 = vld [vmem:[%s3516 + $0x698] sm:$0xff]
    %v3729 = vld [vmem:[%s3516 + $0x6a0] sm:$0xff]
    %v3730 = vld [vmem:[%s3516 + $0x6a8] sm:$0xff]
    %v3731 = vld [vmem:[%s3516 + $0x6b0] sm:$0xff]
    %v3732 = vld [vmem:[%s3516 + $0x6b8] sm:$0xff]
    %v3733 = vld [vmem:[%s3516 + $0x6c0] sm:$0xff]
    %v3734 = vld [vmem:[%s3516 + $0x6c8] sm:$0xff]
    %v3735 = vld [vmem:[%s3516 + $0x6d0] sm:$0xff]
    %v3736 = vld [vmem:[%s3516 + $0x6d8] sm:$0xff]
    %v3737 = vld [vmem:[%s3516 + $0x6e0] sm:$0xff]
    %v3738 = vld [vmem:[%s3516 + $0x6e8] sm:$0xff]
    %v3739 = vld [vmem:[%s3516 + $0x6f0] sm:$0xff]
    %v3740 = vld [vmem:[%s3516 + $0x6f8] sm:$0xff]
    %v3741 = vld [vmem:[%s3516 + $0x700] sm:$0xff]
    %v3742 = vld [vmem:[%s3516 + $0x708] sm:$0xff]
    %v3743 = vld [vmem:[%s3516 + $0x710] sm:$0xff]
    %v3744 = vld [vmem:[%s3516 + $0x718] sm:$0xff]
    %v3745 = vld [vmem:[%s3516 + $0x720] sm:$0xff]
    %v3746 = vld [vmem:[%s3516 + $0x728] sm:$0xff]
    %v3747 = vld [vmem:[%s3516 + $0x730] sm:$0xff]
    %v3748 = vld [vmem:[%s3516 + $0x738] sm:$0xff]
    %v3749 = vld [vmem:[%s3516 + $0x740] sm:$0xff]
    %v3750 = vld [vmem:[%s3516 + $0x748] sm:$0xff]
    %v3751 = vld [vmem:[%s3516 + $0x750] sm:$0xff]
    %v3752 = vld [vmem:[%s3516 + $0x758] sm:$0xff]
    %v3753 = vld [vmem:[%s3516 + $0x760] sm:$0xff]
    %v3754 = vld [vmem:[%s3516 + $0x768] sm:$0xff]
    %v3755 = vld [vmem:[%s3516 + $0x770] sm:$0xff]
    %v3756 = vld [vmem:[%s3516 + $0x778] sm:$0xff]
    %v3757 = vld [vmem:[%s3516 + $0x780] sm:$0xff]
    %v3758 = vld [vmem:[%s3516 + $0x788] sm:$0xff]
    %v3759 = vld [vmem:[%s3516 + $0x790] sm:$0xff]
    %v3760 = vld [vmem:[%s3516 + $0x798] sm:$0xff]
    %v3761 = vld [vmem:[%s3516 + $0x7a0] sm:$0xff]
    %v3762 = vld [vmem:[%s3516 + $0x7a8] sm:$0xff]
    %v3763 = vld [vmem:[%s3516 + $0x7b0] sm:$0xff]
    %v3764 = vld [vmem:[%s3516 + $0x7b8] sm:$0xff]
    %v3765 = vld [vmem:[%s3516 + $0x7c0] sm:$0xff]
    %v3766 = vld [vmem:[%s3516 + $0x7c8] sm:$0xff]
    %v3767 = vld [vmem:[%s3516 + $0x7d0] sm:$0xff]
    %v3768 = vld [vmem:[%s3516 + $0x7d8] sm:$0xff]
    %v3769 = vld [vmem:[%s3516 + $0x7e0] sm:$0xff]
    %v3770 = vld [vmem:[%s3516 + $0x7e8] sm:$0xff]
    %v3771 = vld [vmem:[%s3516 + $0x7f0] sm:$0xff]
    %v3772 = vld [vmem:[%s3516 + $0x7f8] sm:$0xff]
    %v3773 = vld [vmem:[%s3516 + $0x800] sm:$0xff]
    %v3774 = vld [vmem:[%s3516 + $0x808] sm:$0xff]
    %v3775 = vld [vmem:[%s3516 + $0x810] sm:$0xff]
    %v3776 = vld [vmem:[%s3516 + $0x818] sm:$0xff]
    %v3777 = vld [vmem:[%s3516 + $0x820] sm:$0xff]
    %v3778 = vld [vmem:[%s3516 + $0x828] sm:$0xff]
    %v3779 = vld [vmem:[%s3516 + $0x830] sm:$0xff]
    %v3780 = vld [vmem:[%s3516 + $0x838] sm:$0xff]
    %v3781 = vld [vmem:[%s3516 + $0x840] sm:$0xff]
    %v3782 = vld [vmem:[%s3516 + $0x848] sm:$0xff]
    %v3783 = vld [vmem:[%s3516 + $0x850] sm:$0xff]
    %v3784 = vld [vmem:[%s3516 + $0x858] sm:$0xff]
    %v3785 = vld [vmem:[%s3516 + $0x860] sm:$0xff]
    %v3786 = vld [vmem:[%s3516 + $0x868] sm:$0xff]
    %v3787 = vld [vmem:[%s3516 + $0x870] sm:$0xff]
    %v3788 = vld [vmem:[%s3516 + $0x878] sm:$0xff]
    %v3789 = vld [vmem:[%s3516 + $0x880] sm:$0xff]
    %v3790 = vld [vmem:[%s3516 + $0x888] sm:$0xff]
    %v3791 = vld [vmem:[%s3516 + $0x890] sm:$0xff]
    %v3792 = vld [vmem:[%s3516 + $0x898] sm:$0xff]
    %v3793 = vld [vmem:[%s3516 + $0x8a0] sm:$0xff]
    %v3794 = vld [vmem:[%s3516 + $0x8a8] sm:$0xff]
    %v3795 = vld [vmem:[%s3516 + $0x8b0] sm:$0xff]
    %v3796 = vld [vmem:[%s3516 + $0x8b8] sm:$0xff]
    %v3797 = vld [vmem:[%s3516 + $0x8c0] sm:$0xff]
    %v3798 = vld [vmem:[%s3516 + $0x8c8] sm:$0xff]
    %v3799 = vld [vmem:[%s3516 + $0x8d0] sm:$0xff]
    %v3800 = vld [vmem:[%s3516 + $0x8d8] sm:$0xff]
    %v3801 = vld [vmem:[%s3516 + $0x8e0] sm:$0xff]
    %v3802 = vld [vmem:[%s3516 + $0x8e8] sm:$0xff]
    %v3803 = vld [vmem:[%s3516 + $0x8f0] sm:$0xff]
    %v3804 = vld [vmem:[%s3516 + $0x8f8] sm:$0xff]
    %v3806 = vperm.slane %v118, 0
    %v3807 = vperm.slane %v118, 1
    %v3808 = vperm.slane %v118, 2
    %v3809 = vperm.slane %v118, 3
    %v3810 = vperm.slane %v118, 4
    %v3811 = vperm.slane %v118, 5
    %v4106 = vunpack.c.l.b16 %v3517
    %v4107 = vunpack.c.h.b16 %v3517
    %v4108 = vunpack.c.l.b16 %v3518
    %v4109 = vunpack.c.h.b16 %v3518
    %v4110 = vunpack.c.l.b16 %v3519
    %v4111 = vunpack.c.h.b16 %v3519
    %v4112 = vunpack.c.l.b16 %v3520
    %v4113 = vunpack.c.h.b16 %v3520
    %v4114 = vunpack.c.l.b16 %v3521
    %v4115 = vunpack.c.h.b16 %v3521
    %v4116 = vunpack.c.l.b16 %v3522
    %v4117 = vunpack.c.h.b16 %v3522
    %v4118 = vunpack.c.l.b16 %v3523
    %v4119 = vunpack.c.h.b16 %v3523
    %v4120 = vunpack.c.l.b16 %v3524
    %v4121 = vunpack.c.h.b16 %v3524
    %v4122 = vunpack.c.l.b16 %v3525
    %v4123 = vunpack.c.h.b16 %v3525
    %v4124 = vunpack.c.l.b16 %v3526
    %v4125 = vunpack.c.h.b16 %v3526
    %v4126 = vunpack.c.l.b16 %v3527
    %v4127 = vunpack.c.h.b16 %v3527
    %v4128 = vunpack.c.l.b16 %v3528
    %v4129 = vunpack.c.h.b16 %v3528
    %v4130 = vunpack.c.l.b16 %v3529
    %v4131 = vunpack.c.h.b16 %v3529
    %v4132 = vunpack.c.l.b16 %v3530
    %v4133 = vunpack.c.h.b16 %v3530
    %v4134 = vunpack.c.l.b16 %v3531
    %v4135 = vunpack.c.h.b16 %v3531
    %v4136 = vunpack.c.l.b16 %v3532
    %v4137 = vunpack.c.h.b16 %v3532
    %v4138 = vunpack.c.l.b16 %v3533
    %v4139 = vunpack.c.h.b16 %v3533
    %v4140 = vunpack.c.l.b16 %v3534
    %v4141 = vunpack.c.h.b16 %v3534
    %v4142 = vunpack.c.l.b16 %v3535
    %v4143 = vunpack.c.h.b16 %v3535
    %v4144 = vunpack.c.l.b16 %v3536
    %v4145 = vunpack.c.h.b16 %v3536
    %v4146 = vunpack.c.l.b16 %v3537
    %v4147 = vunpack.c.h.b16 %v3537
    %v4148 = vunpack.c.l.b16 %v3538
    %v4149 = vunpack.c.h.b16 %v3538
    %v4150 = vunpack.c.l.b16 %v3539
    %v4151 = vunpack.c.h.b16 %v3539
    %v4152 = vunpack.c.l.b16 %v3540
    %v4153 = vunpack.c.h.b16 %v3540
    %v4154 = vunpack.c.l.b16 %v3541
    %v4155 = vunpack.c.h.b16 %v3541
    %v4156 = vunpack.c.l.b16 %v3542
    %v4157 = vunpack.c.h.b16 %v3542
    %v4158 = vunpack.c.l.b16 %v3543
    %v4159 = vunpack.c.h.b16 %v3543
    %v4160 = vunpack.c.l.b16 %v3544
    %v4161 = vunpack.c.h.b16 %v3544
    %v4162 = vunpack.c.l.b16 %v3545
    %v4163 = vunpack.c.h.b16 %v3545
    %v4164 = vunpack.c.l.b16 %v3546
    %v4165 = vunpack.c.h.b16 %v3546
    %v4166 = vunpack.c.l.b16 %v3547
    %v4167 = vunpack.c.h.b16 %v3547
    %v4168 = vunpack.c.l.b16 %v3548
    %v4169 = vunpack.c.h.b16 %v3548
    %v4170 = vunpack.c.l.b16 %v3549
    %v4171 = vunpack.c.h.b16 %v3549
    %v4172 = vunpack.c.l.b16 %v3550
    %v4173 = vunpack.c.h.b16 %v3550
    %v4174 = vunpack.c.l.b16 %v3551
    %v4175 = vunpack.c.h.b16 %v3551
    %v4176 = vunpack.c.l.b16 %v3552
    %v4177 = vunpack.c.h.b16 %v3552
    %v4178 = vunpack.c.l.b16 %v3553
    %v4179 = vunpack.c.h.b16 %v3553
    %v4180 = vunpack.c.l.b16 %v3554
    %v4181 = vunpack.c.h.b16 %v3554
    %v4182 = vunpack.c.l.b16 %v3555
    %v4183 = vunpack.c.h.b16 %v3555
    %v4184 = vunpack.c.l.b16 %v3556
    %v4185 = vunpack.c.h.b16 %v3556
    %v4186 = vunpack.c.l.b16 %v3557
    %v4187 = vunpack.c.h.b16 %v3557
    %v4188 = vunpack.c.l.b16 %v3558
    %v4189 = vunpack.c.h.b16 %v3558
    %v4190 = vunpack.c.l.b16 %v3559
    %v4191 = vunpack.c.h.b16 %v3559
    %v4192 = vunpack.c.l.b16 %v3560
    %v4193 = vunpack.c.h.b16 %v3560
    %v4194 = vunpack.c.l.b16 %v3561
    %v4195 = vunpack.c.h.b16 %v3561
    %v4196 = vunpack.c.l.b16 %v3562
    %v4197 = vunpack.c.h.b16 %v3562
    %v4198 = vunpack.c.l.b16 %v3563
    %v4199 = vunpack.c.h.b16 %v3563
    %v4200 = vunpack.c.l.b16 %v3564
    %v4201 = vunpack.c.h.b16 %v3564
    %v4202 = vunpack.c.l.b16 %v3565
    %v4203 = vunpack.c.h.b16 %v3565
    %v4204 = vunpack.c.l.b16 %v3566
    %v4205 = vunpack.c.h.b16 %v3566
    %v4206 = vunpack.c.l.b16 %v3567
    %v4207 = vunpack.c.h.b16 %v3567
    %v4208 = vunpack.c.l.b16 %v3568
    %v4209 = vunpack.c.h.b16 %v3568
    %v4210 = vunpack.c.l.b16 %v3569
    %v4211 = vunpack.c.h.b16 %v3569
    %v4212 = vunpack.c.l.b16 %v3570
    %v4213 = vunpack.c.h.b16 %v3570
    %v4214 = vunpack.c.l.b16 %v3571
    %v4215 = vunpack.c.h.b16 %v3571
    %v4216 = vunpack.c.l.b16 %v3572
    %v4217 = vunpack.c.h.b16 %v3572
    %v4218 = vunpack.c.l.b16 %v3573
    %v4219 = vunpack.c.h.b16 %v3573
    %v4220 = vunpack.c.l.b16 %v3574
    %v4221 = vunpack.c.h.b16 %v3574
    %v4222 = vunpack.c.l.b16 %v3575
    %v4223 = vunpack.c.h.b16 %v3575
    %v4224 = vunpack.c.l.b16 %v3576
    %v4225 = vunpack.c.h.b16 %v3576
    %v4226 = vunpack.c.l.b16 %v3577
    %v4227 = vunpack.c.h.b16 %v3577
    %v4228 = vunpack.c.l.b16 %v3578
    %v4229 = vunpack.c.h.b16 %v3578
    %v4230 = vunpack.c.l.b16 %v3579
    %v4231 = vunpack.c.h.b16 %v3579
    %v4232 = vunpack.c.l.b16 %v3580
    %v4233 = vunpack.c.h.b16 %v3580
    %v4234 = vunpack.c.l.b16 %v3581
    %v4235 = vunpack.c.h.b16 %v3581
    %v4236 = vunpack.c.l.b16 %v3582
    %v4237 = vunpack.c.h.b16 %v3582
    %v4238 = vunpack.c.l.b16 %v3583
    %v4239 = vunpack.c.h.b16 %v3583
    %v4240 = vunpack.c.l.b16 %v3584
    %v4241 = vunpack.c.h.b16 %v3584
    %v4242 = vunpack.c.l.b16 %v3585
    %v4243 = vunpack.c.h.b16 %v3585
    %v4244 = vunpack.c.l.b16 %v3586
    %v4245 = vunpack.c.h.b16 %v3586
    %v4246 = vunpack.c.l.b16 %v3587
    %v4247 = vunpack.c.h.b16 %v3587
    %v4248 = vunpack.c.l.b16 %v3588
    %v4249 = vunpack.c.h.b16 %v3588
    %v4250 = vunpack.c.l.b16 %v3589
    %v4251 = vunpack.c.h.b16 %v3589
    %v4252 = vunpack.c.l.b16 %v3590
    %v4253 = vunpack.c.h.b16 %v3590
    %v4254 = vunpack.c.l.b16 %v3591
    %v4255 = vunpack.c.h.b16 %v3591
    %v4256 = vunpack.c.l.b16 %v3592
    %v4257 = vunpack.c.h.b16 %v3592
    %v4258 = vunpack.c.l.b16 %v3593
    %v4259 = vunpack.c.h.b16 %v3593
    %v4260 = vunpack.c.l.b16 %v3594
    %v4261 = vunpack.c.h.b16 %v3594
    %v4262 = vunpack.c.l.b16 %v3595
    %v4263 = vunpack.c.h.b16 %v3595
    %v4264 = vunpack.c.l.b16 %v3596
    %v4265 = vunpack.c.h.b16 %v3596
    %v4266 = vunpack.c.l.b16 %v3597
    %v4267 = vunpack.c.h.b16 %v3597
    %v4268 = vunpack.c.l.b16 %v3598
    %v4269 = vunpack.c.h.b16 %v3598
    %v4270 = vunpack.c.l.b16 %v3599
    %v4271 = vunpack.c.h.b16 %v3599
    %v4272 = vunpack.c.l.b16 %v3600
    %v4273 = vunpack.c.h.b16 %v3600
    %v4274 = vunpack.c.l.b16 %v3601
    %v4275 = vunpack.c.h.b16 %v3601
    %v4276 = vunpack.c.l.b16 %v3602
    %v4277 = vunpack.c.h.b16 %v3602
    %v4278 = vunpack.c.l.b16 %v3603
    %v4279 = vunpack.c.h.b16 %v3603
    %v4280 = vunpack.c.l.b16 %v3604
    %v4281 = vunpack.c.h.b16 %v3604
    %v4282 = vunpack.c.l.b16 %v3605
    %v4283 = vunpack.c.h.b16 %v3605
    %v4284 = vunpack.c.l.b16 %v3606
    %v4285 = vunpack.c.h.b16 %v3606
    %v4286 = vunpack.c.l.b16 %v3607
    %v4287 = vunpack.c.h.b16 %v3607
    %v4288 = vunpack.c.l.b16 %v3608
    %v4289 = vunpack.c.h.b16 %v3608
    %v4290 = vunpack.c.l.b16 %v3609
    %v4291 = vunpack.c.h.b16 %v3609
    %v4292 = vunpack.c.l.b16 %v3610
    %v4293 = vunpack.c.h.b16 %v3610
    %v4294 = vunpack.c.l.b16 %v3611
    %v4295 = vunpack.c.h.b16 %v3611
    %v4296 = vunpack.c.l.b16 %v3612
    %v4297 = vunpack.c.h.b16 %v3612
    %v4298 = vunpack.c.l.b16 %v3613
    %v4299 = vunpack.c.h.b16 %v3613
    %v4300 = vunpack.c.l.b16 %v3614
    %v4301 = vunpack.c.h.b16 %v3614
    %v4302 = vunpack.c.l.b16 %v3615
    %v4303 = vunpack.c.h.b16 %v3615
    %v4304 = vunpack.c.l.b16 %v3616
    %v4305 = vunpack.c.h.b16 %v3616
    %v4306 = vunpack.c.l.b16 %v3617
    %v4307 = vunpack.c.h.b16 %v3617
    %v4308 = vunpack.c.l.b16 %v3618
    %v4309 = vunpack.c.h.b16 %v3618
    %v4310 = vunpack.c.l.b16 %v3619
    %v4311 = vunpack.c.h.b16 %v3619
    %v4312 = vunpack.c.l.b16 %v3620
    %v4313 = vunpack.c.h.b16 %v3620
    %v4314 = vunpack.c.l.b16 %v3621
    %v4315 = vunpack.c.h.b16 %v3621
    %v4316 = vunpack.c.l.b16 %v3622
    %v4317 = vunpack.c.h.b16 %v3622
    %v4318 = vunpack.c.l.b16 %v3623
    %v4319 = vunpack.c.h.b16 %v3623
    %v4320 = vunpack.c.l.b16 %v3624
    %v4321 = vunpack.c.h.b16 %v3624
    %v4322 = vunpack.c.l.b16 %v3625
    %v4323 = vunpack.c.h.b16 %v3625
    %v4324 = vunpack.c.l.b16 %v3626
    %v4325 = vunpack.c.h.b16 %v3626
    %v4326 = vunpack.c.l.b16 %v3627
    %v4327 = vunpack.c.h.b16 %v3627
    %v4328 = vunpack.c.l.b16 %v3628
    %v4329 = vunpack.c.h.b16 %v3628
    %v4330 = vunpack.c.l.b16 %v3629
    %v4331 = vunpack.c.h.b16 %v3629
    %v4332 = vunpack.c.l.b16 %v3630
    %v4333 = vunpack.c.h.b16 %v3630
    %v4334 = vunpack.c.l.b16 %v3631
    %v4335 = vunpack.c.h.b16 %v3631
    %v4336 = vunpack.c.l.b16 %v3632
    %v4337 = vunpack.c.h.b16 %v3632
    %v4338 = vunpack.c.l.b16 %v3633
    %v4339 = vunpack.c.h.b16 %v3633
    %v4340 = vunpack.c.l.b16 %v3634
    %v4341 = vunpack.c.h.b16 %v3634
    %v4342 = vunpack.c.l.b16 %v3635
    %v4343 = vunpack.c.h.b16 %v3635
    %v4344 = vunpack.c.l.b16 %v3636
    %v4345 = vunpack.c.h.b16 %v3636
    %v4346 = vunpack.c.l.b16 %v3637
    %v4347 = vunpack.c.h.b16 %v3637
    %v4348 = vunpack.c.l.b16 %v3638
    %v4349 = vunpack.c.h.b16 %v3638
    %v4350 = vunpack.c.l.b16 %v3639
    %v4351 = vunpack.c.h.b16 %v3639
    %v4352 = vunpack.c.l.b16 %v3640
    %v4353 = vunpack.c.h.b16 %v3640
    %v4354 = vunpack.c.l.b16 %v3641
    %v4355 = vunpack.c.h.b16 %v3641
    %v4356 = vunpack.c.l.b16 %v3642
    %v4357 = vunpack.c.h.b16 %v3642
    %v4358 = vunpack.c.l.b16 %v3643
    %v4359 = vunpack.c.h.b16 %v3643
    %v4360 = vunpack.c.l.b16 %v3644
    %v4361 = vunpack.c.h.b16 %v3644
    %v4362 = vunpack.c.l.b16 %v3645
    %v4363 = vunpack.c.h.b16 %v3645
    %v4364 = vunpack.c.l.b16 %v3646
    %v4365 = vunpack.c.h.b16 %v3646
    %v4366 = vunpack.c.l.b16 %v3647
    %v4367 = vunpack.c.h.b16 %v3647
    %v4368 = vunpack.c.l.b16 %v3648
    %v4369 = vunpack.c.h.b16 %v3648
    %v4370 = vunpack.c.l.b16 %v3649
    %v4371 = vunpack.c.h.b16 %v3649
    %v4372 = vunpack.c.l.b16 %v3650
    %v4373 = vunpack.c.h.b16 %v3650
    %v4374 = vunpack.c.l.b16 %v3651
    %v4375 = vunpack.c.h.b16 %v3651
    %v4376 = vunpack.c.l.b16 %v3652
    %v4377 = vunpack.c.h.b16 %v3652
    %v4378 = vunpack.c.l.b16 %v3653
    %v4379 = vunpack.c.h.b16 %v3653
    %v4380 = vunpack.c.l.b16 %v3654
    %v4381 = vunpack.c.h.b16 %v3654
    %v4382 = vunpack.c.l.b16 %v3655
    %v4383 = vunpack.c.h.b16 %v3655
    %v4384 = vunpack.c.l.b16 %v3656
    %v4385 = vunpack.c.h.b16 %v3656
    %v4386 = vunpack.c.l.b16 %v3657
    %v4387 = vunpack.c.h.b16 %v3657
    %v4388 = vunpack.c.l.b16 %v3658
    %v4389 = vunpack.c.h.b16 %v3658
    %v4390 = vunpack.c.l.b16 %v3659
    %v4391 = vunpack.c.h.b16 %v3659
    %v4392 = vunpack.c.l.b16 %v3660
    %v4393 = vunpack.c.h.b16 %v3660
    %v4394 = vunpack.c.l.b16 %v3661
    %v4395 = vunpack.c.h.b16 %v3661
    %v4396 = vunpack.c.l.b16 %v3662
    %v4397 = vunpack.c.h.b16 %v3662
    %v4398 = vunpack.c.l.b16 %v3663
    %v4399 = vunpack.c.h.b16 %v3663
    %v4400 = vunpack.c.l.b16 %v3664
    %v4401 = vunpack.c.h.b16 %v3664
    %v4402 = vunpack.c.l.b16 %v3665
    %v4403 = vunpack.c.h.b16 %v3665
    %v4404 = vunpack.c.l.b16 %v3666
    %v4405 = vunpack.c.h.b16 %v3666
    %v4406 = vunpack.c.l.b16 %v3667
    %v4407 = vunpack.c.h.b16 %v3667
    %v4408 = vunpack.c.l.b16 %v3668
    %v4409 = vunpack.c.h.b16 %v3668
    %v4410 = vunpack.c.l.b16 %v3669
    %v4411 = vunpack.c.h.b16 %v3669
    %v4412 = vunpack.c.l.b16 %v3670
    %v4413 = vunpack.c.h.b16 %v3670
    %v4414 = vunpack.c.l.b16 %v3671
    %v4415 = vunpack.c.h.b16 %v3671
    %v4416 = vunpack.c.l.b16 %v3672
    %v4417 = vunpack.c.h.b16 %v3672
    %v4418 = vunpack.c.l.b16 %v3673
    %v4419 = vunpack.c.h.b16 %v3673
    %v4420 = vunpack.c.l.b16 %v3674
    %v4421 = vunpack.c.h.b16 %v3674
    %v4422 = vunpack.c.l.b16 %v3675
    %v4423 = vunpack.c.h.b16 %v3675
    %v4424 = vunpack.c.l.b16 %v3676
    %v4425 = vunpack.c.h.b16 %v3676
    %v4426 = vunpack.c.l.b16 %v3677
    %v4427 = vunpack.c.h.b16 %v3677
    %v4428 = vunpack.c.l.b16 %v3678
    %v4429 = vunpack.c.h.b16 %v3678
    %v4430 = vunpack.c.l.b16 %v3679
    %v4431 = vunpack.c.h.b16 %v3679
    %v4432 = vunpack.c.l.b16 %v3680
    %v4433 = vunpack.c.h.b16 %v3680
    %v4434 = vunpack.c.l.b16 %v3681
    %v4435 = vunpack.c.h.b16 %v3681
    %v4436 = vunpack.c.l.b16 %v3682
    %v4437 = vunpack.c.h.b16 %v3682
    %v4438 = vunpack.c.l.b16 %v3683
    %v4439 = vunpack.c.h.b16 %v3683
    %v4440 = vunpack.c.l.b16 %v3684
    %v4441 = vunpack.c.h.b16 %v3684
    %v4442 = vunpack.c.l.b16 %v3685
    %v4443 = vunpack.c.h.b16 %v3685
    %v4444 = vunpack.c.l.b16 %v3686
    %v4445 = vunpack.c.h.b16 %v3686
    %v4446 = vunpack.c.l.b16 %v3687
    %v4447 = vunpack.c.h.b16 %v3687
    %v4448 = vunpack.c.l.b16 %v3688
    %v4449 = vunpack.c.h.b16 %v3688
    %v4450 = vunpack.c.l.b16 %v3689
    %v4451 = vunpack.c.h.b16 %v3689
    %v4452 = vunpack.c.l.b16 %v3690
    %v4453 = vunpack.c.h.b16 %v3690
    %v4454 = vunpack.c.l.b16 %v3691
    %v4455 = vunpack.c.h.b16 %v3691
    %v4456 = vunpack.c.l.b16 %v3692
    %v4457 = vunpack.c.h.b16 %v3692
    %v4458 = vunpack.c.l.b16 %v3693
    %v4459 = vunpack.c.h.b16 %v3693
    %v4460 = vunpack.c.l.b16 %v3694
    %v4461 = vunpack.c.h.b16 %v3694
    %v4462 = vunpack.c.l.b16 %v3695
    %v4463 = vunpack.c.h.b16 %v3695
    %v4464 = vunpack.c.l.b16 %v3696
    %v4465 = vunpack.c.h.b16 %v3696
    %v4466 = vunpack.c.l.b16 %v3697
    %v4467 = vunpack.c.h.b16 %v3697
    %v4468 = vunpack.c.l.b16 %v3698
    %v4469 = vunpack.c.h.b16 %v3698
    %v4470 = vunpack.c.l.b16 %v3699
    %v4471 = vunpack.c.h.b16 %v3699
    %v4472 = vunpack.c.l.b16 %v3700
    %v4473 = vunpack.c.h.b16 %v3700
    %v4474 = vunpack.c.l.b16 %v3701
    %v4475 = vunpack.c.h.b16 %v3701
    %v4476 = vunpack.c.l.b16 %v3702
    %v4477 = vunpack.c.h.b16 %v3702
    %v4478 = vunpack.c.l.b16 %v3703
    %v4479 = vunpack.c.h.b16 %v3703
    %v4480 = vunpack.c.l.b16 %v3704
    %v4481 = vunpack.c.h.b16 %v3704
    %v4482 = vunpack.c.l.b16 %v3705
    %v4483 = vunpack.c.h.b16 %v3705
    %v4484 = vunpack.c.l.b16 %v3706
    %v4485 = vunpack.c.h.b16 %v3706
    %v4486 = vunpack.c.l.b16 %v3707
    %v4487 = vunpack.c.h.b16 %v3707
    %v4488 = vunpack.c.l.b16 %v3708
    %v4489 = vunpack.c.h.b16 %v3708
    %v4490 = vunpack.c.l.b16 %v3709
    %v4491 = vunpack.c.h.b16 %v3709
    %v4492 = vunpack.c.l.b16 %v3710
    %v4493 = vunpack.c.h.b16 %v3710
    %v4494 = vunpack.c.l.b16 %v3711
    %v4495 = vunpack.c.h.b16 %v3711
    %v4496 = vunpack.c.l.b16 %v3712
    %v4497 = vunpack.c.h.b16 %v3712
    %v4498 = vunpack.c.l.b16 %v3713
    %v4499 = vunpack.c.h.b16 %v3713
    %v4500 = vunpack.c.l.b16 %v3714
    %v4501 = vunpack.c.h.b16 %v3714
    %v4502 = vunpack.c.l.b16 %v3715
    %v4503 = vunpack.c.h.b16 %v3715
    %v4504 = vunpack.c.l.b16 %v3716
    %v4505 = vunpack.c.h.b16 %v3716
    %v4506 = vunpack.c.l.b16 %v3717
    %v4507 = vunpack.c.h.b16 %v3717
    %v4508 = vunpack.c.l.b16 %v3718
    %v4509 = vunpack.c.h.b16 %v3718
    %v4510 = vunpack.c.l.b16 %v3719
    %v4511 = vunpack.c.h.b16 %v3719
    %v4512 = vunpack.c.l.b16 %v3720
    %v4513 = vunpack.c.h.b16 %v3720
    %v4514 = vunpack.c.l.b16 %v3721
    %v4515 = vunpack.c.h.b16 %v3721
    %v4516 = vunpack.c.l.b16 %v3722
    %v4517 = vunpack.c.h.b16 %v3722
    %v4518 = vunpack.c.l.b16 %v3723
    %v4519 = vunpack.c.h.b16 %v3723
    %v4520 = vunpack.c.l.b16 %v3724
    %v4521 = vunpack.c.h.b16 %v3724
    %v4522 = vunpack.c.l.b16 %v3725
    %v4523 = vunpack.c.h.b16 %v3725
    %v4524 = vunpack.c.l.b16 %v3726
    %v4525 = vunpack.c.h.b16 %v3726
    %v4526 = vunpack.c.l.b16 %v3727
    %v4527 = vunpack.c.h.b16 %v3727
    %v4528 = vunpack.c.l.b16 %v3728
    %v4529 = vunpack.c.h.b16 %v3728
    %v4530 = vunpack.c.l.b16 %v3729
    %v4531 = vunpack.c.h.b16 %v3729
    %v4532 = vunpack.c.l.b16 %v3730
    %v4533 = vunpack.c.h.b16 %v3730
    %v4534 = vunpack.c.l.b16 %v3731
    %v4535 = vunpack.c.h.b16 %v3731
    %v4536 = vunpack.c.l.b16 %v3732
    %v4537 = vunpack.c.h.b16 %v3732
    %v4538 = vunpack.c.l.b16 %v3733
    %v4539 = vunpack.c.h.b16 %v3733
    %v4540 = vunpack.c.l.b16 %v3734
    %v4541 = vunpack.c.h.b16 %v3734
    %v4542 = vunpack.c.l.b16 %v3735
    %v4543 = vunpack.c.h.b16 %v3735
    %v4544 = vunpack.c.l.b16 %v3736
    %v4545 = vunpack.c.h.b16 %v3736
    %v4546 = vunpack.c.l.b16 %v3737
    %v4547 = vunpack.c.h.b16 %v3737
    %v4548 = vunpack.c.l.b16 %v3738
    %v4549 = vunpack.c.h.b16 %v3738
    %v4550 = vunpack.c.l.b16 %v3739
    %v4551 = vunpack.c.h.b16 %v3739
    %v4552 = vunpack.c.l.b16 %v3740
    %v4553 = vunpack.c.h.b16 %v3740
    %v4554 = vunpack.c.l.b16 %v3741
    %v4555 = vunpack.c.h.b16 %v3741
    %v4556 = vunpack.c.l.b16 %v3742
    %v4557 = vunpack.c.h.b16 %v3742
    %v4558 = vunpack.c.l.b16 %v3743
    %v4559 = vunpack.c.h.b16 %v3743
    %v4560 = vunpack.c.l.b16 %v3744
    %v4561 = vunpack.c.h.b16 %v3744
    %v4562 = vunpack.c.l.b16 %v3745
    %v4563 = vunpack.c.h.b16 %v3745
    %v4564 = vunpack.c.l.b16 %v3746
    %v4565 = vunpack.c.h.b16 %v3746
    %v4566 = vunpack.c.l.b16 %v3747
    %v4567 = vunpack.c.h.b16 %v3747
    %v4568 = vunpack.c.l.b16 %v3748
    %v4569 = vunpack.c.h.b16 %v3748
    %v4570 = vunpack.c.l.b16 %v3749
    %v4571 = vunpack.c.h.b16 %v3749
    %v4572 = vunpack.c.l.b16 %v3750
    %v4573 = vunpack.c.h.b16 %v3750
    %v4574 = vunpack.c.l.b16 %v3751
    %v4575 = vunpack.c.h.b16 %v3751
    %v4576 = vunpack.c.l.b16 %v3752
    %v4577 = vunpack.c.h.b16 %v3752
    %v4578 = vunpack.c.l.b16 %v3753
    %v4579 = vunpack.c.h.b16 %v3753
    %v4580 = vunpack.c.l.b16 %v3754
    %v4581 = vunpack.c.h.b16 %v3754
    %v4582 = vunpack.c.l.b16 %v3755
    %v4583 = vunpack.c.h.b16 %v3755
    %v4584 = vunpack.c.l.b16 %v3756
    %v4585 = vunpack.c.h.b16 %v3756
    %v4586 = vunpack.c.l.b16 %v3757
    %v4587 = vunpack.c.h.b16 %v3757
    %v4588 = vunpack.c.l.b16 %v3758
    %v4589 = vunpack.c.h.b16 %v3758
    %v4590 = vunpack.c.l.b16 %v3759
    %v4591 = vunpack.c.h.b16 %v3759
    %v4592 = vunpack.c.l.b16 %v3760
    %v4593 = vunpack.c.h.b16 %v3760
    %v4594 = vunpack.c.l.b16 %v3761
    %v4595 = vunpack.c.h.b16 %v3761
    %v4596 = vunpack.c.l.b16 %v3762
    %v4597 = vunpack.c.h.b16 %v3762
    %v4598 = vunpack.c.l.b16 %v3763
    %v4599 = vunpack.c.h.b16 %v3763
    %v4600 = vunpack.c.l.b16 %v3764
    %v4601 = vunpack.c.h.b16 %v3764
    %v4602 = vunpack.c.l.b16 %v3765
    %v4603 = vunpack.c.h.b16 %v3765
    %v4604 = vunpack.c.l.b16 %v3766
    %v4605 = vunpack.c.h.b16 %v3766
    %v4606 = vunpack.c.l.b16 %v3767
    %v4607 = vunpack.c.h.b16 %v3767
    %v4608 = vunpack.c.l.b16 %v3768
    %v4609 = vunpack.c.h.b16 %v3768
    %v4610 = vunpack.c.l.b16 %v3769
    %v4611 = vunpack.c.h.b16 %v3769
    %v4612 = vunpack.c.l.b16 %v3770
    %v4613 = vunpack.c.h.b16 %v3770
    %v4614 = vunpack.c.l.b16 %v3771
    %v4615 = vunpack.c.h.b16 %v3771
    %v4616 = vunpack.c.l.b16 %v3772
    %v4617 = vunpack.c.h.b16 %v3772
    %v4618 = vunpack.c.l.b16 %v3773
    %v4619 = vunpack.c.h.b16 %v3773
    %v4620 = vunpack.c.l.b16 %v3774
    %v4621 = vunpack.c.h.b16 %v3774
    %v4622 = vunpack.c.l.b16 %v3775
    %v4623 = vunpack.c.h.b16 %v3775
    %v4624 = vunpack.c.l.b16 %v3776
    %v4625 = vunpack.c.h.b16 %v3776
    %v4626 = vunpack.c.l.b16 %v3777
    %v4627 = vunpack.c.h.b16 %v3777
    %v4628 = vunpack.c.l.b16 %v3778
    %v4629 = vunpack.c.h.b16 %v3778
    %v4630 = vunpack.c.l.b16 %v3779
    %v4631 = vunpack.c.h.b16 %v3779
    %v4632 = vunpack.c.l.b16 %v3780
    %v4633 = vunpack.c.h.b16 %v3780
    %v4634 = vunpack.c.l.b16 %v3781
    %v4635 = vunpack.c.h.b16 %v3781
    %v4636 = vunpack.c.l.b16 %v3782
    %v4637 = vunpack.c.h.b16 %v3782
    %v4638 = vunpack.c.l.b16 %v3783
    %v4639 = vunpack.c.h.b16 %v3783
    %v4640 = vunpack.c.l.b16 %v3784
    %v4641 = vunpack.c.h.b16 %v3784
    %v4642 = vunpack.c.l.b16 %v3785
    %v4643 = vunpack.c.h.b16 %v3785
    %v4644 = vunpack.c.l.b16 %v3786
    %v4645 = vunpack.c.h.b16 %v3786
    %v4646 = vunpack.c.l.b16 %v3787
    %v4647 = vunpack.c.h.b16 %v3787
    %v4648 = vunpack.c.l.b16 %v3788
    %v4649 = vunpack.c.h.b16 %v3788
    %v4650 = vunpack.c.l.b16 %v3789
    %v4651 = vunpack.c.h.b16 %v3789
    %v4652 = vunpack.c.l.b16 %v3790
    %v4653 = vunpack.c.h.b16 %v3790
    %v4654 = vunpack.c.l.b16 %v3791
    %v4655 = vunpack.c.h.b16 %v3791
    %v4656 = vunpack.c.l.b16 %v3792
    %v4657 = vunpack.c.h.b16 %v3792
    %v4658 = vunpack.c.l.b16 %v3793
    %v4659 = vunpack.c.h.b16 %v3793
    %v4660 = vunpack.c.l.b16 %v3794
    %v4661 = vunpack.c.h.b16 %v3794
    %v4662 = vunpack.c.l.b16 %v3795
    %v4663 = vunpack.c.h.b16 %v3795
    %v4664 = vunpack.c.l.b16 %v3796
    %v4665 = vunpack.c.h.b16 %v3796
    %v4666 = vunpack.c.l.b16 %v3797
    %v4667 = vunpack.c.h.b16 %v3797
    %v4668 = vunpack.c.l.b16 %v3798
    %v4669 = vunpack.c.h.b16 %v3798
    %v4670 = vunpack.c.l.b16 %v3799
    %v4671 = vunpack.c.h.b16 %v3799
    %v4672 = vunpack.c.l.b16 %v3800
    %v4673 = vunpack.c.h.b16 %v3800
    %v4674 = vunpack.c.l.b16 %v3801
    %v4675 = vunpack.c.h.b16 %v3801
    %v4676 = vunpack.c.l.b16 %v3802
    %v4677 = vunpack.c.h.b16 %v3802
    %v4678 = vunpack.c.l.b16 %v3803
    %v4679 = vunpack.c.h.b16 %v3803
    %v4680 = vunpack.c.l.b16 %v3804
    %v4681 = vunpack.c.h.b16 %v3804
    %v4682 = vpack.c.b16 %v4112, %v4106
    %v4683 = vpack.c.b16 %v4113, %v4107
    %v4684 = vpack.c.b16 %v4114, %v4108
    %v4685 = vpack.c.b16 %v4115, %v4109
    %v4686 = vpack.c.b16 %v4116, %v4110
    %v4687 = vpack.c.b16 %v4117, %v4111
    %v4688 = vpack.c.b16 %v4124, %v4118
    %v4689 = vpack.c.b16 %v4125, %v4119
    %v4690 = vpack.c.b16 %v4126, %v4120
    %v4691 = vpack.c.b16 %v4127, %v4121
    %v4692 = vpack.c.b16 %v4128, %v4122
    %v4693 = vpack.c.b16 %v4129, %v4123
    %v4694 = vpack.c.b16 %v4136, %v4130
    %v4695 = vpack.c.b16 %v4137, %v4131
    %v4696 = vpack.c.b16 %v4138, %v4132
    %v4697 = vpack.c.b16 %v4139, %v4133
    %v4698 = vpack.c.b16 %v4140, %v4134
    %v4699 = vpack.c.b16 %v4141, %v4135
    %v4700 = vpack.c.b16 %v4148, %v4142
    %v4701 = vpack.c.b16 %v4149, %v4143
    %v4702 = vpack.c.b16 %v4150, %v4144
    %v4703 = vpack.c.b16 %v4151, %v4145
    %v4704 = vpack.c.b16 %v4152, %v4146
    %v4705 = vpack.c.b16 %v4153, %v4147
    %v4706 = vpack.c.b16 %v4160, %v4154
    %v4707 = vpack.c.b16 %v4161, %v4155
    %v4708 = vpack.c.b16 %v4162, %v4156
    %v4709 = vpack.c.b16 %v4163, %v4157
    %v4710 = vpack.c.b16 %v4164, %v4158
    %v4711 = vpack.c.b16 %v4165, %v4159
    %v4712 = vpack.c.b16 %v4172, %v4166
    %v4713 = vpack.c.b16 %v4173, %v4167
    %v4714 = vpack.c.b16 %v4174, %v4168
    %v4715 = vpack.c.b16 %v4175, %v4169
    %v4716 = vpack.c.b16 %v4176, %v4170
    %v4717 = vpack.c.b16 %v4177, %v4171
    %v4718 = vpack.c.b16 %v4184, %v4178
    %v4719 = vpack.c.b16 %v4185, %v4179
    %v4720 = vpack.c.b16 %v4186, %v4180
    %v4721 = vpack.c.b16 %v4187, %v4181
    %v4722 = vpack.c.b16 %v4188, %v4182
    %v4723 = vpack.c.b16 %v4189, %v4183
    %v4724 = vpack.c.b16 %v4196, %v4190
    %v4725 = vpack.c.b16 %v4197, %v4191
    %v4726 = vpack.c.b16 %v4198, %v4192
    %v4727 = vpack.c.b16 %v4199, %v4193
    %v4728 = vpack.c.b16 %v4200, %v4194
    %v4729 = vpack.c.b16 %v4201, %v4195
    %v4730 = vpack.c.b16 %v4208, %v4202
    %v4731 = vpack.c.b16 %v4209, %v4203
    %v4732 = vpack.c.b16 %v4210, %v4204
    %v4733 = vpack.c.b16 %v4211, %v4205
    %v4734 = vpack.c.b16 %v4212, %v4206
    %v4735 = vpack.c.b16 %v4213, %v4207
    %v4736 = vpack.c.b16 %v4220, %v4214
    %v4737 = vpack.c.b16 %v4221, %v4215
    %v4738 = vpack.c.b16 %v4222, %v4216
    %v4739 = vpack.c.b16 %v4223, %v4217
    %v4740 = vpack.c.b16 %v4224, %v4218
    %v4741 = vpack.c.b16 %v4225, %v4219
    %v4742 = vpack.c.b16 %v4232, %v4226
    %v4743 = vpack.c.b16 %v4233, %v4227
    %v4744 = vpack.c.b16 %v4234, %v4228
    %v4745 = vpack.c.b16 %v4235, %v4229
    %v4746 = vpack.c.b16 %v4236, %v4230
    %v4747 = vpack.c.b16 %v4237, %v4231
    %v4748 = vpack.c.b16 %v4244, %v4238
    %v4749 = vpack.c.b16 %v4245, %v4239
    %v4750 = vpack.c.b16 %v4246, %v4240
    %v4751 = vpack.c.b16 %v4247, %v4241
    %v4752 = vpack.c.b16 %v4248, %v4242
    %v4753 = vpack.c.b16 %v4249, %v4243
    %v4754 = vpack.c.b16 %v4256, %v4250
    %v4755 = vpack.c.b16 %v4257, %v4251
    %v4756 = vpack.c.b16 %v4258, %v4252
    %v4757 = vpack.c.b16 %v4259, %v4253
    %v4758 = vpack.c.b16 %v4260, %v4254
    %v4759 = vpack.c.b16 %v4261, %v4255
    %v4760 = vpack.c.b16 %v4268, %v4262
    %v4761 = vpack.c.b16 %v4269, %v4263
    %v4762 = vpack.c.b16 %v4270, %v4264
    %v4763 = vpack.c.b16 %v4271, %v4265
    %v4764 = vpack.c.b16 %v4272, %v4266
    %v4765 = vpack.c.b16 %v4273, %v4267
    %v4766 = vpack.c.b16 %v4280, %v4274
    %v4767 = vpack.c.b16 %v4281, %v4275
    %v4768 = vpack.c.b16 %v4282, %v4276
    %v4769 = vpack.c.b16 %v4283, %v4277
    %v4770 = vpack.c.b16 %v4284, %v4278
    %v4771 = vpack.c.b16 %v4285, %v4279
    %v4772 = vpack.c.b16 %v4292, %v4286
    %v4773 = vpack.c.b16 %v4293, %v4287
    %v4774 = vpack.c.b16 %v4294, %v4288
    %v4775 = vpack.c.b16 %v4295, %v4289
    %v4776 = vpack.c.b16 %v4296, %v4290
    %v4777 = vpack.c.b16 %v4297, %v4291
    %v4778 = vpack.c.b16 %v4304, %v4298
    %v4779 = vpack.c.b16 %v4305, %v4299
    %v4780 = vpack.c.b16 %v4306, %v4300
    %v4781 = vpack.c.b16 %v4307, %v4301
    %v4782 = vpack.c.b16 %v4308, %v4302
    %v4783 = vpack.c.b16 %v4309, %v4303
    %v4784 = vpack.c.b16 %v4316, %v4310
    %v4785 = vpack.c.b16 %v4317, %v4311
    %v4786 = vpack.c.b16 %v4318, %v4312
    %v4787 = vpack.c.b16 %v4319, %v4313
    %v4788 = vpack.c.b16 %v4320, %v4314
    %v4789 = vpack.c.b16 %v4321, %v4315
    %v4790 = vpack.c.b16 %v4328, %v4322
    %v4791 = vpack.c.b16 %v4329, %v4323
    %v4792 = vpack.c.b16 %v4330, %v4324
    %v4793 = vpack.c.b16 %v4331, %v4325
    %v4794 = vpack.c.b16 %v4332, %v4326
    %v4795 = vpack.c.b16 %v4333, %v4327
    %v4796 = vpack.c.b16 %v4340, %v4334
    %v4797 = vpack.c.b16 %v4341, %v4335
    %v4798 = vpack.c.b16 %v4342, %v4336
    %v4799 = vpack.c.b16 %v4343, %v4337
    %v4800 = vpack.c.b16 %v4344, %v4338
    %v4801 = vpack.c.b16 %v4345, %v4339
    %v4802 = vpack.c.b16 %v4352, %v4346
    %v4803 = vpack.c.b16 %v4353, %v4347
    %v4804 = vpack.c.b16 %v4354, %v4348
    %v4805 = vpack.c.b16 %v4355, %v4349
    %v4806 = vpack.c.b16 %v4356, %v4350
    %v4807 = vpack.c.b16 %v4357, %v4351
    %v4808 = vpack.c.b16 %v4364, %v4358
    %v4809 = vpack.c.b16 %v4365, %v4359
    %v4810 = vpack.c.b16 %v4366, %v4360
    %v4811 = vpack.c.b16 %v4367, %v4361
    %v4812 = vpack.c.b16 %v4368, %v4362
    %v4813 = vpack.c.b16 %v4369, %v4363
    %v4814 = vpack.c.b16 %v4376, %v4370
    %v4815 = vpack.c.b16 %v4377, %v4371
    %v4816 = vpack.c.b16 %v4378, %v4372
    %v4817 = vpack.c.b16 %v4379, %v4373
    %v4818 = vpack.c.b16 %v4380, %v4374
    %v4819 = vpack.c.b16 %v4381, %v4375
    %v4820 = vpack.c.b16 %v4388, %v4382
    %v4821 = vpack.c.b16 %v4389, %v4383
    %v4822 = vpack.c.b16 %v4390, %v4384
    %v4823 = vpack.c.b16 %v4391, %v4385
    %v4824 = vpack.c.b16 %v4392, %v4386
    %v4825 = vpack.c.b16 %v4393, %v4387
    %v4826 = vpack.c.b16 %v4400, %v4394
    %v4827 = vpack.c.b16 %v4401, %v4395
    %v4828 = vpack.c.b16 %v4402, %v4396
    %v4829 = vpack.c.b16 %v4403, %v4397
    %v4830 = vpack.c.b16 %v4404, %v4398
    %v4831 = vpack.c.b16 %v4405, %v4399
    %v4832 = vpack.c.b16 %v4412, %v4406
    %v4833 = vpack.c.b16 %v4413, %v4407
    %v4834 = vpack.c.b16 %v4414, %v4408
    %v4835 = vpack.c.b16 %v4415, %v4409
    %v4836 = vpack.c.b16 %v4416, %v4410
    %v4837 = vpack.c.b16 %v4417, %v4411
    %v4838 = vpack.c.b16 %v4424, %v4418
    %v4839 = vpack.c.b16 %v4425, %v4419
    %v4840 = vpack.c.b16 %v4426, %v4420
    %v4841 = vpack.c.b16 %v4427, %v4421
    %v4842 = vpack.c.b16 %v4428, %v4422
    %v4843 = vpack.c.b16 %v4429, %v4423
    %v4844 = vpack.c.b16 %v4436, %v4430
    %v4845 = vpack.c.b16 %v4437, %v4431
    %v4846 = vpack.c.b16 %v4438, %v4432
    %v4847 = vpack.c.b16 %v4439, %v4433
    %v4848 = vpack.c.b16 %v4440, %v4434
    %v4849 = vpack.c.b16 %v4441, %v4435
    %v4850 = vpack.c.b16 %v4448, %v4442
    %v4851 = vpack.c.b16 %v4449, %v4443
    %v4852 = vpack.c.b16 %v4450, %v4444
    %v4853 = vpack.c.b16 %v4451, %v4445
    %v4854 = vpack.c.b16 %v4452, %v4446
    %v4855 = vpack.c.b16 %v4453, %v4447
    %v4856 = vpack.c.b16 %v4460, %v4454
    %v4857 = vpack.c.b16 %v4461, %v4455
    %v4858 = vpack.c.b16 %v4462, %v4456
    %v4859 = vpack.c.b16 %v4463, %v4457
    %v4860 = vpack.c.b16 %v4464, %v4458
    %v4861 = vpack.c.b16 %v4465, %v4459
    %v4862 = vpack.c.b16 %v4472, %v4466
    %v4863 = vpack.c.b16 %v4473, %v4467
    %v4864 = vpack.c.b16 %v4474, %v4468
    %v4865 = vpack.c.b16 %v4475, %v4469
    %v4866 = vpack.c.b16 %v4476, %v4470
    %v4867 = vpack.c.b16 %v4477, %v4471
    %v4868 = vpack.c.b16 %v4484, %v4478
    %v4869 = vpack.c.b16 %v4485, %v4479
    %v4870 = vpack.c.b16 %v4486, %v4480
    %v4871 = vpack.c.b16 %v4487, %v4481
    %v4872 = vpack.c.b16 %v4488, %v4482
    %v4873 = vpack.c.b16 %v4489, %v4483
    %v4874 = vpack.c.b16 %v4496, %v4490
    %v4875 = vpack.c.b16 %v4497, %v4491
    %v4876 = vpack.c.b16 %v4498, %v4492
    %v4877 = vpack.c.b16 %v4499, %v4493
    %v4878 = vpack.c.b16 %v4500, %v4494
    %v4879 = vpack.c.b16 %v4501, %v4495
    %v4880 = vpack.c.b16 %v4508, %v4502
    %v4881 = vpack.c.b16 %v4509, %v4503
    %v4882 = vpack.c.b16 %v4510, %v4504
    %v4883 = vpack.c.b16 %v4511, %v4505
    %v4884 = vpack.c.b16 %v4512, %v4506
    %v4885 = vpack.c.b16 %v4513, %v4507
    %v4886 = vpack.c.b16 %v4520, %v4514
    %v4887 = vpack.c.b16 %v4521, %v4515
    %v4888 = vpack.c.b16 %v4522, %v4516
    %v4889 = vpack.c.b16 %v4523, %v4517
    %v4890 = vpack.c.b16 %v4524, %v4518
    %v4891 = vpack.c.b16 %v4525, %v4519
    %v4892 = vpack.c.b16 %v4532, %v4526
    %v4893 = vpack.c.b16 %v4533, %v4527
    %v4894 = vpack.c.b16 %v4534, %v4528
    %v4895 = vpack.c.b16 %v4535, %v4529
    %v4896 = vpack.c.b16 %v4536, %v4530
    %v4897 = vpack.c.b16 %v4537, %v4531
    %v4898 = vpack.c.b16 %v4544, %v4538
    %v4899 = vpack.c.b16 %v4545, %v4539
    %v4900 = vpack.c.b16 %v4546, %v4540
    %v4901 = vpack.c.b16 %v4547, %v4541
    %v4902 = vpack.c.b16 %v4548, %v4542
    %v4903 = vpack.c.b16 %v4549, %v4543
    %v4904 = vpack.c.b16 %v4556, %v4550
    %v4905 = vpack.c.b16 %v4557, %v4551
    %v4906 = vpack.c.b16 %v4558, %v4552
    %v4907 = vpack.c.b16 %v4559, %v4553
    %v4908 = vpack.c.b16 %v4560, %v4554
    %v4909 = vpack.c.b16 %v4561, %v4555
    %v4910 = vpack.c.b16 %v4568, %v4562
    %v4911 = vpack.c.b16 %v4569, %v4563
    %v4912 = vpack.c.b16 %v4570, %v4564
    %v4913 = vpack.c.b16 %v4571, %v4565
    %v4914 = vpack.c.b16 %v4572, %v4566
    %v4915 = vpack.c.b16 %v4573, %v4567
    %v4916 = vpack.c.b16 %v4580, %v4574
    %v4917 = vpack.c.b16 %v4581, %v4575
    %v4918 = vpack.c.b16 %v4582, %v4576
    %v4919 = vpack.c.b16 %v4583, %v4577
    %v4920 = vpack.c.b16 %v4584, %v4578
    %v4921 = vpack.c.b16 %v4585, %v4579
    %v4922 = vpack.c.b16 %v4592, %v4586
    %v4923 = vpack.c.b16 %v4593, %v4587
    %v4924 = vpack.c.b16 %v4594, %v4588
    %v4925 = vpack.c.b16 %v4595, %v4589
    %v4926 = vpack.c.b16 %v4596, %v4590
    %v4927 = vpack.c.b16 %v4597, %v4591
    %v4928 = vpack.c.b16 %v4604, %v4598
    %v4929 = vpack.c.b16 %v4605, %v4599
    %v4930 = vpack.c.b16 %v4606, %v4600
    %v4931 = vpack.c.b16 %v4607, %v4601
    %v4932 = vpack.c.b16 %v4608, %v4602
    %v4933 = vpack.c.b16 %v4609, %v4603
    %v4934 = vpack.c.b16 %v4616, %v4610
    %v4935 = vpack.c.b16 %v4617, %v4611
    %v4936 = vpack.c.b16 %v4618, %v4612
    %v4937 = vpack.c.b16 %v4619, %v4613
    %v4938 = vpack.c.b16 %v4620, %v4614
    %v4939 = vpack.c.b16 %v4621, %v4615
    %v4940 = vpack.c.b16 %v4628, %v4622
    %v4941 = vpack.c.b16 %v4629, %v4623
    %v4942 = vpack.c.b16 %v4630, %v4624
    %v4943 = vpack.c.b16 %v4631, %v4625
    %v4944 = vpack.c.b16 %v4632, %v4626
    %v4945 = vpack.c.b16 %v4633, %v4627
    %v4946 = vpack.c.b16 %v4640, %v4634
    %v4947 = vpack.c.b16 %v4641, %v4635
    %v4948 = vpack.c.b16 %v4642, %v4636
    %v4949 = vpack.c.b16 %v4643, %v4637
    %v4950 = vpack.c.b16 %v4644, %v4638
    %v4951 = vpack.c.b16 %v4645, %v4639
    %v4952 = vpack.c.b16 %v4652, %v4646
    %v4953 = vpack.c.b16 %v4653, %v4647
    %v4954 = vpack.c.b16 %v4654, %v4648
    %v4955 = vpack.c.b16 %v4655, %v4649
    %v4956 = vpack.c.b16 %v4656, %v4650
    %v4957 = vpack.c.b16 %v4657, %v4651
    %v4958 = vpack.c.b16 %v4664, %v4658
    %v4959 = vpack.c.b16 %v4665, %v4659
    %v4960 = vpack.c.b16 %v4666, %v4660
    %v4961 = vpack.c.b16 %v4667, %v4661
    %v4962 = vpack.c.b16 %v4668, %v4662
    %v4963 = vpack.c.b16 %v4669, %v4663
    %v4964 = vpack.c.b16 %v4676, %v4670
    %v4965 = vpack.c.b16 %v4677, %v4671
    %v4966 = vpack.c.b16 %v4678, %v4672
    %v4967 = vpack.c.b16 %v4679, %v4673
    %v4968 = vpack.c.b16 %v4680, %v4674
    %v4969 = vpack.c.b16 %v4681, %v4675
    %5258 = vmatpush.bf16.msra.mxu0 %v4724
    %5259 = vmatpush.bf16.msra.mxu0 %v4718
    %5260 = vmatpush.bf16.msra.mxu0 %v4712
    %5261 = vmatpush.bf16.msra.mxu0 %v4706
    %5262 = vmatpush.bf16.msra.mxu0 %v4700
    %5263 = vmatpush.bf16.msra.mxu0 %v4694
    %5264 = vmatpush.bf16.msra.mxu0 %v4688
    %5265 = vmatpush.bf16.msra.mxu0 %v4682
    %5266 = vmatmul.bf16.gmra.mxu0 %v3510
    %v5267 = vpop.f32.mrf.mxu0
    %v5268 = vadd.f32 %v3806, %v5267
    %v5269 = vpop.f32.mrf.mxu0
    %5270 = vdwg.mxu0
    %5271 = vmatpush.bf16.msra.mxu0 %v4772
    %5272 = vmatpush.bf16.msra.mxu0 %v4766
    %5273 = vmatpush.bf16.msra.mxu0 %v4760
    %5274 = vmatpush.bf16.msra.mxu0 %v4754
    %5275 = vmatpush.bf16.msra.mxu0 %v4748
    %5276 = vmatpush.bf16.msra.mxu0 %v4742
    %5277 = vmatpush.bf16.msra.mxu0 %v4736
    %5278 = vmatpush.bf16.msra.mxu0 %v4730
    %5279 = vmatmul.bf16.gmra.mxu0 %v3511
    %v5280 = vpop.f32.mrf.mxu0
    %v5281 = vadd.f32 %v5268, %v5280
    %v5282 = vpop.f32.mrf.mxu0
    %5283 = vdwg.mxu0
    %5284 = vmatpush.bf16.msra.mxu0 %v4820
    %5285 = vmatpush.bf16.msra.mxu0 %v4814
    %5286 = vmatpush.bf16.msra.mxu0 %v4808
    %5287 = vmatpush.bf16.msra.mxu0 %v4802
    %5288 = vmatpush.bf16.msra.mxu0 %v4796
    %5289 = vmatpush.bf16.msra.mxu0 %v4790
    %5290 = vmatpush.bf16.msra.mxu0 %v4784
    %5291 = vmatpush.bf16.msra.mxu0 %v4778
    %5292 = vmatmul.bf16.gmra.mxu0 %v3512
    %v5293 = vpop.f32.mrf.mxu0
    %v5294 = vadd.f32 %v5281, %v5293
    %v5295 = vpop.f32.mrf.mxu0
    %5296 = vdwg.mxu0
    %5297 = vmatpush.bf16.msra.mxu0 %v4868
    %5298 = vmatpush.bf16.msra.mxu0 %v4862
    %5299 = vmatpush.bf16.msra.mxu0 %v4856
    %5300 = vmatpush.bf16.msra.mxu0 %v4850
    %5301 = vmatpush.bf16.msra.mxu0 %v4844
    %5302 = vmatpush.bf16.msra.mxu0 %v4838
    %5303 = vmatpush.bf16.msra.mxu0 %v4832
    %5304 = vmatpush.bf16.msra.mxu0 %v4826
    %5305 = vmatmul.bf16.gmra.mxu0 %v3513
    %v5306 = vpop.f32.mrf.mxu0
    %v5307 = vadd.f32 %v5294, %v5306
    %v5308 = vpop.f32.mrf.mxu0
    %5309 = vdwg.mxu0
    %5310 = vmatpush.bf16.msra.mxu0 %v4916
    %5311 = vmatpush.bf16.msra.mxu0 %v4910
    %5312 = vmatpush.bf16.msra.mxu0 %v4904
    %5313 = vmatpush.bf16.msra.mxu0 %v4898
    %5314 = vmatpush.bf16.msra.mxu0 %v4892
    %5315 = vmatpush.bf16.msra.mxu0 %v4886
    %5316 = vmatpush.bf16.msra.mxu0 %v4880
    %5317 = vmatpush.bf16.msra.mxu0 %v4874
    %5318 = vmatmul.bf16.gmra.mxu0 %v3514
    %v5319 = vpop.f32.mrf.mxu0
    %v5320 = vadd.f32 %v5307, %v5319
    %v5321 = vpop.f32.mrf.mxu0
    %5322 = vdwg.mxu0
    %5323 = vmatpush.bf16.msra.mxu0 %v4964
    %5324 = vmatpush.bf16.msra.mxu0 %v4958
    %5325 = vmatpush.bf16.msra.mxu0 %v4952
    %5326 = vmatpush.bf16.msra.mxu0 %v4946
    %5327 = vmatpush.bf16.msra.mxu0 %v4940
    %5328 = vmatpush.bf16.msra.mxu0 %v4934
    %5329 = vmatpush.bf16.msra.mxu0 %v4928
    %5330 = vmatpush.bf16.msra.mxu0 %v4922
    %5331 = vmatmul.bf16.gmra.mxu0 %v3515
    %v5332 = vpop.f32.mrf.mxu0
    %v5333 = vadd.f32 %v5320, %v5332
    %v5334 = vpop.f32.mrf.mxu0
    %5335 = vdwg.mxu0
    %5336 = vmatpush.bf16.msra.mxu0 %v4725
    %5337 = vmatpush.bf16.msra.mxu0 %v4719
    %5338 = vmatpush.bf16.msra.mxu0 %v4713
    %5339 = vmatpush.bf16.msra.mxu0 %v4707
    %5340 = vmatpush.bf16.msra.mxu0 %v4701
    %5341 = vmatpush.bf16.msra.mxu0 %v4695
    %5342 = vmatpush.bf16.msra.mxu0 %v4689
    %5343 = vmatpush.bf16.msra.mxu0 %v4683
    %5344 = vmatmul.bf16.gmra.mxu0 %v3510
    %v5345 = vpop.f32.mrf.mxu0
    %v5346 = vadd.f32 %v3807, %v5345
    %v5347 = vpop.f32.mrf.mxu0
    %5348 = vdwg.mxu0
    %5349 = vmatpush.bf16.msra.mxu0 %v4773
    %5350 = vmatpush.bf16.msra.mxu0 %v4767
    %5351 = vmatpush.bf16.msra.mxu0 %v4761
    %5352 = vmatpush.bf16.msra.mxu0 %v4755
    %5353 = vmatpush.bf16.msra.mxu0 %v4749
    %5354 = vmatpush.bf16.msra.mxu0 %v4743
    %5355 = vmatpush.bf16.msra.mxu0 %v4737
    %5356 = vmatpush.bf16.msra.mxu0 %v4731
    %5357 = vmatmul.bf16.gmra.mxu0 %v3511
    %v5358 = vpop.f32.mrf.mxu0
    %v5359 = vadd.f32 %v5346, %v5358
    %v5360 = vpop.f32.mrf.mxu0
    %5361 = vdwg.mxu0
    %5362 = vmatpush.bf16.msra.mxu0 %v4821
    %5363 = vmatpush.bf16.msra.mxu0 %v4815
    %5364 = vmatpush.bf16.msra.mxu0 %v4809
    %5365 = vmatpush.bf16.msra.mxu0 %v4803
    %5366 = vmatpush.bf16.msra.mxu0 %v4797
    %5367 = vmatpush.bf16.msra.mxu0 %v4791
    %5368 = vmatpush.bf16.msra.mxu0 %v4785
    %5369 = vmatpush.bf16.msra.mxu0 %v4779
    %5370 = vmatmul.bf16.gmra.mxu0 %v3512
    %v5371 = vpop.f32.mrf.mxu0
    %v5372 = vadd.f32 %v5359, %v5371
    %v5373 = vpop.f32.mrf.mxu0
    %5374 = vdwg.mxu0
    %5375 = vmatpush.bf16.msra.mxu0 %v4869
    %5376 = vmatpush.bf16.msra.mxu0 %v4863
    %5377 = vmatpush.bf16.msra.mxu0 %v4857
    %5378 = vmatpush.bf16.msra.mxu0 %v4851
    %5379 = vmatpush.bf16.msra.mxu0 %v4845
    %5380 = vmatpush.bf16.msra.mxu0 %v4839
    %5381 = vmatpush.bf16.msra.mxu0 %v4833
    %5382 = vmatpush.bf16.msra.mxu0 %v4827
    %5383 = vmatmul.bf16.gmra.mxu0 %v3513
    %v5384 = vpop.f32.mrf.mxu0
    %v5385 = vadd.f32 %v5372, %v5384
    %v5386 = vpop.f32.mrf.mxu0
    %5387 = vdwg.mxu0
    %5388 = vmatpush.bf16.msra.mxu0 %v4917
    %5389 = vmatpush.bf16.msra.mxu0 %v4911
    %5390 = vmatpush.bf16.msra.mxu0 %v4905
    %5391 = vmatpush.bf16.msra.mxu0 %v4899
    %5392 = vmatpush.bf16.msra.mxu0 %v4893
    %5393 = vmatpush.bf16.msra.mxu0 %v4887
    %5394 = vmatpush.bf16.msra.mxu0 %v4881
    %5395 = vmatpush.bf16.msra.mxu0 %v4875
    %5396 = vmatmul.bf16.gmra.mxu0 %v3514
    %v5397 = vpop.f32.mrf.mxu0
    %v5398 = vadd.f32 %v5385, %v5397
    %v5399 = vpop.f32.mrf.mxu0
    %5400 = vdwg.mxu0
    %5401 = vmatpush.bf16.msra.mxu0 %v4965
    %5402 = vmatpush.bf16.msra.mxu0 %v4959
    %5403 = vmatpush.bf16.msra.mxu0 %v4953
    %5404 = vmatpush.bf16.msra.mxu0 %v4947
    %5405 = vmatpush.bf16.msra.mxu0 %v4941
    %5406 = vmatpush.bf16.msra.mxu0 %v4935
    %5407 = vmatpush.bf16.msra.mxu0 %v4929
    %5408 = vmatpush.bf16.msra.mxu0 %v4923
    %5409 = vmatmul.bf16.gmra.mxu0 %v3515
    %v5410 = vpop.f32.mrf.mxu0
    %v5411 = vadd.f32 %v5398, %v5410
    %v5412 = vpop.f32.mrf.mxu0
    %5413 = vdwg.mxu0
    %5414 = vmatpush.bf16.msra.mxu0 %v4726
    %5415 = vmatpush.bf16.msra.mxu0 %v4720
    %5416 = vmatpush.bf16.msra.mxu0 %v4714
    %5417 = vmatpush.bf16.msra.mxu0 %v4708
    %5418 = vmatpush.bf16.msra.mxu0 %v4702
    %5419 = vmatpush.bf16.msra.mxu0 %v4696
    %5420 = vmatpush.bf16.msra.mxu0 %v4690
    %5421 = vmatpush.bf16.msra.mxu0 %v4684
    %5422 = vmatmul.bf16.gmra.mxu0 %v3510
    %v5423 = vpop.f32.mrf.mxu0
    %v5424 = vadd.f32 %v3808, %v5423
    %v5425 = vpop.f32.mrf.mxu0
    %5426 = vdwg.mxu0
    %5427 = vmatpush.bf16.msra.mxu0 %v4774
    %5428 = vmatpush.bf16.msra.mxu0 %v4768
    %5429 = vmatpush.bf16.msra.mxu0 %v4762
    %5430 = vmatpush.bf16.msra.mxu0 %v4756
    %5431 = vmatpush.bf16.msra.mxu0 %v4750
    %5432 = vmatpush.bf16.msra.mxu0 %v4744
    %5433 = vmatpush.bf16.msra.mxu0 %v4738
    %5434 = vmatpush.bf16.msra.mxu0 %v4732
    %5435 = vmatmul.bf16.gmra.mxu0 %v3511
    %v5436 = vpop.f32.mrf.mxu0
    %v5437 = vadd.f32 %v5424, %v5436
    %v5438 = vpop.f32.mrf.mxu0
    %5439 = vdwg.mxu0
    %5440 = vmatpush.bf16.msra.mxu0 %v4822
    %5441 = vmatpush.bf16.msra.mxu0 %v4816
    %5442 = vmatpush.bf16.msra.mxu0 %v4810
    %5443 = vmatpush.bf16.msra.mxu0 %v4804
    %5444 = vmatpush.bf16.msra.mxu0 %v4798
    %5445 = vmatpush.bf16.msra.mxu0 %v4792
    %5446 = vmatpush.bf16.msra.mxu0 %v4786
    %5447 = vmatpush.bf16.msra.mxu0 %v4780
    %5448 = vmatmul.bf16.gmra.mxu0 %v3512
    %v5449 = vpop.f32.mrf.mxu0
    %v5450 = vadd.f32 %v5437, %v5449
    %v5451 = vpop.f32.mrf.mxu0
    %5452 = vdwg.mxu0
    %5453 = vmatpush.bf16.msra.mxu0 %v4870
    %5454 = vmatpush.bf16.msra.mxu0 %v4864
    %5455 = vmatpush.bf16.msra.mxu0 %v4858
    %5456 = vmatpush.bf16.msra.mxu0 %v4852
    %5457 = vmatpush.bf16.msra.mxu0 %v4846
    %5458 = vmatpush.bf16.msra.mxu0 %v4840
    %5459 = vmatpush.bf16.msra.mxu0 %v4834
    %5460 = vmatpush.bf16.msra.mxu0 %v4828
    %5461 = vmatmul.bf16.gmra.mxu0 %v3513
    %v5462 = vpop.f32.mrf.mxu0
    %v5463 = vadd.f32 %v5450, %v5462
    %v5464 = vpop.f32.mrf.mxu0
    %5465 = vdwg.mxu0
    %5466 = vmatpush.bf16.msra.mxu0 %v4918
    %5467 = vmatpush.bf16.msra.mxu0 %v4912
    %5468 = vmatpush.bf16.msra.mxu0 %v4906
    %5469 = vmatpush.bf16.msra.mxu0 %v4900
    %5470 = vmatpush.bf16.msra.mxu0 %v4894
    %5471 = vmatpush.bf16.msra.mxu0 %v4888
    %5472 = vmatpush.bf16.msra.mxu0 %v4882
    %5473 = vmatpush.bf16.msra.mxu0 %v4876
    %5474 = vmatmul.bf16.gmra.mxu0 %v3514
    %v5475 = vpop.f32.mrf.mxu0
    %v5476 = vadd.f32 %v5463, %v5475
    %v5477 = vpop.f32.mrf.mxu0
    %5478 = vdwg.mxu0
    %5479 = vmatpush.bf16.msra.mxu0 %v4966
    %5480 = vmatpush.bf16.msra.mxu0 %v4960
    %5481 = vmatpush.bf16.msra.mxu0 %v4954
    %5482 = vmatpush.bf16.msra.mxu0 %v4948
    %5483 = vmatpush.bf16.msra.mxu0 %v4942
    %5484 = vmatpush.bf16.msra.mxu0 %v4936
    %5485 = vmatpush.bf16.msra.mxu0 %v4930
    %5486 = vmatpush.bf16.msra.mxu0 %v4924
    %5487 = vmatmul.bf16.gmra.mxu0 %v3515
    %v5488 = vpop.f32.mrf.mxu0
    %v5489 = vadd.f32 %v5476, %v5488
    %v5490 = vpop.f32.mrf.mxu0
    %5491 = vdwg.mxu0
    %5492 = vmatpush.bf16.msra.mxu0 %v4727
    %5493 = vmatpush.bf16.msra.mxu0 %v4721
    %5494 = vmatpush.bf16.msra.mxu0 %v4715
    %5495 = vmatpush.bf16.msra.mxu0 %v4709
    %5496 = vmatpush.bf16.msra.mxu0 %v4703
    %5497 = vmatpush.bf16.msra.mxu0 %v4697
    %5498 = vmatpush.bf16.msra.mxu0 %v4691
    %5499 = vmatpush.bf16.msra.mxu0 %v4685
    %5500 = vmatmul.bf16.gmra.mxu0 %v3510
    %v5501 = vpop.f32.mrf.mxu0
    %v5502 = vadd.f32 %v3809, %v5501
    %v5503 = vpop.f32.mrf.mxu0
    %5504 = vdwg.mxu0
    %5505 = vmatpush.bf16.msra.mxu0 %v4775
    %5506 = vmatpush.bf16.msra.mxu0 %v4769
    %5507 = vmatpush.bf16.msra.mxu0 %v4763
    %5508 = vmatpush.bf16.msra.mxu0 %v4757
    %5509 = vmatpush.bf16.msra.mxu0 %v4751
    %5510 = vmatpush.bf16.msra.mxu0 %v4745
    %5511 = vmatpush.bf16.msra.mxu0 %v4739
    %5512 = vmatpush.bf16.msra.mxu0 %v4733
    %5513 = vmatmul.bf16.gmra.mxu0 %v3511
    %v5514 = vpop.f32.mrf.mxu0
    %v5515 = vadd.f32 %v5502, %v5514
    %v5516 = vpop.f32.mrf.mxu0
    %5517 = vdwg.mxu0
    %5518 = vmatpush.bf16.msra.mxu0 %v4823
    %5519 = vmatpush.bf16.msra.mxu0 %v4817
    %5520 = vmatpush.bf16.msra.mxu0 %v4811
    %5521 = vmatpush.bf16.msra.mxu0 %v4805
    %5522 = vmatpush.bf16.msra.mxu0 %v4799
    %5523 = vmatpush.bf16.msra.mxu0 %v4793
    %5524 = vmatpush.bf16.msra.mxu0 %v4787
    %5525 = vmatpush.bf16.msra.mxu0 %v4781
    %5526 = vmatmul.bf16.gmra.mxu0 %v3512
    %v5527 = vpop.f32.mrf.mxu0
    %v5528 = vadd.f32 %v5515, %v5527
    %v5529 = vpop.f32.mrf.mxu0
    %5530 = vdwg.mxu0
    %5531 = vmatpush.bf16.msra.mxu0 %v4871
    %5532 = vmatpush.bf16.msra.mxu0 %v4865
    %5533 = vmatpush.bf16.msra.mxu0 %v4859
    %5534 = vmatpush.bf16.msra.mxu0 %v4853
    %5535 = vmatpush.bf16.msra.mxu0 %v4847
    %5536 = vmatpush.bf16.msra.mxu0 %v4841
    %5537 = vmatpush.bf16.msra.mxu0 %v4835
    %5538 = vmatpush.bf16.msra.mxu0 %v4829
    %5539 = vmatmul.bf16.gmra.mxu0 %v3513
    %v5540 = vpop.f32.mrf.mxu0
    %v5541 = vadd.f32 %v5528, %v5540
    %v5542 = vpop.f32.mrf.mxu0
    %5543 = vdwg.mxu0
    %5544 = vmatpush.bf16.msra.mxu0 %v4919
    %5545 = vmatpush.bf16.msra.mxu0 %v4913
    %5546 = vmatpush.bf16.msra.mxu0 %v4907
    %5547 = vmatpush.bf16.msra.mxu0 %v4901
    %5548 = vmatpush.bf16.msra.mxu0 %v4895
    %5549 = vmatpush.bf16.msra.mxu0 %v4889
    %5550 = vmatpush.bf16.msra.mxu0 %v4883
    %5551 = vmatpush.bf16.msra.mxu0 %v4877
    %5552 = vmatmul.bf16.gmra.mxu0 %v3514
    %v5553 = vpop.f32.mrf.mxu0
    %v5554 = vadd.f32 %v5541, %v5553
    %v5555 = vpop.f32.mrf.mxu0
    %5556 = vdwg.mxu0
    %5557 = vmatpush.bf16.msra.mxu0 %v4967
    %5558 = vmatpush.bf16.msra.mxu0 %v4961
    %5559 = vmatpush.bf16.msra.mxu0 %v4955
    %5560 = vmatpush.bf16.msra.mxu0 %v4949
    %5561 = vmatpush.bf16.msra.mxu0 %v4943
    %5562 = vmatpush.bf16.msra.mxu0 %v4937
    %5563 = vmatpush.bf16.msra.mxu0 %v4931
    %5564 = vmatpush.bf16.msra.mxu0 %v4925
    %5565 = vmatmul.bf16.gmra.mxu0 %v3515
    %v5566 = vpop.f32.mrf.mxu0
    %v5567 = vadd.f32 %v5554, %v5566
    %v5568 = vpop.f32.mrf.mxu0
    %5569 = vdwg.mxu0
    %5570 = vmatpush.bf16.msra.mxu0 %v4728
    %5571 = vmatpush.bf16.msra.mxu0 %v4722
    %5572 = vmatpush.bf16.msra.mxu0 %v4716
    %5573 = vmatpush.bf16.msra.mxu0 %v4710
    %5574 = vmatpush.bf16.msra.mxu0 %v4704
    %5575 = vmatpush.bf16.msra.mxu0 %v4698
    %5576 = vmatpush.bf16.msra.mxu0 %v4692
    %5577 = vmatpush.bf16.msra.mxu0 %v4686
    %5578 = vmatmul.bf16.gmra.mxu0 %v3510
    %v5579 = vpop.f32.mrf.mxu0
    %v5580 = vadd.f32 %v3810, %v5579
    %v5581 = vpop.f32.mrf.mxu0
    %5582 = vdwg.mxu0
    %5583 = vmatpush.bf16.msra.mxu0 %v4776
    %5584 = vmatpush.bf16.msra.mxu0 %v4770
    %5585 = vmatpush.bf16.msra.mxu0 %v4764
    %5586 = vmatpush.bf16.msra.mxu0 %v4758
    %5587 = vmatpush.bf16.msra.mxu0 %v4752
    %5588 = vmatpush.bf16.msra.mxu0 %v4746
    %5589 = vmatpush.bf16.msra.mxu0 %v4740
    %5590 = vmatpush.bf16.msra.mxu0 %v4734
    %5591 = vmatmul.bf16.gmra.mxu0 %v3511
    %v5592 = vpop.f32.mrf.mxu0
    %v5593 = vadd.f32 %v5580, %v5592
    %v5594 = vpop.f32.mrf.mxu0
    %5595 = vdwg.mxu0
    %5596 = vmatpush.bf16.msra.mxu0 %v4824
    %5597 = vmatpush.bf16.msra.mxu0 %v4818
    %5598 = vmatpush.bf16.msra.mxu0 %v4812
    %5599 = vmatpush.bf16.msra.mxu0 %v4806
    %5600 = vmatpush.bf16.msra.mxu0 %v4800
    %5601 = vmatpush.bf16.msra.mxu0 %v4794
    %5602 = vmatpush.bf16.msra.mxu0 %v4788
    %5603 = vmatpush.bf16.msra.mxu0 %v4782
    %5604 = vmatmul.bf16.gmra.mxu0 %v3512
    %v5605 = vpop.f32.mrf.mxu0
    %v5606 = vadd.f32 %v5593, %v5605
    %v5607 = vpop.f32.mrf.mxu0
    %5608 = vdwg.mxu0
    %5609 = vmatpush.bf16.msra.mxu0 %v4872
    %5610 = vmatpush.bf16.msra.mxu0 %v4866
    %5611 = vmatpush.bf16.msra.mxu0 %v4860
    %5612 = vmatpush.bf16.msra.mxu0 %v4854
    %5613 = vmatpush.bf16.msra.mxu0 %v4848
    %5614 = vmatpush.bf16.msra.mxu0 %v4842
    %5615 = vmatpush.bf16.msra.mxu0 %v4836
    %5616 = vmatpush.bf16.msra.mxu0 %v4830
    %5617 = vmatmul.bf16.gmra.mxu0 %v3513
    %v5618 = vpop.f32.mrf.mxu0
    %v5619 = vadd.f32 %v5606, %v5618
    %v5620 = vpop.f32.mrf.mxu0
    %5621 = vdwg.mxu0
    %5622 = vmatpush.bf16.msra.mxu0 %v4920
    %5623 = vmatpush.bf16.msra.mxu0 %v4914
    %5624 = vmatpush.bf16.msra.mxu0 %v4908
    %5625 = vmatpush.bf16.msra.mxu0 %v4902
    %5626 = vmatpush.bf16.msra.mxu0 %v4896
    %5627 = vmatpush.bf16.msra.mxu0 %v4890
    %5628 = vmatpush.bf16.msra.mxu0 %v4884
    %5629 = vmatpush.bf16.msra.mxu0 %v4878
    %5630 = vmatmul.bf16.gmra.mxu0 %v3514
    %v5631 = vpop.f32.mrf.mxu0
    %v5632 = vadd.f32 %v5619, %v5631
    %v5633 = vpop.f32.mrf.mxu0
    %5634 = vdwg.mxu0
    %5635 = vmatpush.bf16.msra.mxu0 %v4968
    %5636 = vmatpush.bf16.msra.mxu0 %v4962
    %5637 = vmatpush.bf16.msra.mxu0 %v4956
    %5638 = vmatpush.bf16.msra.mxu0 %v4950
    %5639 = vmatpush.bf16.msra.mxu0 %v4944
    %5640 = vmatpush.bf16.msra.mxu0 %v4938
    %5641 = vmatpush.bf16.msra.mxu0 %v4932
    %5642 = vmatpush.bf16.msra.mxu0 %v4926
    %5643 = vmatmul.bf16.gmra.mxu0 %v3515
    %v5644 = vpop.f32.mrf.mxu0
    %v5645 = vadd.f32 %v5632, %v5644
    %v5646 = vpop.f32.mrf.mxu0
    %5647 = vdwg.mxu0
    %5648 = vmatpush.bf16.msra.mxu0 %v4729
    %5649 = vmatpush.bf16.msra.mxu0 %v4723
    %5650 = vmatpush.bf16.msra.mxu0 %v4717
    %5651 = vmatpush.bf16.msra.mxu0 %v4711
    %5652 = vmatpush.bf16.msra.mxu0 %v4705
    %5653 = vmatpush.bf16.msra.mxu0 %v4699
    %5654 = vmatpush.bf16.msra.mxu0 %v4693
    %5655 = vmatpush.bf16.msra.mxu0 %v4687
    %5656 = vmatmul.bf16.gmra.mxu0 %v3510
    %v5657 = vpop.f32.mrf.mxu0
    %v5658 = vadd.f32 %v3811, %v5657
    %v5659 = vpop.f32.mrf.mxu0
    %5660 = vdwg.mxu0
    %5661 = vmatpush.bf16.msra.mxu0 %v4777
    %5662 = vmatpush.bf16.msra.mxu0 %v4771
    %5663 = vmatpush.bf16.msra.mxu0 %v4765
    %5664 = vmatpush.bf16.msra.mxu0 %v4759
    %5665 = vmatpush.bf16.msra.mxu0 %v4753
    %5666 = vmatpush.bf16.msra.mxu0 %v4747
    %5667 = vmatpush.bf16.msra.mxu0 %v4741
    %5668 = vmatpush.bf16.msra.mxu0 %v4735
    %5669 = vmatmul.bf16.gmra.mxu0 %v3511
    %v5670 = vpop.f32.mrf.mxu0
    %v5671 = vadd.f32 %v5658, %v5670
    %v5672 = vpop.f32.mrf.mxu0
    %5673 = vdwg.mxu0
    %5674 = vmatpush.bf16.msra.mxu0 %v4825
    %5675 = vmatpush.bf16.msra.mxu0 %v4819
    %5676 = vmatpush.bf16.msra.mxu0 %v4813
    %5677 = vmatpush.bf16.msra.mxu0 %v4807
    %5678 = vmatpush.bf16.msra.mxu0 %v4801
    %5679 = vmatpush.bf16.msra.mxu0 %v4795
    %5680 = vmatpush.bf16.msra.mxu0 %v4789
    %5681 = vmatpush.bf16.msra.mxu0 %v4783
    %5682 = vmatmul.bf16.gmra.mxu0 %v3512
    %v5683 = vpop.f32.mrf.mxu0
    %v5684 = vadd.f32 %v5671, %v5683
    %v5685 = vpop.f32.mrf.mxu0
    %5686 = vdwg.mxu0
    %5687 = vmatpush.bf16.msra.mxu0 %v4873
    %5688 = vmatpush.bf16.msra.mxu0 %v4867
    %5689 = vmatpush.bf16.msra.mxu0 %v4861
    %5690 = vmatpush.bf16.msra.mxu0 %v4855
    %5691 = vmatpush.bf16.msra.mxu0 %v4849
    %5692 = vmatpush.bf16.msra.mxu0 %v4843
    %5693 = vmatpush.bf16.msra.mxu0 %v4837
    %5694 = vmatpush.bf16.msra.mxu0 %v4831
    %5695 = vmatmul.bf16.gmra.mxu0 %v3513
    %v5696 = vpop.f32.mrf.mxu0
    %v5697 = vadd.f32 %v5684, %v5696
    %v5698 = vpop.f32.mrf.mxu0
    %5699 = vdwg.mxu0
    %5700 = vmatpush.bf16.msra.mxu0 %v4921
    %5701 = vmatpush.bf16.msra.mxu0 %v4915
    %5702 = vmatpush.bf16.msra.mxu0 %v4909
    %5703 = vmatpush.bf16.msra.mxu0 %v4903
    %5704 = vmatpush.bf16.msra.mxu0 %v4897
    %5705 = vmatpush.bf16.msra.mxu0 %v4891
    %5706 = vmatpush.bf16.msra.mxu0 %v4885
    %5707 = vmatpush.bf16.msra.mxu0 %v4879
    %5708 = vmatmul.bf16.gmra.mxu0 %v3514
    %v5709 = vpop.f32.mrf.mxu0
    %v5710 = vadd.f32 %v5697, %v5709
    %v5711 = vpop.f32.mrf.mxu0
    %5712 = vdwg.mxu0
    %5713 = vmatpush.bf16.msra.mxu0 %v4969
    %5714 = vmatpush.bf16.msra.mxu0 %v4963
    %5715 = vmatpush.bf16.msra.mxu0 %v4957
    %5716 = vmatpush.bf16.msra.mxu0 %v4951
    %5717 = vmatpush.bf16.msra.mxu0 %v4945
    %5718 = vmatpush.bf16.msra.mxu0 %v4939
    %5719 = vmatpush.bf16.msra.mxu0 %v4933
    %5720 = vmatpush.bf16.msra.mxu0 %v4927
    %5721 = vmatmul.bf16.gmra.mxu0 %v3515
    %v5722 = vpop.f32.mrf.mxu0
    %v5723 = vadd.f32 %v5710, %v5722
    %v5724 = vpop.f32.mrf.mxu0
    %5725 = vdwg.mxu0
    %v5726 = vmax.f32 %v5333, 0.0
    %v5727 = vmax.f32 %v5411, 0.0
    %v5728 = vmax.f32 %v5489, 0.0
    %v5729 = vmax.f32 %v5567, 0.0
    %v5730 = vmax.f32 %v5645, 0.0
    %v5731 = vmax.f32 %v5723, 0.0
    %v5732 = vpack.c.bf16 %v5726, %v5726
    %v5733 = vpack.c.bf16 %v5727, %v5727
    %v5734 = vpack.c.bf16 %v5728, %v5728
    %v5735 = vpack.c.bf16 %v5729, %v5729
    %v5736 = vpack.c.bf16 %v5730, %v5730
    %v5737 = vpack.c.bf16 %v5731, %v5731
    %v5738 = vld [vmem:[#allocation7 + $0x8] sm:$0xf]
    %v5739 = vld [vmem:[#allocation7 + $0x14] sm:$0xf]
    %v5740 = vld [vmem:[#allocation7 + $0x20] sm:$0xf]
    %v5741 = vld [vmem:[#allocation7 + $0x2c] sm:$0xf]
    %v5742 = vld [vmem:[#allocation7 + $0x38] sm:$0xf]
    %v5743 = vld [vmem:[#allocation7 + $0x44] sm:$0xf]
    %v5744 = vld [vmem:[#allocation7 + $0x50] sm:$0xf]
    %v5745 = vld [vmem:[#allocation7 + $0x5c] sm:$0xf]
    %v5746 = vld [vmem:[#allocation7 + $0x68] sm:$0xf]
    %v5747 = vld [vmem:[#allocation7 + $0x74] sm:$0xf]
    %v5748 = vld [vmem:[#allocation7 + $0x80] sm:$0xf]
    %v5749 = vld [vmem:[#allocation7 + $0x8c] sm:$0xf]
    %v5750 = vld [vmem:[#allocation7 + $0x98] sm:$0xf]
    %v5751 = vld [vmem:[#allocation7 + $0xa4] sm:$0xf]
    %v5752 = vld [vmem:[#allocation7 + $0xb0] sm:$0xf]
    %v5753 = vld [vmem:[#allocation7 + $0xbc] sm:$0xf]
    %v5754 = vld [vmem:[#allocation7 + $0xc8] sm:$0xf]
    %v5755 = vld [vmem:[#allocation7 + $0xd4] sm:$0xf]
    %v5756 = vld [vmem:[#allocation7 + $0xe0] sm:$0xf]
    %v5757 = vld [vmem:[#allocation7 + $0xec] sm:$0xf]
    %v5758 = vld [vmem:[#allocation7 + $0xf8] sm:$0xf]
    %v5759 = vld [vmem:[#allocation7 + $0x104] sm:$0xf]
    %v5760 = vld [vmem:[#allocation7 + $0x110] sm:$0xf]
    %v5761 = vld [vmem:[#allocation7 + $0x11c] sm:$0xf]
    %v5762 = vld [vmem:[#allocation7 + $0x128] sm:$0xf]
    %v5763 = vld [vmem:[#allocation7 + $0x134] sm:$0xf]
    %v5764 = vld [vmem:[#allocation7 + $0x140] sm:$0xf]
    %v5765 = vld [vmem:[#allocation7 + $0x14c] sm:$0xf]
    %v5766 = vld [vmem:[#allocation7 + $0x158] sm:$0xf]
    %v5767 = vld [vmem:[#allocation7 + $0x164] sm:$0xf]
    %v5768 = vld [vmem:[#allocation7 + $0x170] sm:$0xf]
    %v5769 = vld [vmem:[#allocation7 + $0x17c] sm:$0xf]
    %v5770 = vld [vmem:[#allocation7 + $0x188] sm:$0xf]
    %v5771 = vld [vmem:[#allocation7 + $0x194] sm:$0xf]
    %v5772 = vld [vmem:[#allocation7 + $0x1a0] sm:$0xf]
    %v5773 = vld [vmem:[#allocation7 + $0x1ac] sm:$0xf]
    %v5774 = vld [vmem:[#allocation7 + $0x1b8] sm:$0xf]
    %v5775 = vld [vmem:[#allocation7 + $0x1c4] sm:$0xf]
    %v5776 = vld [vmem:[#allocation7 + $0x1d0] sm:$0xf]
    %v5777 = vld [vmem:[#allocation7 + $0x1dc] sm:$0xf]
    %v5778 = vld [vmem:[#allocation7 + $0x1e8] sm:$0xf]
    %v5779 = vld [vmem:[#allocation7 + $0x1f4] sm:$0xf]
    %v5780 = vld [vmem:[#allocation7 + $0x200] sm:$0xf]
    %v5781 = vld [vmem:[#allocation7 + $0x20c] sm:$0xf]
    %v5782 = vld [vmem:[#allocation7 + $0x218] sm:$0xf]
    %v5783 = vld [vmem:[#allocation7 + $0x224] sm:$0xf]
    %v5784 = vld [vmem:[#allocation7 + $0x230] sm:$0xf]
    %v5785 = vld [vmem:[#allocation7 + $0x23c] sm:$0xf]
    %v5786 = vld [vmem:[#allocation7 + $0x248] sm:$0xf]
    %v5787 = vld [vmem:[#allocation7 + $0x254] sm:$0xf]
    %v5788 = vld [vmem:[#allocation7 + $0x260] sm:$0xf]
    %v5789 = vld [vmem:[#allocation7 + $0x26c] sm:$0xf]
    %v5790 = vld [vmem:[#allocation7 + $0x278] sm:$0xf]
    %v5791 = vld [vmem:[#allocation7 + $0x284] sm:$0xf]
    %v5792 = vld [vmem:[#allocation7 + $0x290] sm:$0xf]
    %v5793 = vld [vmem:[#allocation7 + $0x29c] sm:$0xf]
    %v5794 = vld [vmem:[#allocation7 + $0x2a8] sm:$0xf]
    %v5795 = vld [vmem:[#allocation7 + $0x2b4] sm:$0xf]
    %v5796 = vld [vmem:[#allocation7 + $0x2c0] sm:$0xf]
    %v5797 = vld [vmem:[#allocation7 + $0x2cc] sm:$0xf]
    %v5798 = vld [vmem:[#allocation7 + $0x2d8] sm:$0xf]
    %v5799 = vld [vmem:[#allocation7 + $0x2e4] sm:$0xf]
    %v5800 = vld [vmem:[#allocation7 + $0x2f0] sm:$0xf]
    %v5801 = vld [vmem:[#allocation7 + $0x2fc] sm:$0xf]
    %v5802 = vld [vmem:[#allocation7 + $0x308] sm:$0xf]
    %v5803 = vld [vmem:[#allocation7 + $0x314] sm:$0xf]
    %v5804 = vld [vmem:[#allocation7 + $0x320] sm:$0xf]
    %v5805 = vld [vmem:[#allocation7 + $0x32c] sm:$0xf]
    %v5806 = vld [vmem:[#allocation7 + $0x338] sm:$0xf]
    %v5807 = vld [vmem:[#allocation7 + $0x344] sm:$0xf]
    %v5808 = vld [vmem:[#allocation7 + $0x350] sm:$0xf]
    %v5809 = vld [vmem:[#allocation7 + $0x35c] sm:$0xf]
    %v5810 = vld [vmem:[#allocation7 + $0x368] sm:$0xf]
    %v5811 = vld [vmem:[#allocation7 + $0x374] sm:$0xf]
    %v5812 = vld [vmem:[#allocation7 + $0x380] sm:$0xf]
    %v5813 = vld [vmem:[#allocation7 + $0x38c] sm:$0xf]
    %v5814 = vld [vmem:[#allocation7 + $0x398] sm:$0xf]
    %v5815 = vld [vmem:[#allocation7 + $0x3a4] sm:$0xf]
    %v5816 = vld [vmem:[#allocation7 + $0x3b0] sm:$0xf]
    %v5817 = vld [vmem:[#allocation7 + $0x3bc] sm:$0xf]
    %v5818 = vld [vmem:[#allocation7 + $0x3c8] sm:$0xf]
    %v5819 = vld [vmem:[#allocation7 + $0x3d4] sm:$0xf]
    %v5820 = vld [vmem:[#allocation7 + $0x3e0] sm:$0xf]
    %v5821 = vld [vmem:[#allocation7 + $0x3ec] sm:$0xf]
    %v5822 = vld [vmem:[#allocation7 + $0x3f8] sm:$0xf]
    %v5823 = vld [vmem:[#allocation7 + $0x404] sm:$0xf]
    %v5824 = vld [vmem:[#allocation7 + $0x410] sm:$0xf]
    %v5825 = vld [vmem:[#allocation7 + $0x41c] sm:$0xf]
    %v5826 = vld [vmem:[#allocation7 + $0x428] sm:$0xf]
    %v5827 = vld [vmem:[#allocation7 + $0x434] sm:$0xf]
    %v5828 = vld [vmem:[#allocation7 + $0x440] sm:$0xf]
    %v5829 = vld [vmem:[#allocation7 + $0x44c] sm:$0xf]
    %v5830 = vld [vmem:[#allocation7 + $0x458] sm:$0xf]
    %v5831 = vld [vmem:[#allocation7 + $0x464] sm:$0xf]
    %v5832 = vld [vmem:[#allocation7 + $0x470] sm:$0xf]
    %v5833 = vld [vmem:[#allocation7 + $0x47c] sm:$0xf]
    %v5930 = vunpack.c.l.b16 %v5738
    %v5931 = vunpack.c.l.b16 %v5739
    %v5932 = vunpack.c.l.b16 %v5740
    %v5933 = vunpack.c.l.b16 %v5741
    %v5934 = vunpack.c.l.b16 %v5742
    %v5935 = vunpack.c.l.b16 %v5743
    %v5936 = vunpack.c.l.b16 %v5744
    %v5937 = vunpack.c.l.b16 %v5745
    %v5938 = vunpack.c.l.b16 %v5746
    %v5939 = vunpack.c.l.b16 %v5747
    %v5940 = vunpack.c.l.b16 %v5748
    %v5941 = vunpack.c.l.b16 %v5749
    %v5942 = vunpack.c.l.b16 %v5750
    %v5943 = vunpack.c.l.b16 %v5751
    %v5944 = vunpack.c.l.b16 %v5752
    %v5945 = vunpack.c.l.b16 %v5753
    %v5946 = vunpack.c.l.b16 %v5754
    %v5947 = vunpack.c.l.b16 %v5755
    %v5948 = vunpack.c.l.b16 %v5756
    %v5949 = vunpack.c.l.b16 %v5757
    %v5950 = vunpack.c.l.b16 %v5758
    %v5951 = vunpack.c.l.b16 %v5759
    %v5952 = vunpack.c.l.b16 %v5760
    %v5953 = vunpack.c.l.b16 %v5761
    %v5954 = vunpack.c.l.b16 %v5762
    %v5955 = vunpack.c.l.b16 %v5763
    %v5956 = vunpack.c.l.b16 %v5764
    %v5957 = vunpack.c.l.b16 %v5765
    %v5958 = vunpack.c.l.b16 %v5766
    %v5959 = vunpack.c.l.b16 %v5767
    %v5960 = vunpack.c.l.b16 %v5768
    %v5961 = vunpack.c.l.b16 %v5769
    %v5962 = vunpack.c.l.b16 %v5770
    %v5963 = vunpack.c.l.b16 %v5771
    %v5964 = vunpack.c.l.b16 %v5772
    %v5965 = vunpack.c.l.b16 %v5773
    %v5966 = vunpack.c.l.b16 %v5774
    %v5967 = vunpack.c.l.b16 %v5775
    %v5968 = vunpack.c.l.b16 %v5776
    %v5969 = vunpack.c.l.b16 %v5777
    %v5970 = vunpack.c.l.b16 %v5778
    %v5971 = vunpack.c.l.b16 %v5779
    %v5972 = vunpack.c.l.b16 %v5780
    %v5973 = vunpack.c.l.b16 %v5781
    %v5974 = vunpack.c.l.b16 %v5782
    %v5975 = vunpack.c.l.b16 %v5783
    %v5976 = vunpack.c.l.b16 %v5784
    %v5977 = vunpack.c.l.b16 %v5785
    %v5978 = vunpack.c.l.b16 %v5786
    %v5979 = vunpack.c.l.b16 %v5787
    %v5980 = vunpack.c.l.b16 %v5788
    %v5981 = vunpack.c.l.b16 %v5789
    %v5982 = vunpack.c.l.b16 %v5790
    %v5983 = vunpack.c.l.b16 %v5791
    %v5984 = vunpack.c.l.b16 %v5792
    %v5985 = vunpack.c.l.b16 %v5793
    %v5986 = vunpack.c.l.b16 %v5794
    %v5987 = vunpack.c.l.b16 %v5795
    %v5988 = vunpack.c.l.b16 %v5796
    %v5989 = vunpack.c.l.b16 %v5797
    %v5990 = vunpack.c.l.b16 %v5798
    %v5991 = vunpack.c.l.b16 %v5799
    %v5992 = vunpack.c.l.b16 %v5800
    %v5993 = vunpack.c.l.b16 %v5801
    %v5994 = vunpack.c.l.b16 %v5802
    %v5995 = vunpack.c.l.b16 %v5803
    %v5996 = vunpack.c.l.b16 %v5804
    %v5997 = vunpack.c.l.b16 %v5805
    %v5998 = vunpack.c.l.b16 %v5806
    %v5999 = vunpack.c.l.b16 %v5807
    %v6000 = vunpack.c.l.b16 %v5808
    %v6001 = vunpack.c.l.b16 %v5809
    %v6002 = vunpack.c.l.b16 %v5810
    %v6003 = vunpack.c.l.b16 %v5811
    %v6004 = vunpack.c.l.b16 %v5812
    %v6005 = vunpack.c.l.b16 %v5813
    %v6006 = vunpack.c.l.b16 %v5814
    %v6007 = vunpack.c.l.b16 %v5815
    %v6008 = vunpack.c.l.b16 %v5816
    %v6009 = vunpack.c.l.b16 %v5817
    %v6010 = vunpack.c.l.b16 %v5818
    %v6011 = vunpack.c.l.b16 %v5819
    %v6012 = vunpack.c.l.b16 %v5820
    %v6013 = vunpack.c.l.b16 %v5821
    %v6014 = vunpack.c.l.b16 %v5822
    %v6015 = vunpack.c.l.b16 %v5823
    %v6016 = vunpack.c.l.b16 %v5824
    %v6017 = vunpack.c.l.b16 %v5825
    %v6018 = vunpack.c.l.b16 %v5826
    %v6019 = vunpack.c.l.b16 %v5827
    %v6020 = vunpack.c.l.b16 %v5828
    %v6021 = vunpack.c.l.b16 %v5829
    %v6022 = vunpack.c.l.b16 %v5830
    %v6023 = vunpack.c.l.b16 %v5831
    %v6024 = vunpack.c.l.b16 %v5832
    %v6025 = vunpack.c.l.b16 %v5833
    %v6026 = vpack.c.b16 %v5931, %v5930
    %v6027 = vpack.c.b16 %v5933, %v5932
    %v6028 = vpack.c.b16 %v5935, %v5934
    %v6029 = vpack.c.b16 %v5937, %v5936
    %v6030 = vpack.c.b16 %v5939, %v5938
    %v6031 = vpack.c.b16 %v5941, %v5940
    %v6032 = vpack.c.b16 %v5943, %v5942
    %v6033 = vpack.c.b16 %v5945, %v5944
    %v6034 = vpack.c.b16 %v5947, %v5946
    %v6035 = vpack.c.b16 %v5949, %v5948
    %v6036 = vpack.c.b16 %v5951, %v5950
    %v6037 = vpack.c.b16 %v5953, %v5952
    %v6038 = vpack.c.b16 %v5955, %v5954
    %v6039 = vpack.c.b16 %v5957, %v5956
    %v6040 = vpack.c.b16 %v5959, %v5958
    %v6041 = vpack.c.b16 %v5961, %v5960
    %v6042 = vpack.c.b16 %v5963, %v5962
    %v6043 = vpack.c.b16 %v5965, %v5964
    %v6044 = vpack.c.b16 %v5967, %v5966
    %v6045 = vpack.c.b16 %v5969, %v5968
    %v6046 = vpack.c.b16 %v5971, %v5970
    %v6047 = vpack.c.b16 %v5973, %v5972
    %v6048 = vpack.c.b16 %v5975, %v5974
    %v6049 = vpack.c.b16 %v5977, %v5976
    %v6050 = vpack.c.b16 %v5979, %v5978
    %v6051 = vpack.c.b16 %v5981, %v5980
    %v6052 = vpack.c.b16 %v5983, %v5982
    %v6053 = vpack.c.b16 %v5985, %v5984
    %v6054 = vpack.c.b16 %v5987, %v5986
    %v6055 = vpack.c.b16 %v5989, %v5988
    %v6056 = vpack.c.b16 %v5991, %v5990
    %v6057 = vpack.c.b16 %v5993, %v5992
    %v6058 = vpack.c.b16 %v5995, %v5994
    %v6059 = vpack.c.b16 %v5997, %v5996
    %v6060 = vpack.c.b16 %v5999, %v5998
    %v6061 = vpack.c.b16 %v6001, %v6000
    %v6062 = vpack.c.b16 %v6003, %v6002
    %v6063 = vpack.c.b16 %v6005, %v6004
    %v6064 = vpack.c.b16 %v6007, %v6006
    %v6065 = vpack.c.b16 %v6009, %v6008
    %v6066 = vpack.c.b16 %v6011, %v6010
    %v6067 = vpack.c.b16 %v6013, %v6012
    %v6068 = vpack.c.b16 %v6015, %v6014
    %v6069 = vpack.c.b16 %v6017, %v6016
    %v6070 = vpack.c.b16 %v6019, %v6018
    %v6071 = vpack.c.b16 %v6021, %v6020
    %v6072 = vpack.c.b16 %v6023, %v6022
    %v6073 = vpack.c.b16 %v6025, %v6024
    %6122 = vmatpush.bf16.msra.mxu0 %v6033
    %6123 = vmatpush.bf16.msra.mxu0 %v6032
    %6124 = vmatpush.bf16.msra.mxu0 %v6031
    %6125 = vmatpush.bf16.msra.mxu0 %v6030
    %6126 = vmatpush.bf16.msra.mxu0 %v6029
    %6127 = vmatpush.bf16.msra.mxu0 %v6028
    %6128 = vmatpush.bf16.msra.mxu0 %v6027
    %6129 = vmatpush.bf16.msra.mxu0 %v6026
    %6130 = vmatmul.bf16.gmra.mxu0 %v5732
    %v6131 = vpop.f32.mrf.mxu0
    %v6132 = vadd.f32 %v121, %v6131
    %v6133 = vpop.f32.mrf.mxu0
    %6134 = vdwg.mxu0
    %6135 = vmatpush.bf16.msra.mxu0 %v6041
    %6136 = vmatpush.bf16.msra.mxu0 %v6040
    %6137 = vmatpush.bf16.msra.mxu0 %v6039
    %6138 = vmatpush.bf16.msra.mxu0 %v6038
    %6139 = vmatpush.bf16.msra.mxu0 %v6037
    %6140 = vmatpush.bf16.msra.mxu0 %v6036
    %6141 = vmatpush.bf16.msra.mxu0 %v6035
    %6142 = vmatpush.bf16.msra.mxu0 %v6034
    %6143 = vmatmul.bf16.gmra.mxu0 %v5733
    %v6144 = vpop.f32.mrf.mxu0
    %v6145 = vadd.f32 %v6132, %v6144
    %v6146 = vpop.f32.mrf.mxu0
    %6147 = vdwg.mxu0
    %6148 = vmatpush.bf16.msra.mxu0 %v6049
    %6149 = vmatpush.bf16.msra.mxu0 %v6048
    %6150 = vmatpush.bf16.msra.mxu0 %v6047
    %6151 = vmatpush.bf16.msra.mxu0 %v6046
    %6152 = vmatpush.bf16.msra.mxu0 %v6045
    %6153 = vmatpush.bf16.msra.mxu0 %v6044
    %6154 = vmatpush.bf16.msra.mxu0 %v6043
    %6155 = vmatpush.bf16.msra.mxu0 %v6042
    %6156 = vmatmul.bf16.gmra.mxu0 %v5734
    %v6157 = vpop.f32.mrf.mxu0
    %v6158 = vadd.f32 %v6145, %v6157
    %v6159 = vpop.f32.mrf.mxu0
    %6160 = vdwg.mxu0
    %6161 = vmatpush.bf16.msra.mxu0 %v6057
    %6162 = vmatpush.bf16.msra.mxu0 %v6056
    %6163 = vmatpush.bf16.msra.mxu0 %v6055
    %6164 = vmatpush.bf16.msra.mxu0 %v6054
    %6165 = vmatpush.bf16.msra.mxu0 %v6053
    %6166 = vmatpush.bf16.msra.mxu0 %v6052
    %6167 = vmatpush.bf16.msra.mxu0 %v6051
    %6168 = vmatpush.bf16.msra.mxu0 %v6050
    %6169 = vmatmul.bf16.gmra.mxu0 %v5735
    %v6170 = vpop.f32.mrf.mxu0
    %v6171 = vadd.f32 %v6158, %v6170
    %v6172 = vpop.f32.mrf.mxu0
    %6173 = vdwg.mxu0
    %6174 = vmatpush.bf16.msra.mxu0 %v6065
    %6175 = vmatpush.bf16.msra.mxu0 %v6064
    %6176 = vmatpush.bf16.msra.mxu0 %v6063
    %6177 = vmatpush.bf16.msra.mxu0 %v6062
    %6178 = vmatpush.bf16.msra.mxu0 %v6061
    %6179 = vmatpush.bf16.msra.mxu0 %v6060
    %6180 = vmatpush.bf16.msra.mxu0 %v6059
    %6181 = vmatpush.bf16.msra.mxu0 %v6058
    %6182 = vmatmul.bf16.gmra.mxu0 %v5736
    %v6183 = vpop.f32.mrf.mxu0
    %v6184 = vadd.f32 %v6171, %v6183
    %v6185 = vpop.f32.mrf.mxu0
    %6186 = vdwg.mxu0
    %6187 = vmatpush.bf16.msra.mxu0 %v6073
    %6188 = vmatpush.bf16.msra.mxu0 %v6072
    %6189 = vmatpush.bf16.msra.mxu0 %v6071
    %6190 = vmatpush.bf16.msra.mxu0 %v6070
    %6191 = vmatpush.bf16.msra.mxu0 %v6069
    %6192 = vmatpush.bf16.msra.mxu0 %v6068
    %6193 = vmatpush.bf16.msra.mxu0 %v6067
    %6194 = vmatpush.bf16.msra.mxu0 %v6066
    %6195 = vmatmul.bf16.gmra.mxu0 %v5737
    %v6196 = vpop.f32.mrf.mxu0
    %v6197 = vadd.f32 %v6184, %v6196
    %v6198 = vpop.f32.mrf.mxu0
    %6199 = vdwg.mxu0
    %6200 = vst [vmem:[#allocation10] sm:$0xff] %v3149
    %6201 = vst [vmem:[#allocation10 + $0x8] sm:$0xff] %v3233
    %v6202 = vtanh.pop %v6197
    %6203 = vst [vmem:[#allocation10 + $0x10] sm:$0xff] %v6202
    // Predicated region
    $region34: #{tpu_custom_call.1} parent=1 // pred_check
      _
    $region35: #{tpu_custom_call.1} parent=1 // pred_check_branch
      %6205 = sbr.rel (0) target = $region37
    $region36: #{tpu_custom_call.1} parent=1 // pred_region
      %6207 = vsyncadd [#allocation4], 0
      %s6209 = sshll.u32 [#allocation10], 4
      %s6210 = int_to_ptr.vmem [resolvable:$true] %s6209
      %s6211 = sshll.u32 %s4, 4
      %s6212 = int_to_ptr.hbm [resolvable:$true] %s6211
      %6214 = dma.vmem_to_hbm [thread:$0]  %s6210, 384, %s6212, [#allocation4]
    $region37: #{tpu_custom_call.1} parent=1 // pred_fallthru
      _
    // Predicated region
    $region38: #{tpu_custom_call.1} parent=1 // pred_check
      _
    $region39: #{tpu_custom_call.1} parent=1 // pred_check_branch
      %6216 = sbr.rel (0) target = $region41
    $region40: #{tpu_custom_call.1} parent=1 // pred_region
      %6218 = dma.done [#allocation4], 384
    $region41: #{tpu_custom_call.1} parent=1 // pred_fallthru
      _
    %6219 = vsyncpa [#allocation3], 1
    %6220 = vsyncpa [#allocation6], 1
    %6221 = vsyncpa [#allocation9], 1
    %6222 = vsyncpa [#allocation4], 1

</llo_original>
